<compile_context>
chip_gen: v5e
topology: v5e:2x2
jax: 0.10.0
libtpu: 0.0.40
codegen_flags: <defaults>
</compile_context>

<pallas_src>
import jax
import jax.numpy as jnp
from jax.experimental import pallas as pl
from jax.experimental.pallas import tpu as pltpu  # noqa: F401  (kept for TPU backend)

LEAKY_SLOPE = 0.01   # torch.nn.LeakyReLU default
BN_EPS = 1e-5        # torch.nn.BatchNorm1d default


def _leaky(x):
    return jnp.where(x >= 0, x, LEAKY_SLOPE * x)


# ------------------------------ fused kernel ------------------------------

def _vae_kernel(
    # --- encoder inputs ---
    xt_ref, g0_ref, b0_ref,
    w1_ref, cb1_ref, g1_ref, be1_ref,
    w2_ref, cb2_ref, g2_ref, be2_ref,
    w3_ref, cb3_ref,
    wh_ref, bh_ref, eps_ref,
    # --- decoder inputs ---
    wfh_ref, bfh_ref,
    d3w_ref, d3b_ref, d2w_ref, d2b_ref,
    d1w_ref, d1b_ref,
    # --- outputs ---
    hl_out, rec_out,
):
    f32 = jnp.float32
    N, two_lp1, K1 = xt_ref.shape      # (batch, 2*24, 5)
    Lp1 = two_lp1 // 2                 # 24
    C = w1_ref.shape[1]                # 64 channels
    K2 = w2_ref.shape[0] // C          # 5
    L2 = Lp1 - K2 + 1                  # 20
    Lp2 = L2 // 2                      # 10
    K3 = w3_ref.shape[0] // C          # 3
    L3 = Lp2 - K3 + 1                  # 8
    H = eps_ref.shape[1]               # latent size
    KD3 = d3w_ref.shape[0] // C        # 3
    D3 = L3 + KD3 - 1                  # 10 (== Lp2)
    U2 = 2 * D3                        # 20
    KD2 = d2w_ref.shape[0] // C        # 5
    D2 = U2 + KD2 - 1                  # 24 (== Lp1)
    U1 = 2 * D2                        # 48
    KD1 = d1w_ref.shape[0]             # 3 tap-pairs of the stride-2 deconv
    LH = U1 + KD1 - 1                  # 50 (half of the output length)

    def mm(a, b):
        return jnp.dot(a, b, preferred_element_type=f32)

    def sel(rows, cols, off, transpose):
        # 0/1 gather (transpose=False) / scatter (transpose=True) matrices for
        # the even/odd pooling pattern, built from iota (used only for the MXU
        # pool-2 gather and the two MaxUnpool scatters).
        r = jax.lax.broadcasted_iota(jnp.int32, (rows, cols), 0)
        c = jax.lax.broadcasted_iota(jnp.int32, (rows, cols), 1)
        cond = (r == 2 * c + off) if transpose else (c == 2 * r + off)
        return cond.astype(f32)

    # -------- BN0 (batch stats) + conv1(stride 2): whole batch, one matmul ---
    # xt rows [0, Lp1) hold the even-phase conv windows, rows [Lp1, 2*Lp1) the
    # odd-phase ones, so MaxPool-1 becomes a plain elementwise max below.
    taps = [xt_ref[n] for n in range(N)]              # (2*Lp1, K1) each
    mean0 = sum(taps) / N
    var0 = sum((t - mean0) ** 2 for t in taps) / N
    inv0 = jax.lax.rsqrt(var0 + BN_EPS)
    g0 = g0_ref[...]
    b0 = b0_ref[...]
    xbn = jnp.concatenate([(t - mean0) * inv0 * g0 + b0 for t in taps], axis=0)
    y1 = mm(xbn, w1_ref[...]) + cb1_ref[...]          # (N*2*Lp1, C)

    # -------- MaxPool1(2) + LeakyReLU + BN1 ----------------------------------
    even1 = jnp.concatenate(
        [y1[n * two_lp1: n * two_lp1 + Lp1] for n in range(N)], axis=0)
    odd1 = jnp.concatenate(
        [y1[n * two_lp1 + Lp1: (n + 1) * two_lp1] for n in range(N)], axis=0)
    mask1 = (even1 >= odd1).astype(f32)               # 1 -> first element wins
    act1 = _leaky(jnp.maximum(even1, odd1))           # (N*Lp1, C)
    mu1 = jnp.mean(act1, axis=0, keepdims=True)
    v1 = jnp.mean((act1 - mu1) ** 2, axis=0, keepdims=True)
    act1 = (act1 - mu1) * jax.lax.rsqrt(v1 + BN_EPS) * g1_ref[...] + be1_ref[...]

    # -------- conv2: taps packed along the contraction dim -> one matmul -----
    slab2 = jnp.concatenate(
        [jnp.concatenate([act1[n * Lp1 + k: n * Lp1 + k + L2] for n in range(N)],
                         axis=0)
         for k in range(K2)], axis=1)                 # (N*L2, K2*C)
    y2 = mm(slab2, w2_ref[...]) + cb2_ref[...]        # (N*L2, C)

    # -------- MaxPool2(2) + LeakyReLU + BN2 ----------------------------------
    se2 = sel(N * Lp2, N * L2, 0, False)
    so2 = sel(N * Lp2, N * L2, 1, False)
    even2 = mm(se2, y2)
    odd2 = mm(so2, y2)
    mask2 = (even2 >= odd2).astype(f32)
    act2 = _leaky(jnp.maximum(even2, odd2))           # (N*Lp2, C)
    mu2 = jnp.mean(act2, axis=0, keepdims=True)
    v2 = jnp.mean((act2 - mu2) ** 2, axis=0, keepdims=True)
    act2 = (act2 - mu2) * jax.lax.rsqrt(v2 + BN_EPS) * g2_ref[...] + be2_ref[...]

    # -------- conv3 (packed taps) + per-sample flatten + fused heads ---------
    slab3 = jnp.concatenate(
        [jnp.concatenate([act2[n * Lp2 + k: n * Lp2 + k + L3] for n in range(N)],
                         axis=0)
         for k in range(K3)], axis=1)                 # (N*L3, K3*C)
    y3 = mm(slab3, w3_ref[...]) + cb3_ref[...]        # (N*L3, C)

    # (l, c)-major flatten of each sample's (L3, C) block into one 512-lane row
    y3_flat = jnp.concatenate(
        [jnp.concatenate([y3[n * L3 + l: n * L3 + l + 1, :] for l in range(L3)],
                         axis=1)
         for n in range(N)], axis=0)                  # (N, L3*C)

    hl = mm(y3_flat, wh_ref[...]) + bh_ref[...]       # (N, 2H) = [h | logsigma]
    hl_out[...] = hl

    h = hl[:, 0:H]
    logsigma = hl[:, H:2 * H]
    z = h + eps_ref[...] * jnp.exp(logsigma)          # (N, H)

    # -------- from_h as one matmul, un-flattened into padded deconv3 input ---
    zf = mm(z, wfh_ref[...]) + bfh_ref[...]           # (N, L3*C)
    pad3 = jnp.zeros((KD3 - 1, C), f32)
    p3 = [jnp.concatenate([pad3]
                          + [zf[n: n + 1, l * C: (l + 1) * C] for l in range(L3)]
                          + [pad3], axis=0)           # (L3 + 2*(KD3-1), C)
          for n in range(N)]

    # -------- deconv3 (packed taps) + LeakyReLU -------------------------------
    dslab3 = jnp.concatenate(
        [jnp.concatenate([p3[n][k: k + D3] for n in range(N)], axis=0)
         for k in range(KD3)], axis=1)                # (N*D3, KD3*C)
    d3 = _leaky(mm(dslab3, d3w_ref[...]) + d3b_ref[...])      # (N*D3, C)

    # -------- MaxUnpool(2) with the pool-2 argmax mask ------------------------
    ue2 = sel(N * U2, N * Lp2, 0, True)
    uo2 = sel(N * U2, N * Lp2, 1, True)
    u2 = mm(ue2, d3 * mask2) + mm(uo2, d3 * (1.0 - mask2))    # (N*U2, C)

    pad2 = jnp.zeros((KD2 - 1, C), f32)
    p2 = [jnp.concatenate([pad2, u2[n * U2: (n + 1) * U2], pad2], axis=0)
          for n in range(N)]                          # (U2 + 2*(KD2-1), C)

    # -------- deconv2 (packed taps) + LeakyReLU -------------------------------
    dslab2 = jnp.concatenate(
        [jnp.concatenate([p2[n][k: k + D2] for n in range(N)], axis=0)
         for k in range(KD2)], axis=1)                # (N*D2, KD2*C)
    d2 = _leaky(mm(dslab2, d2w_ref[...]) + d2b_ref[...])      # (N*D2, C)

    # -------- MaxUnpool(2) with the pool-1 argmax mask ------------------------
    ue1 = sel(N * U1, N * Lp1, 0, True)
    uo1 = sel(N * U1, N * Lp1, 1, True)
    u1 = mm(ue1, d2 * mask1) + mm(uo1, d2 * (1.0 - mask1))    # (N*U1, C)

    pad1 = jnp.zeros((KD1 - 1, C), f32)
    p1 = [jnp.concatenate([pad1, u1[n * U1: (n + 1) * U1], pad1], axis=0)
          for n in range(N)]                          # (U1 + 2*(KD1-1), C)

    # -------- deconv1 (stride 2) as an even/odd output-phase split ------------
    yb = d1b_ref[...]                                 # (1,1) -> broadcasts
    for j in range(KD1):
        sl = jnp.concatenate([p1[n][j: j + LH] for n in range(N)], axis=0)
        yb = yb + mm(sl, d1w_ref[j])                  # (N*LH, 2)
    rec_out[...] = yb


# ------------------------------ VAE forward -------------------------------

def vae_forward(params, x, eps_key):
    N, L0 = x.shape
    H = params["to_h_w"].shape[1]
    C, _, K1 = params["conv1_w"].shape
    L1 = (L0 - K1) // 2 + 1
    Lp1 = L1 // 2
    K2 = params["conv2_w"].shape[2]
    L2 = Lp1 - K2 + 1
    Lp2 = L2 // 2
    K3 = params["conv3_w"].shape[2]
    L3 = Lp2 - K3 + 1
    KD3 = params["deconv3_w"].shape[2]
    D3 = L3 + KD3 - 1
    U2 = 2 * D3
    KD2 = params["deconv2_w"].shape[2]
    D2 = U2 + KD2 - 1
    U1 = 2 * D2
    KD1 = params["deconv1_w"].shape[2] // 2
    LH = U1 + KD1 - 1

    assert params["to_h_w"].shape[0] == C * L3
    assert L1 % 2 == 0 and L2 % 2 == 0
    assert D3 == Lp2 and D2 == Lp1          # required by MaxUnpool shapes

    eps = jax.random.normal(eps_key, (N, H), jnp.float32)   # torch.randn

    # --- tiny wrapper-side layout prep (pure plumbing on small arrays) -------
    # stride-2 conv1 windows gathered per pooling phase: even phase starts at
    # 4m, odd phase at 4m+2; BN0 gamma/beta gathered identically.
    def gather_taps(v, start):
        return jnp.stack([v[..., start + k: start + k + 4 * (Lp1 - 1) + 1: 4]
                          for k in range(K1)], axis=-1)

    xt = jnp.concatenate([gather_taps(x, 0), gather_taps(x, 2)], axis=1)   # (N, 2*Lp1, K1)
    g0 = jnp.concatenate([gather_taps(params["bn0_g"], 0),
                          gather_taps(params["bn0_g"], 2)], axis=0)        # (2*Lp1, K1)
    b0 = jnp.concatenate([gather_taps(params["bn0_b"], 0),
                          gather_taps(params["bn0_b"], 2)], axis=0)

    w1m = params["conv1_w"][:, 0, :].T                                     # (K1, C)
    w2p = jnp.transpose(params["conv2_w"], (2, 1, 0)).reshape(K2 * C, C)   # packed
    w3p = jnp.transpose(params["conv3_w"], (2, 1, 0)).reshape(K3 * C, C)

    def lc_order(w):   # torch (c,l)-flatten rows -> kernel (l,c)-flatten rows
        return jnp.transpose(w.reshape(C, L3, H), (1, 0, 2)).reshape(L3 * C, H)

    wheads = jnp.concatenate([lc_order(params["to_h_w"]),
                              lc_order(params["to_ls_w"])], axis=1)        # (L3*C, 2H)
    bheads = jnp.concatenate([params["to_h_b"], params["to_ls_b"]]).reshape(1, 2 * H)

    wfh = jnp.transpose(params["from_h_w"].reshape(H, C, L3),
                        (0, 2, 1)).reshape(H, L3 * C)                      # (H, L3*C)
    bfh = params["from_h_b"].reshape(C, L3).T.reshape(1, L3 * C)

    d3p = jnp.transpose(params["deconv3_w"][:, :, ::-1], (2, 0, 1)).reshape(KD3 * C, C)
    d2p = jnp.transpose(params["deconv2_w"][:, :, ::-1], (2, 0, 1)).reshape(KD2 * C, C)
    d1w = jnp.transpose(params["deconv1_w"][:, 0, :].reshape(C, KD1, 2),
                        (1, 0, 2))[::-1]                                   # (KD1, C, 2)

    row = lambda v: v.reshape(1, -1)

    inputs = (
        xt, g0, b0,
        w1m, row(params["conv1_b"]), row(params["bn1_g"]), row(params["bn1_b"]),
        w2p, row(params["conv2_b"]), row(params["bn2_g"]), row(params["bn2_b"]),
        w3p, row(params["conv3_b"]),
        wheads, bheads, eps,
        wfh, bfh,
        d3p, row(params["deconv3_b"]), d2p, row(params["deconv2_b"]),
        d1w, params["deconv1_b"].reshape(1, 1),
    )

    out_shape = (
        jax.ShapeDtypeStruct((N, 2 * H), jnp.float32),    # [h | logsigma] merged
        jax.ShapeDtypeStruct((N * LH, 2), jnp.float32),   # recon, phase-split
    )

    hl, rec = pl.pallas_call(
        _vae_kernel,
        out_shape=out_shape,
    )(*inputs)

    recon = rec.reshape(N, 2 * LH)        # interleave even/odd output phases
    return recon, hl[:, :H], hl[:, H:]


# ------------------------------ parameters --------------------------------

def init_params(key, h_size):
    ks = jax.random.split(key, 9)

    def w(k, shape, scale=0.05):
        return scale * jax.random.normal(k, shape, jnp.float32)

    return dict(
        bn0_g=jnp.ones((100,), jnp.float32), bn0_b=jnp.zeros((100,), jnp.float32),
        conv1_w=w(ks[0], (64, 1, 5)), conv1_b=jnp.zeros((64,), jnp.float32),
        bn1_g=jnp.ones((64,), jnp.float32), bn1_b=jnp.zeros((64,), jnp.float32),
        conv2_w=w(ks[1], (64, 64, 5)), conv2_b=jnp.zeros((64,), jnp.float32),
        bn2_g=jnp.ones((64,), jnp.float32), bn2_b=jnp.zeros((64,), jnp.float32),
        conv3_w=w(ks[2], (64, 64, 3)), conv3_b=jnp.zeros((64,), jnp.float32),
        to_h_w=w(ks[3], (512, h_size)), to_h_b=jnp.zeros((h_size,), jnp.float32),
        to_ls_w=w(ks[4], (512, h_size)), to_ls_b=jnp.zeros((h_size,), jnp.float32),
        from_h_w=w(ks[5], (h_size, 512)), from_h_b=jnp.zeros((512,), jnp.float32),
        deconv3_w=w(ks[6], (64, 64, 3)), deconv3_b=jnp.zeros((64,), jnp.float32),
        deconv2_w=w(ks[7], (64, 64, 5)), deconv2_b=jnp.zeros((64,), jnp.float32),
        deconv1_w=w(ks[8], (64, 1, 6)), deconv1_b=jnp.zeros((1,), jnp.float32),
    )


if __name__ == "__main__":
    H_SIZE = 32
    key = jax.random.PRNGKey(0)
    k_x, k_eps, k_params = jax.random.split(key, 3)

    x = jax.random.normal(k_x, (2, 100), jnp.float32)
    params = init_params(k_params, H_SIZE)

    fwd = jax.jit(vae_forward)
    recon, h, logsigma = fwd(params, x, k_eps)
    jax.block_until_ready((recon, h, logsigma))

    assert recon.shape == (2, 100), recon.shape
    assert h.shape == (2, H_SIZE), h.shape
    assert logsigma.shape == (2, H_SIZE), logsigma.shape
    assert jnp.all(jnp.isfinite(recon)) and jnp.all(jnp.isfinite(h))
    assert jnp.all(jnp.isfinite(logsigma))
    print("KERNEL_OK")
</pallas_src>

<mosaic_0001>
module attributes {stable_mosaic.version = 11 : i64} {
  func.func @_vae_kernel(%arg0: memref<2x48x5xf32, #tpu.memory_space<vmem>>, %arg1: memref<48x5xf32, #tpu.memory_space<vmem>>, %arg2: memref<48x5xf32, #tpu.memory_space<vmem>>, %arg3: memref<5x64xf32, #tpu.memory_space<vmem>>, %arg4: memref<1x64xf32, #tpu.memory_space<vmem>>, %arg5: memref<1x64xf32, #tpu.memory_space<vmem>>, %arg6: memref<1x64xf32, #tpu.memory_space<vmem>>, %arg7: memref<320x64xf32, #tpu.memory_space<vmem>>, %arg8: memref<1x64xf32, #tpu.memory_space<vmem>>, %arg9: memref<1x64xf32, #tpu.memory_space<vmem>>, %arg10: memref<1x64xf32, #tpu.memory_space<vmem>>, %arg11: memref<192x64xf32, #tpu.memory_space<vmem>>, %arg12: memref<1x64xf32, #tpu.memory_space<vmem>>, %arg13: memref<512x64xf32, #tpu.memory_space<vmem>>, %arg14: memref<1x64xf32, #tpu.memory_space<vmem>>, %arg15: memref<2x32xf32, #tpu.memory_space<vmem>>, %arg16: memref<32x512xf32, #tpu.memory_space<vmem>>, %arg17: memref<1x512xf32, #tpu.memory_space<vmem>>, %arg18: memref<192x64xf32, #tpu.memory_space<vmem>>, %arg19: memref<1x64xf32, #tpu.memory_space<vmem>>, %arg20: memref<320x64xf32, #tpu.memory_space<vmem>>, %arg21: memref<1x64xf32, #tpu.memory_space<vmem>>, %arg22: memref<3x64x2xf32, #tpu.memory_space<vmem>>, %arg23: memref<1x1xf32, #tpu.memory_space<vmem>>, %arg24: memref<2x64xf32, #tpu.memory_space<vmem>>, %arg25: memref<100x2xf32, #tpu.memory_space<vmem>>) attributes {dimension_semantics = [], scalar_prefetch = 0 : i64, scratch_operands = 0 : i64, tpu.core_type = #tpu.core_type<tc>} {
    %c0 = arith.constant 0 : index
    %c0_0 = arith.constant 0 : index
    %c0_1 = arith.constant 0 : index
    %0 = vector.load %arg0[%c0, %c0_0, %c0_1] : memref<2x48x5xf32, #tpu.memory_space<vmem>>, vector<1x48x5xf32>
    %1 = vector.shape_cast %0 : vector<1x48x5xf32> to vector<48x5xf32>
    %c1 = arith.constant 1 : index
    %c0_2 = arith.constant 0 : index
    %c0_3 = arith.constant 0 : index
    %2 = vector.load %arg0[%c1, %c0_2, %c0_3] : memref<2x48x5xf32, #tpu.memory_space<vmem>>, vector<1x48x5xf32>
    %3 = vector.shape_cast %2 : vector<1x48x5xf32> to vector<48x5xf32>
    %cst = arith.constant 0.000000e+00 : f32
    %4 = vector.broadcast %cst : f32 to vector<48x5xf32>
    %5 = arith.addf %4, %1 : vector<48x5xf32>
    %6 = arith.addf %5, %3 : vector<48x5xf32>
    %cst_4 = arith.constant 2.000000e+00 : f32
    %7 = vector.broadcast %cst_4 : f32 to vector<48x5xf32>
    %8 = arith.divf %6, %7 : vector<48x5xf32>
    %9 = arith.subf %1, %8 : vector<48x5xf32>
    %10 = arith.mulf %9, %9 : vector<48x5xf32>
    %cst_5 = arith.constant 0.000000e+00 : f32
    %11 = vector.broadcast %cst_5 : f32 to vector<48x5xf32>
    %12 = arith.addf %11, %10 : vector<48x5xf32>
    %13 = arith.subf %3, %8 : vector<48x5xf32>
    %14 = arith.mulf %13, %13 : vector<48x5xf32>
    %15 = arith.addf %12, %14 : vector<48x5xf32>
    %cst_6 = arith.constant 2.000000e+00 : f32
    %16 = vector.broadcast %cst_6 : f32 to vector<48x5xf32>
    %17 = arith.divf %15, %16 : vector<48x5xf32>
    %cst_7 = arith.constant 9.99999974E-6 : f32
    %18 = vector.broadcast %cst_7 : f32 to vector<48x5xf32>
    %19 = arith.addf %17, %18 : vector<48x5xf32>
    %20 = math.rsqrt %19 : vector<48x5xf32>
    %c0_8 = arith.constant 0 : index
    %c0_9 = arith.constant 0 : index
    %21 = vector.load %arg1[%c0_8, %c0_9] : memref<48x5xf32, #tpu.memory_space<vmem>>, vector<48x5xf32>
    %c0_10 = arith.constant 0 : index
    %c0_11 = arith.constant 0 : index
    %22 = vector.load %arg2[%c0_10, %c0_11] : memref<48x5xf32, #tpu.memory_space<vmem>>, vector<48x5xf32>
    %23 = arith.subf %1, %8 : vector<48x5xf32>
    %24 = arith.mulf %23, %20 : vector<48x5xf32>
    %25 = arith.mulf %24, %21 : vector<48x5xf32>
    %26 = arith.addf %25, %22 : vector<48x5xf32>
    %27 = arith.subf %3, %8 : vector<48x5xf32>
    %28 = arith.mulf %27, %20 : vector<48x5xf32>
    %29 = arith.mulf %28, %21 : vector<48x5xf32>
    %30 = arith.addf %29, %22 : vector<48x5xf32>
    %31 = tpu.concatenate %26, %30 in 0 : vector<48x5xf32>, vector<48x5xf32> -> vector<96x5xf32>
    %c0_12 = arith.constant 0 : index
    %c0_13 = arith.constant 0 : index
    %32 = vector.load %arg3[%c0_12, %c0_13] : memref<5x64xf32, #tpu.memory_space<vmem>>, vector<5x64xf32>
    %cst_14 = arith.constant dense<0.000000e+00> : vector<96x64xf32>
    %33 = tpu.matmul %31, %32, %cst_14 {dimension_numbers = #tpu.dot_dimension_numbers<[1], [0], [0], [1], [0, 0, 1, 1], [], []>} : vector<96x5xf32>, vector<5x64xf32>, vector<96x64xf32> -> vector<96x64xf32>
    %c0_15 = arith.constant 0 : index
    %c0_16 = arith.constant 0 : index
    %34 = vector.load %arg4[%c0_15, %c0_16] : memref<1x64xf32, #tpu.memory_space<vmem>>, vector<1x64xf32>
    %35 = vector.broadcast %34 : vector<1x64xf32> to vector<96x64xf32>
    %36 = arith.addf %33, %35 : vector<96x64xf32>
    %37 = vector.extract_strided_slice %36 {offsets = [0, 0], sizes = [24, 64], strides = [1, 1]} : vector<96x64xf32> to vector<24x64xf32>
    %38 = vector.extract_strided_slice %36 {offsets = [48, 0], sizes = [24, 64], strides = [1, 1]} : vector<96x64xf32> to vector<24x64xf32>
    %39 = tpu.concatenate %37, %38 in 0 : vector<24x64xf32>, vector<24x64xf32> -> vector<48x64xf32>
    %40 = vector.extract_strided_slice %36 {offsets = [24, 0], sizes = [24, 64], strides = [1, 1]} : vector<96x64xf32> to vector<24x64xf32>
    %41 = vector.extract_strided_slice %36 {offsets = [72, 0], sizes = [24, 64], strides = [1, 1]} : vector<96x64xf32> to vector<24x64xf32>
    %42 = tpu.concatenate %40, %41 in 0 : vector<24x64xf32>, vector<24x64xf32> -> vector<48x64xf32>
    %43 = arith.cmpf oge, %39, %42 : vector<48x64xf32>
    %44 = arith.extui %43 : vector<48x64xi1> to vector<48x64xi32>
    %45 = arith.sitofp %44 : vector<48x64xi32> to vector<48x64xf32>
    %46 = arith.maximumf %39, %42 : vector<48x64xf32>
    %cst_17 = arith.constant 0.000000e+00 : f32
    %47 = vector.broadcast %cst_17 : f32 to vector<48x64xf32>
    %48 = arith.cmpf oge, %46, %47 : vector<48x64xf32>
    %cst_18 = arith.constant 0.00999999977 : f32
    %49 = vector.broadcast %cst_18 : f32 to vector<48x64xf32>
    %50 = arith.mulf %49, %46 : vector<48x64xf32>
    %51 = arith.select %48, %46, %50 : vector<48x64xi1>, vector<48x64xf32>
    %cst_19 = arith.constant dense<0.000000e+00> : vector<64xf32>
    %52 = vector.multi_reduction <add>, %51, %cst_19 [0] : vector<48x64xf32> to vector<64xf32>
    %53 = vector.shape_cast %52 : vector<64xf32> to vector<1x64xf32>
    %cst_20 = arith.constant 4.800000e+01 : f32
    %54 = vector.broadcast %cst_20 : f32 to vector<1x64xf32>
    %55 = arith.divf %53, %54 : vector<1x64xf32>
    %56 = vector.broadcast %55 : vector<1x64xf32> to vector<48x64xf32>
    %57 = arith.subf %51, %56 : vector<48x64xf32>
    %58 = arith.mulf %57, %57 : vector<48x64xf32>
    %cst_21 = arith.constant dense<0.000000e+00> : vector<64xf32>
    %59 = vector.multi_reduction <add>, %58, %cst_21 [0] : vector<48x64xf32> to vector<64xf32>
    %60 = vector.shape_cast %59 : vector<64xf32> to vector<1x64xf32>
    %cst_22 = arith.constant 4.800000e+01 : f32
    %61 = vector.broadcast %cst_22 : f32 to vector<1x64xf32>
    %62 = arith.divf %60, %61 : vector<1x64xf32>
    %63 = vector.broadcast %55 : vector<1x64xf32> to vector<48x64xf32>
    %64 = arith.subf %51, %63 : vector<48x64xf32>
    %cst_23 = arith.constant 9.99999974E-6 : f32
    %65 = vector.broadcast %cst_23 : f32 to vector<1x64xf32>
    %66 = arith.addf %62, %65 : vector<1x64xf32>
    %67 = math.rsqrt %66 : vector<1x64xf32>
    %68 = vector.broadcast %67 : vector<1x64xf32> to vector<48x64xf32>
    %69 = arith.mulf %64, %68 : vector<48x64xf32>
    %c0_24 = arith.constant 0 : index
    %c0_25 = arith.constant 0 : index
    %70 = vector.load %arg5[%c0_24, %c0_25] : memref<1x64xf32, #tpu.memory_space<vmem>>, vector<1x64xf32>
    %71 = vector.broadcast %70 : vector<1x64xf32> to vector<48x64xf32>
    %72 = arith.mulf %69, %71 : vector<48x64xf32>
    %c0_26 = arith.constant 0 : index
    %c0_27 = arith.constant 0 : index
    %73 = vector.load %arg6[%c0_26, %c0_27] : memref<1x64xf32, #tpu.memory_space<vmem>>, vector<1x64xf32>
    %74 = vector.broadcast %73 : vector<1x64xf32> to vector<48x64xf32>
    %75 = arith.addf %72, %74 : vector<48x64xf32>
    %76 = vector.extract_strided_slice %75 {offsets = [0, 0], sizes = [20, 64], strides = [1, 1]} : vector<48x64xf32> to vector<20x64xf32>
    %77 = vector.extract_strided_slice %75 {offsets = [24, 0], sizes = [20, 64], strides = [1, 1]} : vector<48x64xf32> to vector<20x64xf32>
    %78 = tpu.concatenate %76, %77 in 0 : vector<20x64xf32>, vector<20x64xf32> -> vector<40x64xf32>
    %79 = vector.extract_strided_slice %75 {offsets = [1, 0], sizes = [20, 64], strides = [1, 1]} : vector<48x64xf32> to vector<20x64xf32>
    %80 = vector.extract_strided_slice %75 {offsets = [25, 0], sizes = [20, 64], strides = [1, 1]} : vector<48x64xf32> to vector<20x64xf32>
    %81 = tpu.concatenate %79, %80 in 0 : vector<20x64xf32>, vector<20x64xf32> -> vector<40x64xf32>
    %82 = vector.extract_strided_slice %75 {offsets = [2, 0], sizes = [20, 64], strides = [1, 1]} : vector<48x64xf32> to vector<20x64xf32>
    %83 = vector.extract_strided_slice %75 {offsets = [26, 0], sizes = [20, 64], strides = [1, 1]} : vector<48x64xf32> to vector<20x64xf32>
    %84 = tpu.concatenate %82, %83 in 0 : vector<20x64xf32>, vector<20x64xf32> -> vector<40x64xf32>
    %85 = vector.extract_strided_slice %75 {offsets = [3, 0], sizes = [20, 64], strides = [1, 1]} : vector<48x64xf32> to vector<20x64xf32>
    %86 = vector.extract_strided_slice %75 {offsets = [27, 0], sizes = [20, 64], strides = [1, 1]} : vector<48x64xf32> to vector<20x64xf32>
    %87 = tpu.concatenate %85, %86 in 0 : vector<20x64xf32>, vector<20x64xf32> -> vector<40x64xf32>
    %88 = vector.extract_strided_slice %75 {offsets = [4, 0], sizes = [20, 64], strides = [1, 1]} : vector<48x64xf32> to vector<20x64xf32>
    %89 = vector.extract_strided_slice %75 {offsets = [28, 0], sizes = [20, 64], strides = [1, 1]} : vector<48x64xf32> to vector<20x64xf32>
    %90 = tpu.concatenate %88, %89 in 0 : vector<20x64xf32>, vector<20x64xf32> -> vector<40x64xf32>
    %91 = tpu.concatenate %78, %81, %84, %87, %90 in 1 : vector<40x64xf32>, vector<40x64xf32>, vector<40x64xf32>, vector<40x64xf32>, vector<40x64xf32> -> vector<40x320xf32>
    %c0_28 = arith.constant 0 : index
    %c0_29 = arith.constant 0 : index
    %92 = vector.load %arg7[%c0_28, %c0_29] : memref<320x64xf32, #tpu.memory_space<vmem>>, vector<320x64xf32>
    %cst_30 = arith.constant dense<0.000000e+00> : vector<40x64xf32>
    %93 = tpu.matmul %91, %92, %cst_30 {dimension_numbers = #tpu.dot_dimension_numbers<[1], [0], [0], [1], [0, 0, 1, 1], [], []>} : vector<40x320xf32>, vector<320x64xf32>, vector<40x64xf32> -> vector<40x64xf32>
    %c0_31 = arith.constant 0 : index
    %c0_32 = arith.constant 0 : index
    %94 = vector.load %arg8[%c0_31, %c0_32] : memref<1x64xf32, #tpu.memory_space<vmem>>, vector<1x64xf32>
    %95 = vector.broadcast %94 : vector<1x64xf32> to vector<40x64xf32>
    %96 = arith.addf %93, %95 : vector<40x64xf32>
    %97 = tpu.iota {dimensions = array<i32: 0>} : vector<20x40xi32>
    %98 = tpu.iota {dimensions = array<i32: 1>} : vector<20x40xi32>
    %c2_i32 = arith.constant 2 : i32
    %99 = vector.broadcast %c2_i32 : i32 to vector<20x40xi32>
    %100 = arith.muli %99, %97 : vector<20x40xi32>
    %c0_i32 = arith.constant 0 : i32
    %101 = vector.broadcast %c0_i32 : i32 to vector<20x40xi32>
    %102 = arith.addi %100, %101 : vector<20x40xi32>
    %103 = arith.cmpi eq, %98, %102 : vector<20x40xi32>
    %104 = arith.extui %103 : vector<20x40xi1> to vector<20x40xi32>
    %105 = arith.sitofp %104 : vector<20x40xi32> to vector<20x40xf32>
    %106 = tpu.iota {dimensions = array<i32: 0>} : vector<20x40xi32>
    %107 = tpu.iota {dimensions = array<i32: 1>} : vector<20x40xi32>
    %c2_i32_33 = arith.constant 2 : i32
    %108 = vector.broadcast %c2_i32_33 : i32 to vector<20x40xi32>
    %109 = arith.muli %108, %106 : vector<20x40xi32>
    %c1_i32 = arith.constant 1 : i32
    %110 = vector.broadcast %c1_i32 : i32 to vector<20x40xi32>
    %111 = arith.addi %109, %110 : vector<20x40xi32>
    %112 = arith.cmpi eq, %107, %111 : vector<20x40xi32>
    %113 = arith.extui %112 : vector<20x40xi1> to vector<20x40xi32>
    %114 = arith.sitofp %113 : vector<20x40xi32> to vector<20x40xf32>
    %cst_34 = arith.constant dense<0.000000e+00> : vector<20x64xf32>
    %115 = tpu.matmul %105, %96, %cst_34 {dimension_numbers = #tpu.dot_dimension_numbers<[1], [0], [0], [1], [0, 0, 1, 1], [], []>} : vector<20x40xf32>, vector<40x64xf32>, vector<20x64xf32> -> vector<20x64xf32>
    %cst_35 = arith.constant dense<0.000000e+00> : vector<20x64xf32>
    %116 = tpu.matmul %114, %96, %cst_35 {dimension_numbers = #tpu.dot_dimension_numbers<[1], [0], [0], [1], [0, 0, 1, 1], [], []>} : vector<20x40xf32>, vector<40x64xf32>, vector<20x64xf32> -> vector<20x64xf32>
    %117 = arith.cmpf oge, %115, %116 : vector<20x64xf32>
    %118 = arith.extui %117 : vector<20x64xi1> to vector<20x64xi32>
    %119 = arith.sitofp %118 : vector<20x64xi32> to vector<20x64xf32>
    %120 = arith.maximumf %115, %116 : vector<20x64xf32>
    %cst_36 = arith.constant 0.000000e+00 : f32
    %121 = vector.broadcast %cst_36 : f32 to vector<20x64xf32>
    %122 = arith.cmpf oge, %120, %121 : vector<20x64xf32>
    %cst_37 = arith.constant 0.00999999977 : f32
    %123 = vector.broadcast %cst_37 : f32 to vector<20x64xf32>
    %124 = arith.mulf %123, %120 : vector<20x64xf32>
    %125 = arith.select %122, %120, %124 : vector<20x64xi1>, vector<20x64xf32>
    %cst_38 = arith.constant dense<0.000000e+00> : vector<64xf32>
    %126 = vector.multi_reduction <add>, %125, %cst_38 [0] : vector<20x64xf32> to vector<64xf32>
    %127 = vector.shape_cast %126 : vector<64xf32> to vector<1x64xf32>
    %cst_39 = arith.constant 2.000000e+01 : f32
    %128 = vector.broadcast %cst_39 : f32 to vector<1x64xf32>
    %129 = arith.divf %127, %128 : vector<1x64xf32>
    %130 = vector.broadcast %129 : vector<1x64xf32> to vector<20x64xf32>
    %131 = arith.subf %125, %130 : vector<20x64xf32>
    %132 = arith.mulf %131, %131 : vector<20x64xf32>
    %cst_40 = arith.constant dense<0.000000e+00> : vector<64xf32>
    %133 = vector.multi_reduction <add>, %132, %cst_40 [0] : vector<20x64xf32> to vector<64xf32>
    %134 = vector.shape_cast %133 : vector<64xf32> to vector<1x64xf32>
    %cst_41 = arith.constant 2.000000e+01 : f32
    %135 = vector.broadcast %cst_41 : f32 to vector<1x64xf32>
    %136 = arith.divf %134, %135 : vector<1x64xf32>
    %137 = vector.broadcast %129 : vector<1x64xf32> to vector<20x64xf32>
    %138 = arith.subf %125, %137 : vector<20x64xf32>
    %cst_42 = arith.constant 9.99999974E-6 : f32
    %139 = vector.broadcast %cst_42 : f32 to vector<1x64xf32>
    %140 = arith.addf %136, %139 : vector<1x64xf32>
    %141 = math.rsqrt %140 : vector<1x64xf32>
    %142 = vector.broadcast %141 : vector<1x64xf32> to vector<20x64xf32>
    %143 = arith.mulf %138, %142 : vector<20x64xf32>
    %c0_43 = arith.constant 0 : index
    %c0_44 = arith.constant 0 : index
    %144 = vector.load %arg9[%c0_43, %c0_44] : memref<1x64xf32, #tpu.memory_space<vmem>>, vector<1x64xf32>
    %145 = vector.broadcast %144 : vector<1x64xf32> to vector<20x64xf32>
    %146 = arith.mulf %143, %145 : vector<20x64xf32>
    %c0_45 = arith.constant 0 : index
    %c0_46 = arith.constant 0 : index
    %147 = vector.load %arg10[%c0_45, %c0_46] : memref<1x64xf32, #tpu.memory_space<vmem>>, vector<1x64xf32>
    %148 = vector.broadcast %147 : vector<1x64xf32> to vector<20x64xf32>
    %149 = arith.addf %146, %148 : vector<20x64xf32>
    %150 = vector.extract_strided_slice %149 {offsets = [0, 0], sizes = [8, 64], strides = [1, 1]} : vector<20x64xf32> to vector<8x64xf32>
    %151 = vector.extract_strided_slice %149 {offsets = [10, 0], sizes = [8, 64], strides = [1, 1]} : vector<20x64xf32> to vector<8x64xf32>
    %152 = tpu.concatenate %150, %151 in 0 : vector<8x64xf32>, vector<8x64xf32> -> vector<16x64xf32>
    %153 = vector.extract_strided_slice %149 {offsets = [1, 0], sizes = [8, 64], strides = [1, 1]} : vector<20x64xf32> to vector<8x64xf32>
    %154 = vector.extract_strided_slice %149 {offsets = [11, 0], sizes = [8, 64], strides = [1, 1]} : vector<20x64xf32> to vector<8x64xf32>
    %155 = tpu.concatenate %153, %154 in 0 : vector<8x64xf32>, vector<8x64xf32> -> vector<16x64xf32>
    %156 = vector.extract_strided_slice %149 {offsets = [2, 0], sizes = [8, 64], strides = [1, 1]} : vector<20x64xf32> to vector<8x64xf32>
    %157 = vector.extract_strided_slice %149 {offsets = [12, 0], sizes = [8, 64], strides = [1, 1]} : vector<20x64xf32> to vector<8x64xf32>
    %158 = tpu.concatenate %156, %157 in 0 : vector<8x64xf32>, vector<8x64xf32> -> vector<16x64xf32>
    %159 = tpu.concatenate %152, %155, %158 in 1 : vector<16x64xf32>, vector<16x64xf32>, vector<16x64xf32> -> vector<16x192xf32>
    %c0_47 = arith.constant 0 : index
    %c0_48 = arith.constant 0 : index
    %160 = vector.load %arg11[%c0_47, %c0_48] : memref<192x64xf32, #tpu.memory_space<vmem>>, vector<192x64xf32>
    %cst_49 = arith.constant dense<0.000000e+00> : vector<16x64xf32>
    %161 = tpu.matmul %159, %160, %cst_49 {dimension_numbers = #tpu.dot_dimension_numbers<[1], [0], [0], [1], [0, 0, 1, 1], [], []>} : vector<16x192xf32>, vector<192x64xf32>, vector<16x64xf32> -> vector<16x64xf32>
    %c0_50 = arith.constant 0 : index
    %c0_51 = arith.constant 0 : index
    %162 = vector.load %arg12[%c0_50, %c0_51] : memref<1x64xf32, #tpu.memory_space<vmem>>, vector<1x64xf32>
    %163 = vector.broadcast %162 : vector<1x64xf32> to vector<16x64xf32>
    %164 = arith.addf %161, %163 : vector<16x64xf32>
    %165 = vector.extract_strided_slice %164 {offsets = [0, 0], sizes = [1, 64], strides = [1, 1]} : vector<16x64xf32> to vector<1x64xf32>
    %166 = vector.extract_strided_slice %164 {offsets = [1, 0], sizes = [1, 64], strides = [1, 1]} : vector<16x64xf32> to vector<1x64xf32>
    %167 = vector.extract_strided_slice %164 {offsets = [2, 0], sizes = [1, 64], strides = [1, 1]} : vector<16x64xf32> to vector<1x64xf32>
    %168 = vector.extract_strided_slice %164 {offsets = [3, 0], sizes = [1, 64], strides = [1, 1]} : vector<16x64xf32> to vector<1x64xf32>
    %169 = vector.extract_strided_slice %164 {offsets = [4, 0], sizes = [1, 64], strides = [1, 1]} : vector<16x64xf32> to vector<1x64xf32>
    %170 = vector.extract_strided_slice %164 {offsets = [5, 0], sizes = [1, 64], strides = [1, 1]} : vector<16x64xf32> to vector<1x64xf32>
    %171 = vector.extract_strided_slice %164 {offsets = [6, 0], sizes = [1, 64], strides = [1, 1]} : vector<16x64xf32> to vector<1x64xf32>
    %172 = vector.extract_strided_slice %164 {offsets = [7, 0], sizes = [1, 64], strides = [1, 1]} : vector<16x64xf32> to vector<1x64xf32>
    %173 = tpu.concatenate %165, %166, %167, %168, %169, %170, %171, %172 in 1 : vector<1x64xf32>, vector<1x64xf32>, vector<1x64xf32>, vector<1x64xf32>, vector<1x64xf32>, vector<1x64xf32>, vector<1x64xf32>, vector<1x64xf32> -> vector<1x512xf32>
    %174 = vector.extract_strided_slice %164 {offsets = [8, 0], sizes = [1, 64], strides = [1, 1]} : vector<16x64xf32> to vector<1x64xf32>
    %175 = vector.extract_strided_slice %164 {offsets = [9, 0], sizes = [1, 64], strides = [1, 1]} : vector<16x64xf32> to vector<1x64xf32>
    %176 = vector.extract_strided_slice %164 {offsets = [10, 0], sizes = [1, 64], strides = [1, 1]} : vector<16x64xf32> to vector<1x64xf32>
    %177 = vector.extract_strided_slice %164 {offsets = [11, 0], sizes = [1, 64], strides = [1, 1]} : vector<16x64xf32> to vector<1x64xf32>
    %178 = vector.extract_strided_slice %164 {offsets = [12, 0], sizes = [1, 64], strides = [1, 1]} : vector<16x64xf32> to vector<1x64xf32>
    %179 = vector.extract_strided_slice %164 {offsets = [13, 0], sizes = [1, 64], strides = [1, 1]} : vector<16x64xf32> to vector<1x64xf32>
    %180 = vector.extract_strided_slice %164 {offsets = [14, 0], sizes = [1, 64], strides = [1, 1]} : vector<16x64xf32> to vector<1x64xf32>
    %181 = vector.extract_strided_slice %164 {offsets = [15, 0], sizes = [1, 64], strides = [1, 1]} : vector<16x64xf32> to vector<1x64xf32>
    %182 = tpu.concatenate %174, %175, %176, %177, %178, %179, %180, %181 in 1 : vector<1x64xf32>, vector<1x64xf32>, vector<1x64xf32>, vector<1x64xf32>, vector<1x64xf32>, vector<1x64xf32>, vector<1x64xf32>, vector<1x64xf32> -> vector<1x512xf32>
    %183 = tpu.concatenate %173, %182 in 0 : vector<1x512xf32>, vector<1x512xf32> -> vector<2x512xf32>
    %c0_52 = arith.constant 0 : index
    %c0_53 = arith.constant 0 : index
    %184 = vector.load %arg13[%c0_52, %c0_53] : memref<512x64xf32, #tpu.memory_space<vmem>>, vector<512x64xf32>
    %cst_54 = arith.constant dense<0.000000e+00> : vector<2x64xf32>
    %185 = tpu.matmul %183, %184, %cst_54 {dimension_numbers = #tpu.dot_dimension_numbers<[1], [0], [0], [1], [0, 0, 1, 1], [], []>} : vector<2x512xf32>, vector<512x64xf32>, vector<2x64xf32> -> vector<2x64xf32>
    %c0_55 = arith.constant 0 : index
    %c0_56 = arith.constant 0 : index
    %186 = vector.load %arg14[%c0_55, %c0_56] : memref<1x64xf32, #tpu.memory_space<vmem>>, vector<1x64xf32>
    %187 = vector.broadcast %186 : vector<1x64xf32> to vector<2x64xf32>
    %188 = arith.addf %185, %187 : vector<2x64xf32>
    %c0_57 = arith.constant 0 : index
    %c0_58 = arith.constant 0 : index
    %189 = vector.load %arg24[%c0_57, %c0_58] : memref<2x64xf32, #tpu.memory_space<vmem>>, vector<2x64xf32>
    tpu.vector_store %arg24[%c0_57, %c0_58], %188 {strides = array<i32>} : memref<2x64xf32, #tpu.memory_space<vmem>>, vector<2x64xf32>,
    %190 = vector.extract_strided_slice %188 {offsets = [0, 0], sizes = [2, 32], strides = [1, 1]} : vector<2x64xf32> to vector<2x32xf32>
    %191 = vector.extract_strided_slice %188 {offsets = [0, 32], sizes = [2, 32], strides = [1, 1]} : vector<2x64xf32> to vector<2x32xf32>
    %c0_59 = arith.constant 0 : index
    %c0_60 = arith.constant 0 : index
    %192 = vector.load %arg15[%c0_59, %c0_60] : memref<2x32xf32, #tpu.memory_space<vmem>>, vector<2x32xf32>
    %193 = math.exp %191 : vector<2x32xf32>
    %194 = arith.mulf %192, %193 : vector<2x32xf32>
    %195 = arith.addf %190, %194 : vector<2x32xf32>
    %c0_61 = arith.constant 0 : index
    %c0_62 = arith.constant 0 : index
    %196 = vector.load %arg16[%c0_61, %c0_62] : memref<32x512xf32, #tpu.memory_space<vmem>>, vector<32x512xf32>
    %cst_63 = arith.constant dense<0.000000e+00> : vector<2x512xf32>
    %197 = tpu.matmul %195, %196, %cst_63 {dimension_numbers = #tpu.dot_dimension_numbers<[1], [0], [0], [1], [0, 0, 1, 1], [], []>} : vector<2x32xf32>, vector<32x512xf32>, vector<2x512xf32> -> vector<2x512xf32>
    %c0_64 = arith.constant 0 : index
    %c0_65 = arith.constant 0 : index
    %198 = vector.load %arg17[%c0_64, %c0_65] : memref<1x512xf32, #tpu.memory_space<vmem>>, vector<1x512xf32>
    %199 = vector.broadcast %198 : vector<1x512xf32> to vector<2x512xf32>
    %200 = arith.addf %197, %199 : vector<2x512xf32>
    %cst_66 = arith.constant 0.000000e+00 : f32
    %201 = vector.broadcast %cst_66 : f32 to vector<2x64xf32>
    %202 = vector.extract_strided_slice %200 {offsets = [0, 0], sizes = [1, 64], strides = [1, 1]} : vector<2x512xf32> to vector<1x64xf32>
    %203 = vector.extract_strided_slice %200 {offsets = [0, 64], sizes = [1, 64], strides = [1, 1]} : vector<2x512xf32> to vector<1x64xf32>
    %204 = vector.extract_strided_slice %200 {offsets = [0, 128], sizes = [1, 64], strides = [1, 1]} : vector<2x512xf32> to vector<1x64xf32>
    %205 = vector.extract_strided_slice %200 {offsets = [0, 192], sizes = [1, 64], strides = [1, 1]} : vector<2x512xf32> to vector<1x64xf32>
    %206 = vector.extract_strided_slice %200 {offsets = [0, 256], sizes = [1, 64], strides = [1, 1]} : vector<2x512xf32> to vector<1x64xf32>
    %207 = vector.extract_strided_slice %200 {offsets = [0, 320], sizes = [1, 64], strides = [1, 1]} : vector<2x512xf32> to vector<1x64xf32>
    %208 = vector.extract_strided_slice %200 {offsets = [0, 384], sizes = [1, 64], strides = [1, 1]} : vector<2x512xf32> to vector<1x64xf32>
    %209 = vector.extract_strided_slice %200 {offsets = [0, 448], sizes = [1, 64], strides = [1, 1]} : vector<2x512xf32> to vector<1x64xf32>
    %210 = tpu.concatenate %201, %202, %203, %204, %205, %206, %207, %208, %209, %201 in 0 : vector<2x64xf32>, vector<1x64xf32>, vector<1x64xf32>, vector<1x64xf32>, vector<1x64xf32>, vector<1x64xf32>, vector<1x64xf32>, vector<1x64xf32>, vector<1x64xf32>, vector<2x64xf32> -> vector<12x64xf32>
    %211 = vector.extract_strided_slice %200 {offsets = [1, 0], sizes = [1, 64], strides = [1, 1]} : vector<2x512xf32> to vector<1x64xf32>
    %212 = vector.extract_strided_slice %200 {offsets = [1, 64], sizes = [1, 64], strides = [1, 1]} : vector<2x512xf32> to vector<1x64xf32>
    %213 = vector.extract_strided_slice %200 {offsets = [1, 128], sizes = [1, 64], strides = [1, 1]} : vector<2x512xf32> to vector<1x64xf32>
    %214 = vector.extract_strided_slice %200 {offsets = [1, 192], sizes = [1, 64], strides = [1, 1]} : vector<2x512xf32> to vector<1x64xf32>
    %215 = vector.extract_strided_slice %200 {offsets = [1, 256], sizes = [1, 64], strides = [1, 1]} : vector<2x512xf32> to vector<1x64xf32>
    %216 = vector.extract_strided_slice %200 {offsets = [1, 320], sizes = [1, 64], strides = [1, 1]} : vector<2x512xf32> to vector<1x64xf32>
    %217 = vector.extract_strided_slice %200 {offsets = [1, 384], sizes = [1, 64], strides = [1, 1]} : vector<2x512xf32> to vector<1x64xf32>
    %218 = vector.extract_strided_slice %200 {offsets = [1, 448], sizes = [1, 64], strides = [1, 1]} : vector<2x512xf32> to vector<1x64xf32>
    %219 = tpu.concatenate %201, %211, %212, %213, %214, %215, %216, %217, %218, %201 in 0 : vector<2x64xf32>, vector<1x64xf32>, vector<1x64xf32>, vector<1x64xf32>, vector<1x64xf32>, vector<1x64xf32>, vector<1x64xf32>, vector<1x64xf32>, vector<1x64xf32>, vector<2x64xf32> -> vector<12x64xf32>
    %220 = vector.extract_strided_slice %210 {offsets = [0, 0], sizes = [10, 64], strides = [1, 1]} : vector<12x64xf32> to vector<10x64xf32>
    %221 = vector.extract_strided_slice %219 {offsets = [0, 0], sizes = [10, 64], strides = [1, 1]} : vector<12x64xf32> to vector<10x64xf32>
    %222 = tpu.concatenate %220, %221 in 0 : vector<10x64xf32>, vector<10x64xf32> -> vector<20x64xf32>
    %223 = vector.extract_strided_slice %210 {offsets = [1, 0], sizes = [10, 64], strides = [1, 1]} : vector<12x64xf32> to vector<10x64xf32>
    %224 = vector.extract_strided_slice %219 {offsets = [1, 0], sizes = [10, 64], strides = [1, 1]} : vector<12x64xf32> to vector<10x64xf32>
    %225 = tpu.concatenate %223, %224 in 0 : vector<10x64xf32>, vector<10x64xf32> -> vector<20x64xf32>
    %226 = vector.extract_strided_slice %210 {offsets = [2, 0], sizes = [10, 64], strides = [1, 1]} : vector<12x64xf32> to vector<10x64xf32>
    %227 = vector.extract_strided_slice %219 {offsets = [2, 0], sizes = [10, 64], strides = [1, 1]} : vector<12x64xf32> to vector<10x64xf32>
    %228 = tpu.concatenate %226, %227 in 0 : vector<10x64xf32>, vector<10x64xf32> -> vector<20x64xf32>
    %229 = tpu.concatenate %222, %225, %228 in 1 : vector<20x64xf32>, vector<20x64xf32>, vector<20x64xf32> -> vector<20x192xf32>
    %c0_67 = arith.constant 0 : index
    %c0_68 = arith.constant 0 : index
    %230 = vector.load %arg18[%c0_67, %c0_68] : memref<192x64xf32, #tpu.memory_space<vmem>>, vector<192x64xf32>
    %cst_69 = arith.constant dense<0.000000e+00> : vector<20x64xf32>
    %231 = tpu.matmul %229, %230, %cst_69 {dimension_numbers = #tpu.dot_dimension_numbers<[1], [0], [0], [1], [0, 0, 1, 1], [], []>} : vector<20x192xf32>, vector<192x64xf32>, vector<20x64xf32> -> vector<20x64xf32>
    %c0_70 = arith.constant 0 : index
    %c0_71 = arith.constant 0 : index
    %232 = vector.load %arg19[%c0_70, %c0_71] : memref<1x64xf32, #tpu.memory_space<vmem>>, vector<1x64xf32>
    %233 = vector.broadcast %232 : vector<1x64xf32> to vector<20x64xf32>
    %234 = arith.addf %231, %233 : vector<20x64xf32>
    %cst_72 = arith.constant 0.000000e+00 : f32
    %235 = vector.broadcast %cst_72 : f32 to vector<20x64xf32>
    %236 = arith.cmpf oge, %234, %235 : vector<20x64xf32>
    %cst_73 = arith.constant 0.00999999977 : f32
    %237 = vector.broadcast %cst_73 : f32 to vector<20x64xf32>
    %238 = arith.mulf %237, %234 : vector<20x64xf32>
    %239 = arith.select %236, %234, %238 : vector<20x64xi1>, vector<20x64xf32>
    %240 = tpu.iota {dimensions = array<i32: 0>} : vector<40x20xi32>
    %241 = tpu.iota {dimensions = array<i32: 1>} : vector<40x20xi32>
    %c2_i32_74 = arith.constant 2 : i32
    %242 = vector.broadcast %c2_i32_74 : i32 to vector<40x20xi32>
    %243 = arith.muli %242, %241 : vector<40x20xi32>
    %c0_i32_75 = arith.constant 0 : i32
    %244 = vector.broadcast %c0_i32_75 : i32 to vector<40x20xi32>
    %245 = arith.addi %243, %244 : vector<40x20xi32>
    %246 = arith.cmpi eq, %240, %245 : vector<40x20xi32>
    %247 = arith.extui %246 : vector<40x20xi1> to vector<40x20xi32>
    %248 = arith.sitofp %247 : vector<40x20xi32> to vector<40x20xf32>
    %249 = tpu.iota {dimensions = array<i32: 0>} : vector<40x20xi32>
    %250 = tpu.iota {dimensions = array<i32: 1>} : vector<40x20xi32>
    %c2_i32_76 = arith.constant 2 : i32
    %251 = vector.broadcast %c2_i32_76 : i32 to vector<40x20xi32>
    %252 = arith.muli %251, %250 : vector<40x20xi32>
    %c1_i32_77 = arith.constant 1 : i32
    %253 = vector.broadcast %c1_i32_77 : i32 to vector<40x20xi32>
    %254 = arith.addi %252, %253 : vector<40x20xi32>
    %255 = arith.cmpi eq, %249, %254 : vector<40x20xi32>
    %256 = arith.extui %255 : vector<40x20xi1> to vector<40x20xi32>
    %257 = arith.sitofp %256 : vector<40x20xi32> to vector<40x20xf32>
    %258 = arith.mulf %239, %119 : vector<20x64xf32>
    %cst_78 = arith.constant dense<0.000000e+00> : vector<40x64xf32>
    %259 = tpu.matmul %248, %258, %cst_78 {dimension_numbers = #tpu.dot_dimension_numbers<[1], [0], [0], [1], [0, 0, 1, 1], [], []>} : vector<40x20xf32>, vector<20x64xf32>, vector<40x64xf32> -> vector<40x64xf32>
    %cst_79 = arith.constant 1.000000e+00 : f32
    %260 = vector.broadcast %cst_79 : f32 to vector<20x64xf32>
    %261 = arith.subf %260, %119 : vector<20x64xf32>
    %262 = arith.mulf %239, %261 : vector<20x64xf32>
    %cst_80 = arith.constant dense<0.000000e+00> : vector<40x64xf32>
    %263 = tpu.matmul %257, %262, %cst_80 {dimension_numbers = #tpu.dot_dimension_numbers<[1], [0], [0], [1], [0, 0, 1, 1], [], []>} : vector<40x20xf32>, vector<20x64xf32>, vector<40x64xf32> -> vector<40x64xf32>
    %264 = arith.addf %259, %263 : vector<40x64xf32>
    %cst_81 = arith.constant 0.000000e+00 : f32
    %265 = vector.broadcast %cst_81 : f32 to vector<4x64xf32>
    %266 = vector.extract_strided_slice %264 {offsets = [0, 0], sizes = [20, 64], strides = [1, 1]} : vector<40x64xf32> to vector<20x64xf32>
    %267 = tpu.concatenate %265, %266, %265 in 0 : vector<4x64xf32>, vector<20x64xf32>, vector<4x64xf32> -> vector<28x64xf32>
    %268 = vector.extract_strided_slice %264 {offsets = [20, 0], sizes = [20, 64], strides = [1, 1]} : vector<40x64xf32> to vector<20x64xf32>
    %269 = tpu.concatenate %265, %268, %265 in 0 : vector<4x64xf32>, vector<20x64xf32>, vector<4x64xf32> -> vector<28x64xf32>
    %270 = vector.extract_strided_slice %267 {offsets = [0, 0], sizes = [24, 64], strides = [1, 1]} : vector<28x64xf32> to vector<24x64xf32>
    %271 = vector.extract_strided_slice %269 {offsets = [0, 0], sizes = [24, 64], strides = [1, 1]} : vector<28x64xf32> to vector<24x64xf32>
    %272 = tpu.concatenate %270, %271 in 0 : vector<24x64xf32>, vector<24x64xf32> -> vector<48x64xf32>
    %273 = vector.extract_strided_slice %267 {offsets = [1, 0], sizes = [24, 64], strides = [1, 1]} : vector<28x64xf32> to vector<24x64xf32>
    %274 = vector.extract_strided_slice %269 {offsets = [1, 0], sizes = [24, 64], strides = [1, 1]} : vector<28x64xf32> to vector<24x64xf32>
    %275 = tpu.concatenate %273, %274 in 0 : vector<24x64xf32>, vector<24x64xf32> -> vector<48x64xf32>
    %276 = vector.extract_strided_slice %267 {offsets = [2, 0], sizes = [24, 64], strides = [1, 1]} : vector<28x64xf32> to vector<24x64xf32>
    %277 = vector.extract_strided_slice %269 {offsets = [2, 0], sizes = [24, 64], strides = [1, 1]} : vector<28x64xf32> to vector<24x64xf32>
    %278 = tpu.concatenate %276, %277 in 0 : vector<24x64xf32>, vector<24x64xf32> -> vector<48x64xf32>
    %279 = vector.extract_strided_slice %267 {offsets = [3, 0], sizes = [24, 64], strides = [1, 1]} : vector<28x64xf32> to vector<24x64xf32>
    %280 = vector.extract_strided_slice %269 {offsets = [3, 0], sizes = [24, 64], strides = [1, 1]} : vector<28x64xf32> to vector<24x64xf32>
    %281 = tpu.concatenate %279, %280 in 0 : vector<24x64xf32>, vector<24x64xf32> -> vector<48x64xf32>
    %282 = vector.extract_strided_slice %267 {offsets = [4, 0], sizes = [24, 64], strides = [1, 1]} : vector<28x64xf32> to vector<24x64xf32>
    %283 = vector.extract_strided_slice %269 {offsets = [4, 0], sizes = [24, 64], strides = [1, 1]} : vector<28x64xf32> to vector<24x64xf32>
    %284 = tpu.concatenate %282, %283 in 0 : vector<24x64xf32>, vector<24x64xf32> -> vector<48x64xf32>
    %285 = tpu.concatenate %272, %275, %278, %281, %284 in 1 : vector<48x64xf32>, vector<48x64xf32>, vector<48x64xf32>, vector<48x64xf32>, vector<48x64xf32> -> vector<48x320xf32>
    %c0_82 = arith.constant 0 : index
    %c0_83 = arith.constant 0 : index
    %286 = vector.load %arg20[%c0_82, %c0_83] : memref<320x64xf32, #tpu.memory_space<vmem>>, vector<320x64xf32>
    %cst_84 = arith.constant dense<0.000000e+00> : vector<48x64xf32>
    %287 = tpu.matmul %285, %286, %cst_84 {dimension_numbers = #tpu.dot_dimension_numbers<[1], [0], [0], [1], [0, 0, 1, 1], [], []>} : vector<48x320xf32>, vector<320x64xf32>, vector<48x64xf32> -> vector<48x64xf32>
    %c0_85 = arith.constant 0 : index
    %c0_86 = arith.constant 0 : index
    %288 = vector.load %arg21[%c0_85, %c0_86] : memref<1x64xf32, #tpu.memory_space<vmem>>, vector<1x64xf32>
    %289 = vector.broadcast %288 : vector<1x64xf32> to vector<48x64xf32>
    %290 = arith.addf %287, %289 : vector<48x64xf32>
    %cst_87 = arith.constant 0.000000e+00 : f32
    %291 = vector.broadcast %cst_87 : f32 to vector<48x64xf32>
    %292 = arith.cmpf oge, %290, %291 : vector<48x64xf32>
    %cst_88 = arith.constant 0.00999999977 : f32
    %293 = vector.broadcast %cst_88 : f32 to vector<48x64xf32>
    %294 = arith.mulf %293, %290 : vector<48x64xf32>
    %295 = arith.select %292, %290, %294 : vector<48x64xi1>, vector<48x64xf32>
    %296 = tpu.iota {dimensions = array<i32: 0>} : vector<96x48xi32>
    %297 = tpu.iota {dimensions = array<i32: 1>} : vector<96x48xi32>
    %c2_i32_89 = arith.constant 2 : i32
    %298 = vector.broadcast %c2_i32_89 : i32 to vector<96x48xi32>
    %299 = arith.muli %298, %297 : vector<96x48xi32>
    %c0_i32_90 = arith.constant 0 : i32
    %300 = vector.broadcast %c0_i32_90 : i32 to vector<96x48xi32>
    %301 = arith.addi %299, %300 : vector<96x48xi32>
    %302 = arith.cmpi eq, %296, %301 : vector<96x48xi32>
    %303 = arith.extui %302 : vector<96x48xi1> to vector<96x48xi32>
    %304 = arith.sitofp %303 : vector<96x48xi32> to vector<96x48xf32>
    %305 = tpu.iota {dimensions = array<i32: 0>} : vector<96x48xi32>
    %306 = tpu.iota {dimensions = array<i32: 1>} : vector<96x48xi32>
    %c2_i32_91 = arith.constant 2 : i32
    %307 = vector.broadcast %c2_i32_91 : i32 to vector<96x48xi32>
    %308 = arith.muli %307, %306 : vector<96x48xi32>
    %c1_i32_92 = arith.constant 1 : i32
    %309 = vector.broadcast %c1_i32_92 : i32 to vector<96x48xi32>
    %310 = arith.addi %308, %309 : vector<96x48xi32>
    %311 = arith.cmpi eq, %305, %310 : vector<96x48xi32>
    %312 = arith.extui %311 : vector<96x48xi1> to vector<96x48xi32>
    %313 = arith.sitofp %312 : vector<96x48xi32> to vector<96x48xf32>
    %314 = arith.mulf %295, %45 : vector<48x64xf32>
    %cst_93 = arith.constant dense<0.000000e+00> : vector<96x64xf32>
    %315 = tpu.matmul %304, %314, %cst_93 {dimension_numbers = #tpu.dot_dimension_numbers<[1], [0], [0], [1], [0, 0, 1, 1], [], []>} : vector<96x48xf32>, vector<48x64xf32>, vector<96x64xf32> -> vector<96x64xf32>
    %cst_94 = arith.constant 1.000000e+00 : f32
    %316 = vector.broadcast %cst_94 : f32 to vector<48x64xf32>
    %317 = arith.subf %316, %45 : vector<48x64xf32>
    %318 = arith.mulf %295, %317 : vector<48x64xf32>
    %cst_95 = arith.constant dense<0.000000e+00> : vector<96x64xf32>
    %319 = tpu.matmul %313, %318, %cst_95 {dimension_numbers = #tpu.dot_dimension_numbers<[1], [0], [0], [1], [0, 0, 1, 1], [], []>} : vector<96x48xf32>, vector<48x64xf32>, vector<96x64xf32> -> vector<96x64xf32>
    %320 = arith.addf %315, %319 : vector<96x64xf32>
    %cst_96 = arith.constant 0.000000e+00 : f32
    %321 = vector.broadcast %cst_96 : f32 to vector<2x64xf32>
    %322 = vector.extract_strided_slice %320 {offsets = [0, 0], sizes = [48, 64], strides = [1, 1]} : vector<96x64xf32> to vector<48x64xf32>
    %323 = tpu.concatenate %321, %322, %321 in 0 : vector<2x64xf32>, vector<48x64xf32>, vector<2x64xf32> -> vector<52x64xf32>
    %324 = vector.extract_strided_slice %320 {offsets = [48, 0], sizes = [48, 64], strides = [1, 1]} : vector<96x64xf32> to vector<48x64xf32>
    %325 = tpu.concatenate %321, %324, %321 in 0 : vector<2x64xf32>, vector<48x64xf32>, vector<2x64xf32> -> vector<52x64xf32>
    %c0_97 = arith.constant 0 : index
    %c0_98 = arith.constant 0 : index
    %326 = vector.load %arg23[%c0_97, %c0_98] : memref<1x1xf32, #tpu.memory_space<vmem>>, vector<1x1xf32>
    %327 = vector.extract_strided_slice %323 {offsets = [0, 0], sizes = [50, 64], strides = [1, 1]} : vector<52x64xf32> to vector<50x64xf32>
    %328 = vector.extract_strided_slice %325 {offsets = [0, 0], sizes = [50, 64], strides = [1, 1]} : vector<52x64xf32> to vector<50x64xf32>
    %329 = tpu.concatenate %327, %328 in 0 : vector<50x64xf32>, vector<50x64xf32> -> vector<100x64xf32>
    %c0_99 = arith.constant 0 : index
    %c0_100 = arith.constant 0 : index
    %c0_101 = arith.constant 0 : index
    %330 = vector.load %arg22[%c0_99, %c0_100, %c0_101] : memref<3x64x2xf32, #tpu.memory_space<vmem>>, vector<1x64x2xf32>
    %331 = vector.shape_cast %330 : vector<1x64x2xf32> to vector<64x2xf32>
    %cst_102 = arith.constant dense<0.000000e+00> : vector<100x2xf32>
    %332 = tpu.matmul %329, %331, %cst_102 {dimension_numbers = #tpu.dot_dimension_numbers<[1], [0], [0], [1], [0, 0, 1, 1], [], []>} : vector<100x64xf32>, vector<64x2xf32>, vector<100x2xf32> -> vector<100x2xf32>
    %333 = vector.broadcast %326 : vector<1x1xf32> to vector<100x2xf32>
    %334 = arith.addf %333, %332 : vector<100x2xf32>
    %335 = vector.extract_strided_slice %323 {offsets = [1, 0], sizes = [50, 64], strides = [1, 1]} : vector<52x64xf32> to vector<50x64xf32>
    %336 = vector.extract_strided_slice %325 {offsets = [1, 0], sizes = [50, 64], strides = [1, 1]} : vector<52x64xf32> to vector<50x64xf32>
    %337 = tpu.concatenate %335, %336 in 0 : vector<50x64xf32>, vector<50x64xf32> -> vector<100x64xf32>
    %c1_103 = arith.constant 1 : index
    %c0_104 = arith.constant 0 : index
    %c0_105 = arith.constant 0 : index
    %338 = vector.load %arg22[%c1_103, %c0_104, %c0_105] : memref<3x64x2xf32, #tpu.memory_space<vmem>>, vector<1x64x2xf32>
    %339 = vector.shape_cast %338 : vector<1x64x2xf32> to vector<64x2xf32>
    %cst_106 = arith.constant dense<0.000000e+00> : vector<100x2xf32>
    %340 = tpu.matmul %337, %339, %cst_106 {dimension_numbers = #tpu.dot_dimension_numbers<[1], [0], [0], [1], [0, 0, 1, 1], [], []>} : vector<100x64xf32>, vector<64x2xf32>, vector<100x2xf32> -> vector<100x2xf32>
    %341 = arith.addf %334, %340 : vector<100x2xf32>
    %342 = vector.extract_strided_slice %323 {offsets = [2, 0], sizes = [50, 64], strides = [1, 1]} : vector<52x64xf32> to vector<50x64xf32>
    %343 = vector.extract_strided_slice %325 {offsets = [2, 0], sizes = [50, 64], strides = [1, 1]} : vector<52x64xf32> to vector<50x64xf32>
    %344 = tpu.concatenate %342, %343 in 0 : vector<50x64xf32>, vector<50x64xf32> -> vector<100x64xf32>
    %c2 = arith.constant 2 : index
    %c0_107 = arith.constant 0 : index
    %c0_108 = arith.constant 0 : index
    %345 = vector.load %arg22[%c2, %c0_107, %c0_108] : memref<3x64x2xf32, #tpu.memory_space<vmem>>, vector<1x64x2xf32>
    %346 = vector.shape_cast %345 : vector<1x64x2xf32> to vector<64x2xf32>
    %cst_109 = arith.constant dense<0.000000e+00> : vector<100x2xf32>
    %347 = tpu.matmul %344, %346, %cst_109 {dimension_numbers = #tpu.dot_dimension_numbers<[1], [0], [0], [1], [0, 0, 1, 1], [], []>} : vector<100x64xf32>, vector<64x2xf32>, vector<100x2xf32> -> vector<100x2xf32>
    %348 = arith.addf %341, %347 : vector<100x2xf32>
    %c0_110 = arith.constant 0 : index
    %c0_111 = arith.constant 0 : index
    %349 = vector.load %arg25[%c0_110, %c0_111] : memref<100x2xf32, #tpu.memory_space<vmem>>, vector<100x2xf32>
    tpu.vector_store %arg25[%c0_110, %c0_111], %348 {strides = array<i32>} : memref<100x2xf32, #tpu.memory_space<vmem>>, vector<100x2xf32>,
    return
  }
}

</mosaic_0001>

<llo_original>
// kernel: vae_forward.1
$region0: #{vae_forward.1}
  #allocation0 [shape = 'u32[]', space=smem, size = 0x4, offset = 0x4, fixed_abs, tag = 'smem constant byte address 0x4 - core index']
  #allocation1 [shape = 'u32[72,128]{1,0:T(1,128)}', space=vmem, size = 0x9000, scoped, tag = 'internal scratch']
  #allocation2 [shape = 'f32[1,1]{1,0:T(1,128)S(1)}', space=vmem, size = 0x200, scoped, tag = 'scoped memory for vae_forward.1']
  %s0 = inlined_call_operand.vmem [shape: f32[2,48,5], index: 0, kind: input, shape index: {}]
  %s1 = inlined_call_operand.vmem [shape: f32[48,5], index: 1, kind: input, shape index: {}]
  %s2 = inlined_call_operand.vmem [shape: f32[48,5], index: 2, kind: input, shape index: {}]
  %s3 = inlined_call_operand.vmem [shape: f32[5,64], index: 3, kind: input, shape index: {}]
  %s4 = inlined_call_operand.vmem [shape: f32[1,64], index: 4, kind: input, shape index: {}]
  %s5 = inlined_call_operand.vmem [shape: f32[1,64], index: 5, kind: input, shape index: {}]
  %s6 = inlined_call_operand.vmem [shape: f32[1,64], index: 6, kind: input, shape index: {}]
  %s7 = inlined_call_operand.vmem [shape: f32[320,64], index: 7, kind: input, shape index: {}]
  %s8 = inlined_call_operand.vmem [shape: f32[1,64], index: 8, kind: input, shape index: {}]
  %s9 = inlined_call_operand.vmem [shape: f32[1,64], index: 9, kind: input, shape index: {}]
  %s10 = inlined_call_operand.vmem [shape: f32[1,64], index: 10, kind: input, shape index: {}]
  %s11 = inlined_call_operand.vmem [shape: f32[192,64], index: 11, kind: input, shape index: {}]
  %s12 = inlined_call_operand.vmem [shape: f32[1,64], index: 12, kind: input, shape index: {}]
  %s13 = inlined_call_operand.vmem [shape: f32[512,64], index: 13, kind: input, shape index: {}]
  %s14 = inlined_call_operand.vmem [shape: f32[1,64], index: 14, kind: input, shape index: {}]
  %s15 = inlined_call_operand.vmem [shape: f32[2,32], index: 15, kind: input, shape index: {}]
  %s16 = inlined_call_operand.vmem [shape: f32[32,512], index: 16, kind: input, shape index: {}]
  %s17 = inlined_call_operand.vmem [shape: f32[1,512], index: 17, kind: input, shape index: {}]
  %s18 = inlined_call_operand.vmem [shape: f32[192,64], index: 18, kind: input, shape index: {}]
  %s19 = inlined_call_operand.vmem [shape: f32[1,64], index: 19, kind: input, shape index: {}]
  %s20 = inlined_call_operand.vmem [shape: f32[320,64], index: 20, kind: input, shape index: {}]
  %s21 = inlined_call_operand.vmem [shape: f32[1,64], index: 21, kind: input, shape index: {}]
  %s22 = inlined_call_operand.vmem [shape: f32[3,64,2], index: 22, kind: input, shape index: {}]
  %s23 = inlined_call_operand.<no memory space> [shape: f32[1,1], index: 23, kind: input, shape index: {}]
  %s24 = inlined_call_operand.vmem [shape: f32[2,64], index: 24, kind: output, shape index: {0}]
  %s25 = inlined_call_operand.vmem [shape: f32[100,2], index: 25, kind: output, shape index: {1}]
  %26 = xla_tuple %s24, %s25
  %s27 = sld [smem:[#allocation0]]
  $region114: #{vae_forward.1} parent=0
    _
  %s29 = ssub.s32 1, %s27
  %s30 = scalar_select 0, %s29, %s27
  %v31 = vstv %s23
  %32 = vst [vmem:[#allocation2] sm:$0x1] %v31
  // Predicated region
  $region2: #{vae_forward.1} parent=0 // pred_check
    _
  $region3: #{vae_forward.1} parent=0 // pred_check_branch
    %34 = sbr.rel (0) target = $region5
  $region4: #{vae_forward.1} parent=0 // pred_region
    _
  $region5: #{vae_forward.1} parent=0 // pred_fallthru
    _
  // Predicated region
  $region6: #{vae_forward.1} parent=0 // pred_check
    _
  $region7: #{vae_forward.1} parent=0 // pred_check_branch
    %36 = sbr.rel (0) target = $region9
  $region8: #{vae_forward.1} parent=0 // pred_region
    _
  $region9: #{vae_forward.1} parent=0 // pred_fallthru
    _
  // Predicated region
  $region10: #{vae_forward.1} parent=0 // pred_check
    _
  $region11: #{vae_forward.1} parent=0 // pred_check_branch
    %38 = sbr.rel (0) target = $region13
  $region12: #{vae_forward.1} parent=0 // pred_region
    _
  $region13: #{vae_forward.1} parent=0 // pred_fallthru
    _
  // Predicated region
  $region14: #{vae_forward.1} parent=0 // pred_check
    _
  $region15: #{vae_forward.1} parent=0 // pred_check_branch
    %40 = sbr.rel (0) target = $region17
  $region16: #{vae_forward.1} parent=0 // pred_region
    _
  $region17: #{vae_forward.1} parent=0 // pred_fallthru
    _
  // Predicated region
  $region18: #{vae_forward.1} parent=0 // pred_check
    _
  $region19: #{vae_forward.1} parent=0 // pred_check_branch
    %42 = sbr.rel (0) target = $region21
  $region20: #{vae_forward.1} parent=0 // pred_region
    _
  $region21: #{vae_forward.1} parent=0 // pred_fallthru
    _
  // Predicated region
  $region22: #{vae_forward.1} parent=0 // pred_check
    _
  $region23: #{vae_forward.1} parent=0 // pred_check_branch
    %44 = sbr.rel (0) target = $region25
  $region24: #{vae_forward.1} parent=0 // pred_region
    _
  $region25: #{vae_forward.1} parent=0 // pred_fallthru
    _
  // Predicated region
  $region26: #{vae_forward.1} parent=0 // pred_check
    _
  $region27: #{vae_forward.1} parent=0 // pred_check_branch
    %46 = sbr.rel (0) target = $region29
  $region28: #{vae_forward.1} parent=0 // pred_region
    _
  $region29: #{vae_forward.1} parent=0 // pred_fallthru
    _
  // Predicated region
  $region30: #{vae_forward.1} parent=0 // pred_check
    _
  $region31: #{vae_forward.1} parent=0 // pred_check_branch
    %48 = sbr.rel (0) target = $region33
  $region32: #{vae_forward.1} parent=0 // pred_region
    _
  $region33: #{vae_forward.1} parent=0 // pred_fallthru
    _
  // Predicated region
  $region34: #{vae_forward.1} parent=0 // pred_check
    _
  $region35: #{vae_forward.1} parent=0 // pred_check_branch
    %50 = sbr.rel (0) target = $region37
  $region36: #{vae_forward.1} parent=0 // pred_region
    _
  $region37: #{vae_forward.1} parent=0 // pred_fallthru
    _
  // Predicated region
  $region38: #{vae_forward.1} parent=0 // pred_check
    _
  $region39: #{vae_forward.1} parent=0 // pred_check_branch
    %52 = sbr.rel (0) target = $region41
  $region40: #{vae_forward.1} parent=0 // pred_region
    _
  $region41: #{vae_forward.1} parent=0 // pred_fallthru
    _
  // Predicated region
  $region42: #{vae_forward.1} parent=0 // pred_check
    _
  $region43: #{vae_forward.1} parent=0 // pred_check_branch
    %54 = sbr.rel (0) target = $region45
  $region44: #{vae_forward.1} parent=0 // pred_region
    _
  $region45: #{vae_forward.1} parent=0 // pred_fallthru
    _
  // Predicated region
  $region46: #{vae_forward.1} parent=0 // pred_check
    _
  $region47: #{vae_forward.1} parent=0 // pred_check_branch
    %56 = sbr.rel (0) target = $region49
  $region48: #{vae_forward.1} parent=0 // pred_region
    _
  $region49: #{vae_forward.1} parent=0 // pred_fallthru
    _
  // Predicated region
  $region50: #{vae_forward.1} parent=0 // pred_check
    _
  $region51: #{vae_forward.1} parent=0 // pred_check_branch
    %58 = sbr.rel (0) target = $region53
  $region52: #{vae_forward.1} parent=0 // pred_region
    _
  $region53: #{vae_forward.1} parent=0 // pred_fallthru
    _
  // Predicated region
  $region54: #{vae_forward.1} parent=0 // pred_check
    _
  $region55: #{vae_forward.1} parent=0 // pred_check_branch
    %60 = sbr.rel (0) target = $region57
  $region56: #{vae_forward.1} parent=0 // pred_region
    _
  $region57: #{vae_forward.1} parent=0 // pred_fallthru
    _
  // Predicated region
  $region58: #{vae_forward.1} parent=0 // pred_check
    _
  $region59: #{vae_forward.1} parent=0 // pred_check_branch
    %62 = sbr.rel (0) target = $region61
  $region60: #{vae_forward.1} parent=0 // pred_region
    _
  $region61: #{vae_forward.1} parent=0 // pred_fallthru
    _
  // Predicated region
  $region62: #{vae_forward.1} parent=0 // pred_check
    _
  $region63: #{vae_forward.1} parent=0 // pred_check_branch
    %64 = sbr.rel (0) target = $region65
  $region64: #{vae_forward.1} parent=0 // pred_region
    _
  $region65: #{vae_forward.1} parent=0 // pred_fallthru
    _
  // Predicated region
  $region66: #{vae_forward.1} parent=0 // pred_check
    _
  $region67: #{vae_forward.1} parent=0 // pred_check_branch
    %66 = sbr.rel (0) target = $region69
  $region68: #{vae_forward.1} parent=0 // pred_region
    _
  $region69: #{vae_forward.1} parent=0 // pred_fallthru
    _
  // Predicated region
  $region70: #{vae_forward.1} parent=0 // pred_check
    _
  $region71: #{vae_forward.1} parent=0 // pred_check_branch
    %68 = sbr.rel (0) target = $region73
  $region72: #{vae_forward.1} parent=0 // pred_region
    _
  $region73: #{vae_forward.1} parent=0 // pred_fallthru
    _
  // Predicated region
  $region74: #{vae_forward.1} parent=0 // pred_check
    _
  $region75: #{vae_forward.1} parent=0 // pred_check_branch
    %70 = sbr.rel (0) target = $region77
  $region76: #{vae_forward.1} parent=0 // pred_region
    _
  $region77: #{vae_forward.1} parent=0 // pred_fallthru
    _
  // Predicated region
  $region78: #{vae_forward.1} parent=0 // pred_check
    _
  $region79: #{vae_forward.1} parent=0 // pred_check_branch
    %72 = sbr.rel (0) target = $region81
  $region80: #{vae_forward.1} parent=0 // pred_region
    _
  $region81: #{vae_forward.1} parent=0 // pred_fallthru
    _
  // Predicated region
  $region82: #{vae_forward.1} parent=0 // pred_check
    _
  $region83: #{vae_forward.1} parent=0 // pred_check_branch
    %74 = sbr.rel (0) target = $region85
  $region84: #{vae_forward.1} parent=0 // pred_region
    _
  $region85: #{vae_forward.1} parent=0 // pred_fallthru
    _
  // Predicated region
  $region86: #{vae_forward.1} parent=0 // pred_check
    _
  $region87: #{vae_forward.1} parent=0 // pred_check_branch
    %76 = sbr.rel (0) target = $region89
  $region88: #{vae_forward.1} parent=0 // pred_region
    _
  $region89: #{vae_forward.1} parent=0 // pred_fallthru
    _
  // Predicated region
  $region90: #{vae_forward.1} parent=0 // pred_check
    _
  $region91: #{vae_forward.1} parent=0 // pred_check_branch
    %78 = sbr.rel (0) target = $region93
  $region92: #{vae_forward.1} parent=0 // pred_region
    _
  $region93: #{vae_forward.1} parent=0 // pred_fallthru
    _
  // Predicated region
  $region94: #{vae_forward.1} parent=0 // pred_check
    _
  $region95: #{vae_forward.1} parent=0 // pred_check_branch
    %80 = sbr.rel (0) target = $region97
  $region96: #{vae_forward.1} parent=0 // pred_region
    _
  $region97: #{vae_forward.1} parent=0 // pred_fallthru
    _
  %v81 = vld [vmem:[%s0] sm:$0xff]
  %v82 = vld [vmem:[%s0 + $0x8] sm:$0xff]
  %v83 = vld [vmem:[%s0 + $0x10] sm:$0xff]
  %v84 = vld [vmem:[%s0 + $0x18] sm:$0xff]
  %v85 = vld [vmem:[%s0 + $0x20] sm:$0xff]
  %v86 = vld [vmem:[%s0 + $0x28] sm:$0xff]
  %s87 = scalar_lea.vmem %s0, 48
  %v88 = vld [vmem:[%s87] sm:$0xff]
  %v89 = vld [vmem:[%s87 + $0x8] sm:$0xff]
  %v90 = vld [vmem:[%s87 + $0x10] sm:$0xff]
  %v91 = vld [vmem:[%s87 + $0x18] sm:$0xff]
  %v92 = vld [vmem:[%s87 + $0x20] sm:$0xff]
  %v93 = vld [vmem:[%s87 + $0x28] sm:$0xff]
  %v94 = vadd.f32 %v81, 0.0
  %v95 = vadd.f32 %v82, 0.0
  %v96 = vadd.f32 %v83, 0.0
  %v97 = vadd.f32 %v84, 0.0
  %v98 = vadd.f32 %v85, 0.0
  %v99 = vadd.f32 %v86, 0.0
  %v100 = vadd.f32 %v94, %v88
  %v101 = vadd.f32 %v95, %v89
  %v102 = vadd.f32 %v96, %v90
  %v103 = vadd.f32 %v97, %v91
  %v104 = vadd.f32 %v98, %v92
  %v105 = vadd.f32 %v99, %v93
  %v106 = vrcp.pop 2.0
  %v107 = vmul.f32 2.0, %v106
  %v108 = vsub.f32 1.0, %v107
  %v109 = vmul.f32 %v106, %v108
  %v110 = vadd.f32 %v106, %v109
  %vm111 = vweird.f32 %v106
  %v112 = vsel %vm111, %v106, %v110
  %v113 = vmul.f32 %v100, %v112
  %v114 = vmul.f32 %v101, %v112
  %v115 = vmul.f32 %v102, %v112
  %v116 = vmul.f32 %v103, %v112
  %v117 = vmul.f32 %v104, %v112
  %v118 = vmul.f32 %v105, %v112
  %v119 = vsub.f32 %v81, %v113
  %v120 = vsub.f32 %v82, %v114
  %v121 = vsub.f32 %v83, %v115
  %v122 = vsub.f32 %v84, %v116
  %v123 = vsub.f32 %v85, %v117
  %v124 = vsub.f32 %v86, %v118
  %v125 = vmul.f32 %v119, %v119
  %v126 = vmul.f32 %v120, %v120
  %v127 = vmul.f32 %v121, %v121
  %v128 = vmul.f32 %v122, %v122
  %v129 = vmul.f32 %v123, %v123
  %v130 = vmul.f32 %v124, %v124
  %v131 = vadd.f32 %v125, 0.0
  %v132 = vadd.f32 %v126, 0.0
  %v133 = vadd.f32 %v127, 0.0
  %v134 = vadd.f32 %v128, 0.0
  %v135 = vadd.f32 %v129, 0.0
  %v136 = vadd.f32 %v130, 0.0
  %v137 = vsub.f32 %v88, %v113
  %v138 = vsub.f32 %v89, %v114
  %v139 = vsub.f32 %v90, %v115
  %v140 = vsub.f32 %v91, %v116
  %v141 = vsub.f32 %v92, %v117
  %v142 = vsub.f32 %v93, %v118
  %v143 = vmul.f32 %v137, %v137
  %v144 = vmul.f32 %v138, %v138
  %v145 = vmul.f32 %v139, %v139
  %v146 = vmul.f32 %v140, %v140
  %v147 = vmul.f32 %v141, %v141
  %v148 = vmul.f32 %v142, %v142
  %v149 = vadd.f32 %v131, %v143
  %v150 = vadd.f32 %v132, %v144
  %v151 = vadd.f32 %v133, %v145
  %v152 = vadd.f32 %v134, %v146
  %v153 = vadd.f32 %v135, %v147
  %v154 = vadd.f32 %v136, %v148
  %v155 = vmul.f32 %v149, %v112
  %v156 = vmul.f32 %v150, %v112
  %v157 = vmul.f32 %v151, %v112
  %v158 = vmul.f32 %v152, %v112
  %v159 = vmul.f32 %v153, %v112
  %v160 = vmul.f32 %v154, %v112
  %v161 = vadd.f32 %v155, 1e-05
  %v162 = vadd.f32 %v156, 1e-05
  %v163 = vadd.f32 %v157, 1e-05
  %v164 = vadd.f32 %v158, 1e-05
  %v165 = vadd.f32 %v159, 1e-05
  %v166 = vadd.f32 %v160, 1e-05
  %v167 = vrsqrt.pop %v161
  %v168 = vmul.f32 %v167, %v161
  %v169 = vmul.f32 %v168, %v167
  %v170 = vmul.f32 0.5, %v169
  %v171 = vsub.f32 1.5, %v170
  %v172 = vmul.f32 %v167, %v171
  %vm173 = vweird.f32 %v161
  %vm174 = vweird.f32 %v167
  %vm175 = vmor %vm173, %vm174
  %v176 = vsel %vm175, %v167, %v172
  %v177 = vrsqrt.pop %v162
  %v178 = vmul.f32 %v177, %v162
  %v179 = vmul.f32 %v178, %v177
  %v180 = vmul.f32 0.5, %v179
  %v181 = vsub.f32 1.5, %v180
  %v182 = vmul.f32 %v177, %v181
  %vm183 = vweird.f32 %v162
  %vm184 = vweird.f32 %v177
  %vm185 = vmor %vm183, %vm184
  %v186 = vsel %vm185, %v177, %v182
  %v187 = vrsqrt.pop %v163
  %v188 = vmul.f32 %v187, %v163
  %v189 = vmul.f32 %v188, %v187
  %v190 = vmul.f32 0.5, %v189
  %v191 = vsub.f32 1.5, %v190
  %v192 = vmul.f32 %v187, %v191
  %vm193 = vweird.f32 %v163
  %vm194 = vweird.f32 %v187
  %vm195 = vmor %vm193, %vm194
  %v196 = vsel %vm195, %v187, %v192
  %v197 = vrsqrt.pop %v164
  %v198 = vmul.f32 %v197, %v164
  %v199 = vmul.f32 %v198, %v197
  %v200 = vmul.f32 0.5, %v199
  %v201 = vsub.f32 1.5, %v200
  %v202 = vmul.f32 %v197, %v201
  %vm203 = vweird.f32 %v164
  %vm204 = vweird.f32 %v197
  %vm205 = vmor %vm203, %vm204
  %v206 = vsel %vm205, %v197, %v202
  %v207 = vrsqrt.pop %v165
  %v208 = vmul.f32 %v207, %v165
  %v209 = vmul.f32 %v208, %v207
  %v210 = vmul.f32 0.5, %v209
  %v211 = vsub.f32 1.5, %v210
  %v212 = vmul.f32 %v207, %v211
  %vm213 = vweird.f32 %v165
  %vm214 = vweird.f32 %v207
  %vm215 = vmor %vm213, %vm214
  %v216 = vsel %vm215, %v207, %v212
  %v217 = vrsqrt.pop %v166
  %v218 = vmul.f32 %v217, %v166
  %v219 = vmul.f32 %v218, %v217
  %v220 = vmul.f32 0.5, %v219
  %v221 = vsub.f32 1.5, %v220
  %v222 = vmul.f32 %v217, %v221
  %vm223 = vweird.f32 %v166
  %vm224 = vweird.f32 %v217
  %vm225 = vmor %vm223, %vm224
  %v226 = vsel %vm225, %v217, %v222
  %v227 = vld [vmem:[%s1] sm:$0xff]
  %v228 = vld [vmem:[%s1 + $0x8] sm:$0xff]
  %v229 = vld [vmem:[%s1 + $0x10] sm:$0xff]
  %v230 = vld [vmem:[%s1 + $0x18] sm:$0xff]
  %v231 = vld [vmem:[%s1 + $0x20] sm:$0xff]
  %v232 = vld [vmem:[%s1 + $0x28] sm:$0xff]
  %v233 = vld [vmem:[%s2] sm:$0xff]
  %v234 = vld [vmem:[%s2 + $0x8] sm:$0xff]
  %v235 = vld [vmem:[%s2 + $0x10] sm:$0xff]
  %v236 = vld [vmem:[%s2 + $0x18] sm:$0xff]
  %v237 = vld [vmem:[%s2 + $0x20] sm:$0xff]
  %v238 = vld [vmem:[%s2 + $0x28] sm:$0xff]
  %v239 = vmul.f32 %v119, %v176
  %v240 = vmul.f32 %v120, %v186
  %v241 = vmul.f32 %v121, %v196
  %v242 = vmul.f32 %v122, %v206
  %v243 = vmul.f32 %v123, %v216
  %v244 = vmul.f32 %v124, %v226
  %v245 = vmul.f32 %v239, %v227
  %v246 = vmul.f32 %v240, %v228
  %v247 = vmul.f32 %v241, %v229
  %v248 = vmul.f32 %v242, %v230
  %v249 = vmul.f32 %v243, %v231
  %v250 = vmul.f32 %v244, %v232
  %v251 = vadd.f32 %v245, %v233
  %v252 = vadd.f32 %v246, %v234
  %v253 = vadd.f32 %v247, %v235
  %v254 = vadd.f32 %v248, %v236
  %v255 = vadd.f32 %v249, %v237
  %v256 = vadd.f32 %v250, %v238
  %v257 = vmul.f32 %v137, %v176
  %v258 = vmul.f32 %v138, %v186
  %v259 = vmul.f32 %v139, %v196
  %v260 = vmul.f32 %v140, %v206
  %v261 = vmul.f32 %v141, %v216
  %v262 = vmul.f32 %v142, %v226
  %v263 = vmul.f32 %v257, %v227
  %v264 = vmul.f32 %v258, %v228
  %v265 = vmul.f32 %v259, %v229
  %v266 = vmul.f32 %v260, %v230
  %v267 = vmul.f32 %v261, %v231
  %v268 = vmul.f32 %v262, %v232
  %v269 = vadd.f32 %v263, %v233
  %v270 = vadd.f32 %v264, %v234
  %v271 = vadd.f32 %v265, %v235
  %v272 = vadd.f32 %v266, %v236
  %v273 = vadd.f32 %v267, %v237
  %v274 = vadd.f32 %v268, %v238
  %v275 = vld [vmem:[%s3] sm:$0x1f]
  %v276 = vld [vmem:[%s4] sm:$0x1]
  %v278 = vperm.slane %v276, 0
  %vm280 = vcmask 39936
  %v282 = vsel %vm280, %v251, 0
  %v285 = vsel %vm280, %v252, 0
  %v288 = vsel %vm280, %v253, 0
  %v291 = vsel %vm280, %v254, 0
  %v294 = vsel %vm280, %v255, 0
  %v297 = vsel %vm280, %v256, 0
  %v300 = vsel %vm280, %v269, 0
  %v303 = vsel %vm280, %v270, 0
  %v306 = vsel %vm280, %v271, 0
  %v309 = vsel %vm280, %v272, 0
  %v312 = vsel %vm280, %v273, 0
  %v315 = vsel %vm280, %v274, 0
  %vm317 = vcmask 1044480
  %v319 = vsel %vm317, %v275, 0
  %321 = vmatpush.msra.mxu0 0.0
  %322 = vmatpush.msra.mxu0 0.0
  %323 = vmatpush.msra.mxu0 0.0
  %324 = vmatpush.msra.mxu0 0.0
  %325 = vmatpush.msra.mxu0 0.0
  %326 = vmatpush.msra.mxu0 0.0
  %327 = vmatpush.msra.mxu0 0.0
  %328 = vmatpush.msra.mxu0 0.0
  %329 = vmatpush.msra.mxu0 0.0
  %330 = vmatpush.msra.mxu0 0.0
  %331 = vmatpush.msra.mxu0 0.0
  %332 = vmatpush.msra.mxu0 0.0
  %333 = vmatpush.msra.mxu0 0.0
  %334 = vmatpush.msra.mxu0 0.0
  %335 = vmatpush.msra.mxu0 0.0
  %336 = vmatpush.msra.mxu0 %v319
  %337 = vmatmul.f32.gmra.mxu0 %v282
  %v338 = vpop.f32.mrf.mxu0
  %v339 = vadd.f32 %v278, %v338
  %340 = vmatmul.f32.gmra.mxu0 %v285
  %v341 = vpop.f32.mrf.mxu0
  %v342 = vadd.f32 %v278, %v341
  %343 = vmatmul.f32.gmra.mxu0 %v288
  %v344 = vpop.f32.mrf.mxu0
  %v345 = vadd.f32 %v278, %v344
  %346 = vmatmul.f32.gmra.mxu0 %v291
  %v347 = vpop.f32.mrf.mxu0
  %v348 = vadd.f32 %v278, %v347
  %349 = vmatmul.f32.gmra.mxu0 %v294
  %v350 = vpop.f32.mrf.mxu0
  %v351 = vadd.f32 %v278, %v350
  %352 = vmatmul.f32.gmra.mxu0 %v297
  %v353 = vpop.f32.mrf.mxu0
  %v354 = vadd.f32 %v278, %v353
  %355 = vmatmul.f32.gmra.mxu0 %v300
  %v356 = vpop.f32.mrf.mxu0
  %v357 = vadd.f32 %v278, %v356
  %358 = vmatmul.f32.gmra.mxu0 %v303
  %v359 = vpop.f32.mrf.mxu0
  %v360 = vadd.f32 %v278, %v359
  %361 = vmatmul.f32.gmra.mxu0 %v306
  %v362 = vpop.f32.mrf.mxu0
  %v363 = vadd.f32 %v278, %v362
  %364 = vmatmul.f32.gmra.mxu0 %v309
  %v365 = vpop.f32.mrf.mxu0
  %v366 = vadd.f32 %v278, %v365
  %367 = vmatmul.f32.gmra.mxu0 %v312
  %v368 = vpop.f32.mrf.mxu0
  %v369 = vadd.f32 %v278, %v368
  %370 = vmatmul.f32.gmra.mxu0 %v315
  %v371 = vpop.f32.mrf.mxu0
  %v372 = vadd.f32 %v278, %v371
  %373 = vdwg.mxu0
  %vm374 = vcmp.ge.f32.partialorder %v339, %v348
  %vm375 = vcmp.ge.f32.partialorder %v342, %v351
  %vm376 = vcmp.ge.f32.partialorder %v345, %v354
  %vm377 = vcmp.ge.f32.partialorder %v357, %v366
  %vm378 = vcmp.ge.f32.partialorder %v360, %v369
  %vm379 = vcmp.ge.f32.partialorder %v363, %v372
  %v380 = vsel %vm374, 1, 0
  %v381 = vsel %vm375, 1, 0
  %v382 = vsel %vm376, 1, 0
  %v383 = vsel %vm377, 1, 0
  %v384 = vsel %vm378, 1, 0
  %v385 = vsel %vm379, 1, 0
  %v386 = vcvt.s32.f32 %v380
  %v387 = vcvt.s32.f32 %v381
  %v388 = vcvt.s32.f32 %v382
  %v389 = vcvt.s32.f32 %v383
  %v390 = vcvt.s32.f32 %v384
  %v391 = vcvt.s32.f32 %v385
  %v392 = vmax.f32 %v339, %v348
  %v393 = vmax.f32 %v342, %v351
  %v394 = vmax.f32 %v345, %v354
  %v395 = vmax.f32 %v357, %v366
  %v396 = vmax.f32 %v360, %v369
  %v397 = vmax.f32 %v363, %v372
  %vm398 = vcmp.ge.f32.partialorder %v392, 0.0
  %vm399 = vcmp.ge.f32.partialorder %v393, 0.0
  %vm400 = vcmp.ge.f32.partialorder %v394, 0.0
  %vm401 = vcmp.ge.f32.partialorder %v395, 0.0
  %vm402 = vcmp.ge.f32.partialorder %v396, 0.0
  %vm403 = vcmp.ge.f32.partialorder %v397, 0.0
  %v404 = vmul.f32 %v392, 0.01
  %v405 = vmul.f32 %v393, 0.01
  %v406 = vmul.f32 %v394, 0.01
  %v407 = vmul.f32 %v395, 0.01
  %v408 = vmul.f32 %v396, 0.01
  %v409 = vmul.f32 %v397, 0.01
  %v410 = vsel %vm398, %v392, %v404
  %v411 = vsel %vm399, %v393, %v405
  %v412 = vsel %vm400, %v394, %v406
  %v413 = vsel %vm401, %v395, %v407
  %v414 = vsel %vm402, %v396, %v408
  %v415 = vsel %vm403, %v397, %v409
  %vm416 = vcmask 523264
  %v417 = vsel %vm416, %v410, 0.0
  %v418 = vsel %vm416, %v411, 0.0
  %v419 = vadd.f32 %v417, %v418
  %v420 = vsel %vm416, %v412, 0.0
  %v421 = vadd.f32 %v419, %v420
  %v422 = vsel %vm416, %v413, 0.0
  %v423 = vadd.f32 %v421, %v422
  %v424 = vsel %vm416, %v414, 0.0
  %v425 = vadd.f32 %v423, %v424
  %v426 = vsel %vm416, %v415, 0.0
  %v427 = vadd.f32 %v425, %v426
  %v428 = vrot.slane %v427, 4
  %v429 = vadd.f32 %v427, %v428
  %v430 = vrot.slane %v429, 2
  %v431 = vadd.f32 %v429, %v430
  %v432 = vrot.slane %v431, 1
  %v433 = vadd.f32 %v431, %v432
  %v434 = vrcp.pop 48.0
  %v435 = vmul.f32 48.0, %v434
  %v436 = vsub.f32 1.0, %v435
  %v437 = vmul.f32 %v434, %v436
  %v438 = vadd.f32 %v434, %v437
  %vm439 = vweird.f32 %v434
  %v440 = vsel %vm439, %v434, %v438
  %v441 = vmul.f32 %v433, %v440
  %v442 = vsub.f32 %v410, %v441
  %v443 = vsub.f32 %v411, %v441
  %v444 = vsub.f32 %v412, %v441
  %v445 = vsub.f32 %v413, %v441
  %v446 = vsub.f32 %v414, %v441
  %v447 = vsub.f32 %v415, %v441
  %v448 = vmul.f32 %v442, %v442
  %v449 = vmul.f32 %v443, %v443
  %v450 = vmul.f32 %v444, %v444
  %v451 = vmul.f32 %v445, %v445
  %v452 = vmul.f32 %v446, %v446
  %v453 = vmul.f32 %v447, %v447
  %v454 = vsel %vm416, %v448, 0.0
  %v455 = vsel %vm416, %v449, 0.0
  %v456 = vadd.f32 %v454, %v455
  %v457 = vsel %vm416, %v450, 0.0
  %v458 = vadd.f32 %v456, %v457
  %v459 = vsel %vm416, %v451, 0.0
  %v460 = vadd.f32 %v458, %v459
  %v461 = vsel %vm416, %v452, 0.0
  %v462 = vadd.f32 %v460, %v461
  %v463 = vsel %vm416, %v453, 0.0
  %v464 = vadd.f32 %v462, %v463
  %v465 = vrot.slane %v464, 4
  %v466 = vadd.f32 %v464, %v465
  %v467 = vrot.slane %v466, 2
  %v468 = vadd.f32 %v466, %v467
  %v469 = vrot.slane %v468, 1
  %v470 = vadd.f32 %v468, %v469
  %v471 = vmul.f32 %v470, %v440
  %v472 = vadd.f32 %v471, 1e-05
  %v473 = vrsqrt.pop %v472
  %v474 = vmul.f32 %v473, %v472
  %v475 = vmul.f32 %v474, %v473
  %v476 = vmul.f32 0.5, %v475
  %v477 = vsub.f32 1.5, %v476
  %v478 = vmul.f32 %v473, %v477
  %vm479 = vweird.f32 %v472
  %vm480 = vweird.f32 %v473
  %vm481 = vmor %vm479, %vm480
  %v482 = vsel %vm481, %v473, %v478
  %v483 = vmul.f32 %v442, %v482
  %v484 = vmul.f32 %v443, %v482
  %v485 = vmul.f32 %v444, %v482
  %v486 = vmul.f32 %v445, %v482
  %v487 = vmul.f32 %v446, %v482
  %v488 = vmul.f32 %v447, %v482
  %v489 = vld [vmem:[%s5] sm:$0x1]
  %v491 = vperm.slane %v489, 0
  %v493 = vmul.f32 %v483, %v491
  %v494 = vmul.f32 %v484, %v491
  %v495 = vmul.f32 %v485, %v491
  %v496 = vmul.f32 %v486, %v491
  %v497 = vmul.f32 %v487, %v491
  %v498 = vmul.f32 %v488, %v491
  %v499 = vld [vmem:[%s6] sm:$0x1]
  %v501 = vperm.slane %v499, 0
  %v503 = vadd.f32 %v493, %v501
  %v504 = vadd.f32 %v494, %v501
  %v505 = vadd.f32 %v495, %v501
  %v506 = vadd.f32 %v496, %v501
  %v507 = vadd.f32 %v497, %v501
  %v508 = vadd.f32 %v498, %v501
  %vm512 = vcmask 1043456
  %v513 = vrot.slane %v506, 4
  %v514 = vrot.slane %v507, 4
  %v515 = vsel %vm512, %v513, %v514
  %v516 = vrot.slane %v508, 4
  %v517 = vsel %vm512, %v514, %v516
  %v521 = vsel %vm512, %v505, %v513
  %vm525 = vcmask 1046528
  %v526 = vrot.slane %v503, 1
  %v527 = vrot.slane %v504, 1
  %v528 = vsel %vm525, %v526, %v527
  %v529 = vrot.slane %v505, 1
  %v530 = vsel %vm525, %v527, %v529
  %vm532 = vcmask 1042432
  %v533 = vrot.slane %v506, 5
  %v534 = vrot.slane %v507, 5
  %v535 = vsel %vm532, %v533, %v534
  %v536 = vrot.slane %v508, 5
  %v537 = vsel %vm532, %v534, %v536
  %v539 = vsel %vm512, %v529, %v533
  %vm540 = vcmask 1045504
  %v541 = vrot.slane %v503, 2
  %v542 = vrot.slane %v504, 2
  %v543 = vsel %vm540, %v541, %v542
  %v544 = vrot.slane %v505, 2
  %v545 = vsel %vm540, %v542, %v544
  %vm549 = vcmask 1041408
  %v550 = vrot.slane %v506, 6
  %v551 = vrot.slane %v507, 6
  %v552 = vsel %vm549, %v550, %v551
  %v553 = vrot.slane %v508, 6
  %v554 = vsel %vm549, %v551, %v553
  %v558 = vsel %vm512, %v544, %v550
  %v559 = vrot.slane %v503, 3
  %v560 = vrot.slane %v504, 3
  %v561 = vsel %vm317, %v559, %v560
  %v562 = vrot.slane %v505, 3
  %v563 = vsel %vm317, %v560, %v562
  %vm565 = vcmask 1040384
  %v566 = vrot.slane %v506, 7
  %v567 = vrot.slane %v507, 7
  %v568 = vsel %vm565, %v566, %v567
  %v569 = vrot.slane %v508, 7
  %v570 = vsel %vm565, %v567, %v569
  %v572 = vsel %vm512, %v562, %v566
  %v573 = vrot.slane %v503, 4
  %v574 = vrot.slane %v504, 4
  %v575 = vsel %vm512, %v573, %v574
  %v576 = vrot.slane %v505, 4
  %v577 = vsel %vm512, %v574, %v576
  %v579 = vsel %vm512, %v576, %v506
  %581 = vrot.lane.b32.xlu0 %v528, 64
  %v582 = vpop.permute.xlu0 %581
  %583 = vrot.lane.b32.xlu0 %v530, 64
  %v584 = vpop.permute.xlu0 %583
  %585 = vrot.lane.b32.xlu0 %v539, 64
  %v586 = vpop.permute.xlu0 %585
  %587 = vrot.lane.b32.xlu0 %v535, 64
  %v588 = vpop.permute.xlu0 %587
  %589 = vrot.lane.b32.xlu0 %v537, 64
  %v590 = vpop.permute.xlu0 %589
  %597 = vrot.lane.b32.xlu0 %v561, 64
  %v598 = vpop.permute.xlu0 %597
  %599 = vrot.lane.b32.xlu0 %v563, 64
  %v600 = vpop.permute.xlu0 %599
  %601 = vrot.lane.b32.xlu0 %v572, 64
  %v602 = vpop.permute.xlu0 %601
  %603 = vrot.lane.b32.xlu0 %v568, 64
  %v604 = vpop.permute.xlu0 %603
  %605 = vrot.lane.b32.xlu0 %v570, 64
  %v606 = vpop.permute.xlu0 %605
  %v612 = vsel %vm416, %v503, %v582
  %v613 = vsel %vm416, %v504, %v584
  %v614 = vsel %vm416, %v521, %v586
  %v615 = vsel %vm416, %v515, %v588
  %v616 = vsel %vm416, %v517, %v590
  %v617 = vsel %vm416, %v543, %v598
  %v618 = vsel %vm416, %v545, %v600
  %v619 = vsel %vm416, %v558, %v602
  %v620 = vsel %vm416, %v552, %v604
  %v621 = vsel %vm416, %v554, %v606
  %v622 = vld [vmem:[%s7] sm:$0xff]
  %v623 = vld [vmem:[%s7 + $0x8] sm:$0xff]
  %v624 = vld [vmem:[%s7 + $0x10] sm:$0xff]
  %v625 = vld [vmem:[%s7 + $0x18] sm:$0xff]
  %v626 = vld [vmem:[%s7 + $0x20] sm:$0xff]
  %v627 = vld [vmem:[%s7 + $0x28] sm:$0xff]
  %v628 = vld [vmem:[%s7 + $0x30] sm:$0xff]
  %v629 = vld [vmem:[%s7 + $0x38] sm:$0xff]
  %v630 = vld [vmem:[%s7 + $0x40] sm:$0xff]
  %v631 = vld [vmem:[%s7 + $0x48] sm:$0xff]
  %v632 = vld [vmem:[%s7 + $0x50] sm:$0xff]
  %v633 = vld [vmem:[%s7 + $0x58] sm:$0xff]
  %v634 = vld [vmem:[%s7 + $0x60] sm:$0xff]
  %v635 = vld [vmem:[%s7 + $0x68] sm:$0xff]
  %v636 = vld [vmem:[%s7 + $0x70] sm:$0xff]
  %v637 = vld [vmem:[%s7 + $0x78] sm:$0xff]
  %v638 = vld [vmem:[%s7 + $0x80] sm:$0xff]
  %v639 = vld [vmem:[%s7 + $0x88] sm:$0xff]
  %v640 = vld [vmem:[%s7 + $0x90] sm:$0xff]
  %v641 = vld [vmem:[%s7 + $0x98] sm:$0xff]
  %v642 = vld [vmem:[%s7 + $0xa0] sm:$0xff]
  %v643 = vld [vmem:[%s7 + $0xa8] sm:$0xff]
  %v644 = vld [vmem:[%s7 + $0xb0] sm:$0xff]
  %v645 = vld [vmem:[%s7 + $0xb8] sm:$0xff]
  %v646 = vld [vmem:[%s7 + $0xc0] sm:$0xff]
  %v647 = vld [vmem:[%s7 + $0xc8] sm:$0xff]
  %v648 = vld [vmem:[%s7 + $0xd0] sm:$0xff]
  %v649 = vld [vmem:[%s7 + $0xd8] sm:$0xff]
  %v650 = vld [vmem:[%s7 + $0xe0] sm:$0xff]
  %v651 = vld [vmem:[%s7 + $0xe8] sm:$0xff]
  %v652 = vld [vmem:[%s7 + $0xf0] sm:$0xff]
  %v653 = vld [vmem:[%s7 + $0xf8] sm:$0xff]
  %v654 = vld [vmem:[%s7 + $0x100] sm:$0xff]
  %v655 = vld [vmem:[%s7 + $0x108] sm:$0xff]
  %v656 = vld [vmem:[%s7 + $0x110] sm:$0xff]
  %v657 = vld [vmem:[%s7 + $0x118] sm:$0xff]
  %v658 = vld [vmem:[%s7 + $0x120] sm:$0xff]
  %v659 = vld [vmem:[%s7 + $0x128] sm:$0xff]
  %v660 = vld [vmem:[%s7 + $0x130] sm:$0xff]
  %v661 = vld [vmem:[%s7 + $0x138] sm:$0xff]
  %v662 = vld [vmem:[%s8] sm:$0x1]
  %v664 = vperm.slane %v662, 0
  %v666 = vsel %vm416, %v575, 0
  %v668 = vsel %vm416, %v577, 0
  %v671 = vsel %vm416, %v579, 0
  %v673 = vsel %vm416, %v507, 0
  %v675 = vsel %vm416, %v508, 0
  %677 = vmatpush.msra.mxu0 %v637
  %678 = vmatpush.msra.mxu0 %v636
  %679 = vmatpush.msra.mxu0 %v635
  %680 = vmatpush.msra.mxu0 %v634
  %681 = vmatpush.msra.mxu0 %v633
  %682 = vmatpush.msra.mxu0 %v632
  %683 = vmatpush.msra.mxu0 %v631
  %684 = vmatpush.msra.mxu0 %v630
  %685 = vmatpush.msra.mxu0 %v629
  %686 = vmatpush.msra.mxu0 %v628
  %687 = vmatpush.msra.mxu0 %v627
  %688 = vmatpush.msra.mxu0 %v626
  %689 = vmatpush.msra.mxu0 %v625
  %690 = vmatpush.msra.mxu0 %v624
  %691 = vmatpush.msra.mxu0 %v623
  %692 = vmatpush.msra.mxu0 %v622
  %693 = vmatmul.f32.gmra.mxu0 %v612
  %v694 = vpop.f32.mrf.mxu0
  %v695 = vadd.f32 %v664, %v694
  %696 = vmatmul.f32.gmra.mxu0 %v613
  %v697 = vpop.f32.mrf.mxu0
  %v698 = vadd.f32 %v664, %v697
  %699 = vmatmul.f32.gmra.mxu0 %v614
  %v700 = vpop.f32.mrf.mxu0
  %v701 = vadd.f32 %v664, %v700
  %702 = vmatmul.f32.gmra.mxu0 %v615
  %v703 = vpop.f32.mrf.mxu0
  %v704 = vadd.f32 %v664, %v703
  %705 = vmatmul.f32.gmra.mxu0 %v616
  %v706 = vpop.f32.mrf.mxu0
  %v707 = vadd.f32 %v664, %v706
  %708 = vdwg.mxu0
  %709 = vmatpush.msra.mxu0 %v653
  %710 = vmatpush.msra.mxu0 %v652
  %711 = vmatpush.msra.mxu0 %v651
  %712 = vmatpush.msra.mxu0 %v650
  %713 = vmatpush.msra.mxu0 %v649
  %714 = vmatpush.msra.mxu0 %v648
  %715 = vmatpush.msra.mxu0 %v647
  %716 = vmatpush.msra.mxu0 %v646
  %717 = vmatpush.msra.mxu0 %v645
  %718 = vmatpush.msra.mxu0 %v644
  %719 = vmatpush.msra.mxu0 %v643
  %720 = vmatpush.msra.mxu0 %v642
  %721 = vmatpush.msra.mxu0 %v641
  %722 = vmatpush.msra.mxu0 %v640
  %723 = vmatpush.msra.mxu0 %v639
  %724 = vmatpush.msra.mxu0 %v638
  %725 = vmatmul.f32.gmra.mxu0 %v617
  %v726 = vpop.f32.mrf.mxu0
  %v727 = vadd.f32 %v695, %v726
  %728 = vmatmul.f32.gmra.mxu0 %v618
  %v729 = vpop.f32.mrf.mxu0
  %v730 = vadd.f32 %v698, %v729
  %731 = vmatmul.f32.gmra.mxu0 %v619
  %v732 = vpop.f32.mrf.mxu0
  %v733 = vadd.f32 %v701, %v732
  %734 = vmatmul.f32.gmra.mxu0 %v620
  %v735 = vpop.f32.mrf.mxu0
  %v736 = vadd.f32 %v704, %v735
  %737 = vmatmul.f32.gmra.mxu0 %v621
  %v738 = vpop.f32.mrf.mxu0
  %v739 = vadd.f32 %v707, %v738
  %740 = vdwg.mxu0
  %741 = vmatpush.msra.mxu0 0.0
  %742 = vmatpush.msra.mxu0 0.0
  %743 = vmatpush.msra.mxu0 0.0
  %744 = vmatpush.msra.mxu0 0.0
  %745 = vmatpush.msra.mxu0 0.0
  %746 = vmatpush.msra.mxu0 0.0
  %747 = vmatpush.msra.mxu0 0.0
  %748 = vmatpush.msra.mxu0 0.0
  %749 = vmatpush.msra.mxu0 %v661
  %750 = vmatpush.msra.mxu0 %v660
  %751 = vmatpush.msra.mxu0 %v659
  %752 = vmatpush.msra.mxu0 %v658
  %753 = vmatpush.msra.mxu0 %v657
  %754 = vmatpush.msra.mxu0 %v656
  %755 = vmatpush.msra.mxu0 %v655
  %756 = vmatpush.msra.mxu0 %v654
  %757 = vmatmul.f32.gmra.mxu0 %v666
  %v758 = vpop.f32.mrf.mxu0
  %v759 = vadd.f32 %v727, %v758
  %760 = vmatmul.f32.gmra.mxu0 %v668
  %v761 = vpop.f32.mrf.mxu0
  %v762 = vadd.f32 %v730, %v761
  %763 = vmatmul.f32.gmra.mxu0 %v671
  %v764 = vpop.f32.mrf.mxu0
  %v765 = vadd.f32 %v733, %v764
  %766 = vmatmul.f32.gmra.mxu0 %v673
  %v767 = vpop.f32.mrf.mxu0
  %v768 = vadd.f32 %v736, %v767
  %769 = vmatmul.f32.gmra.mxu0 %v675
  %v770 = vpop.f32.mrf.mxu0
  %v771 = vadd.f32 %v739, %v770
  %772 = vdwg.mxu0
  %v773 = vlaneseq
  %v774 = vshrl.u32 %v773, 7
  %v775 = vadd.s32 %v774, 8
  %v776 = vadd.s32 %v774, 16
  %v777 = vlaneseq
  %v778 = vand.u32 %v777, 127
  %v779 = vmul.u32 %v774, 2
  %v780 = vmul.u32 %v775, 2
  %v781 = vmul.u32 %v776, 2
  %vm782 = vcmp.eq.s32.totalorder %v778, %v779
  %vm783 = vcmp.eq.s32.totalorder %v778, %v780
  %vm784 = vcmp.eq.s32.totalorder %v778, %v781
  %v785 = vsel %vm782, 1, 0
  %v786 = vsel %vm783, 1, 0
  %v787 = vsel %vm784, 1, 0
  %v788 = vcvt.s32.f32 %v785
  %v789 = vcvt.s32.f32 %v786
  %v790 = vcvt.s32.f32 %v787
  %v791 = vadd.s32 %v779, 1
  %v792 = vadd.s32 %v780, 1
  %v793 = vadd.s32 %v781, 1
  %vm794 = vcmp.eq.s32.totalorder %v778, %v791
  %vm795 = vcmp.eq.s32.totalorder %v778, %v792
  %vm796 = vcmp.eq.s32.totalorder %v778, %v793
  %v797 = vsel %vm794, 1, 0
  %v798 = vsel %vm795, 1, 0
  %v799 = vsel %vm796, 1, 0
  %v800 = vcvt.s32.f32 %v797
  %v801 = vcvt.s32.f32 %v798
  %v802 = vcvt.s32.f32 %v799
  %vm803 = vcmask 326656
  %v805 = vsel %vm803, %v788, 0
  %v808 = vsel %vm803, %v789, 0
  %v811 = vsel %vm803, %v790, 0
  %813 = vmatpush.msra.mxu0 0.0
  %814 = vmatpush.msra.mxu0 0.0
  %815 = vmatpush.msra.mxu0 0.0
  %816 = vmatpush.msra.mxu0 0.0
  %817 = vmatpush.msra.mxu0 0.0
  %818 = vmatpush.msra.mxu0 0.0
  %819 = vmatpush.msra.mxu0 0.0
  %820 = vmatpush.msra.mxu0 0.0
  %821 = vmatpush.msra.mxu0 0.0
  %822 = vmatpush.msra.mxu0 0.0
  %823 = vmatpush.msra.mxu0 0.0
  %824 = vmatpush.msra.mxu0 %v771
  %825 = vmatpush.msra.mxu0 %v768
  %826 = vmatpush.msra.mxu0 %v765
  %827 = vmatpush.msra.mxu0 %v762
  %828 = vmatpush.msra.mxu0 %v759
  %829 = vmatmul.f32.gmra.mxu0 %v805
  %v830 = vpop.f32.mrf.mxu0
  %v831 = vadd.f32 0.0, %v830
  %832 = vmatmul.f32.gmra.mxu0 %v808
  %v833 = vpop.f32.mrf.mxu0
  %v834 = vadd.f32 0.0, %v833
  %835 = vmatmul.f32.gmra.mxu0 %v811
  %v836 = vpop.f32.mrf.mxu0
  %v837 = vadd.f32 0.0, %v836
  %838 = vdwg.mxu0
  %v840 = vsel %vm803, %v800, 0
  %v843 = vsel %vm803, %v801, 0
  %v846 = vsel %vm803, %v802, 0
  %848 = vmatpush.msra.mxu0 0.0
  %849 = vmatpush.msra.mxu0 0.0
  %850 = vmatpush.msra.mxu0 0.0
  %851 = vmatpush.msra.mxu0 0.0
  %852 = vmatpush.msra.mxu0 0.0
  %853 = vmatpush.msra.mxu0 0.0
  %854 = vmatpush.msra.mxu0 0.0
  %855 = vmatpush.msra.mxu0 0.0
  %856 = vmatpush.msra.mxu0 0.0
  %857 = vmatpush.msra.mxu0 0.0
  %858 = vmatpush.msra.mxu0 0.0
  %859 = vmatpush.msra.mxu0 %v771
  %860 = vmatpush.msra.mxu0 %v768
  %861 = vmatpush.msra.mxu0 %v765
  %862 = vmatpush.msra.mxu0 %v762
  %863 = vmatpush.msra.mxu0 %v759
  %864 = vmatmul.f32.gmra.mxu0 %v840
  %v865 = vpop.f32.mrf.mxu0
  %v866 = vadd.f32 0.0, %v865
  %867 = vmatmul.f32.gmra.mxu0 %v843
  %v868 = vpop.f32.mrf.mxu0
  %v869 = vadd.f32 0.0, %v868
  %870 = vmatmul.f32.gmra.mxu0 %v846
  %v871 = vpop.f32.mrf.mxu0
  %v872 = vadd.f32 0.0, %v871
  %873 = vdwg.mxu0
  %vm874 = vcmp.ge.f32.partialorder %v831, %v866
  %vm875 = vcmp.ge.f32.partialorder %v834, %v869
  %vm876 = vcmp.ge.f32.partialorder %v837, %v872
  %v877 = vsel %vm874, 1, 0
  %v878 = vsel %vm875, 1, 0
  %v879 = vsel %vm876, 1, 0
  %v880 = vcvt.s32.f32 %v877
  %v881 = vcvt.s32.f32 %v878
  %v882 = vcvt.s32.f32 %v879
  %v883 = vmax.f32 %v831, %v866
  %v884 = vmax.f32 %v834, %v869
  %v885 = vmax.f32 %v837, %v872
  %vm886 = vcmp.ge.f32.partialorder %v883, 0.0
  %vm887 = vcmp.ge.f32.partialorder %v884, 0.0
  %vm888 = vcmp.ge.f32.partialorder %v885, 0.0
  %v889 = vmul.f32 %v883, 0.01
  %v890 = vmul.f32 %v884, 0.01
  %v891 = vmul.f32 %v885, 0.01
  %v892 = vsel %vm886, %v883, %v889
  %v893 = vsel %vm887, %v884, %v890
  %v894 = vsel %vm888, %v885, %v891
  %v895 = vsel %vm416, %v892, 0.0
  %v896 = vsel %vm416, %v893, 0.0
  %v897 = vadd.f32 %v895, %v896
  %vm898 = vcmask 519168
  %v899 = vsel %vm898, %v894, 0.0
  %v900 = vadd.f32 %v897, %v899
  %v901 = vrot.slane %v900, 4
  %v902 = vadd.f32 %v900, %v901
  %v903 = vrot.slane %v902, 2
  %v904 = vadd.f32 %v902, %v903
  %v905 = vrot.slane %v904, 1
  %v906 = vadd.f32 %v904, %v905
  %v907 = vrcp.pop 20.0
  %v908 = vmul.f32 20.0, %v907
  %v909 = vsub.f32 1.0, %v908
  %v910 = vmul.f32 %v907, %v909
  %v911 = vadd.f32 %v907, %v910
  %vm912 = vweird.f32 %v907
  %v913 = vsel %vm912, %v907, %v911
  %v914 = vmul.f32 %v906, %v913
  %v915 = vsub.f32 %v892, %v914
  %v916 = vsub.f32 %v893, %v914
  %v917 = vsub.f32 %v894, %v914
  %v918 = vmul.f32 %v915, %v915
  %v919 = vmul.f32 %v916, %v916
  %v920 = vmul.f32 %v917, %v917
  %v921 = vsel %vm416, %v918, 0.0
  %v922 = vsel %vm416, %v919, 0.0
  %v923 = vadd.f32 %v921, %v922
  %v924 = vsel %vm898, %v920, 0.0
  %v925 = vadd.f32 %v923, %v924
  %v926 = vrot.slane %v925, 4
  %v927 = vadd.f32 %v925, %v926
  %v928 = vrot.slane %v927, 2
  %v929 = vadd.f32 %v927, %v928
  %v930 = vrot.slane %v929, 1
  %v931 = vadd.f32 %v929, %v930
  %v932 = vmul.f32 %v931, %v913
  %v933 = vadd.f32 %v932, 1e-05
  %v934 = vrsqrt.pop %v933
  %v935 = vmul.f32 %v934, %v933
  %v936 = vmul.f32 %v935, %v934
  %v937 = vmul.f32 0.5, %v936
  %v938 = vsub.f32 1.5, %v937
  %v939 = vmul.f32 %v934, %v938
  %vm940 = vweird.f32 %v933
  %vm941 = vweird.f32 %v934
  %vm942 = vmor %vm940, %vm941
  %v943 = vsel %vm942, %v934, %v939
  %v944 = vmul.f32 %v915, %v943
  %v945 = vmul.f32 %v916, %v943
  %v946 = vmul.f32 %v917, %v943
  %v947 = vld [vmem:[%s9] sm:$0x1]
  %v949 = vperm.slane %v947, 0
  %v951 = vmul.f32 %v944, %v949
  %v952 = vmul.f32 %v945, %v949
  %v953 = vmul.f32 %v946, %v949
  %v954 = vld [vmem:[%s10] sm:$0x1]
  %v956 = vperm.slane %v954, 0
  %v958 = vadd.f32 %v951, %v956
  %v959 = vadd.f32 %v952, %v956
  %v960 = vadd.f32 %v953, %v956
  %v963 = vrot.slane %v959, 2
  %v964 = vrot.slane %v960, 2
  %v965 = vsel %vm540, %v963, %v964
  %v968 = vrot.slane %v958, 1
  %v969 = vrot.slane %v959, 1
  %v970 = vsel %vm525, %v968, %v969
  %v971 = vrot.slane %v959, 3
  %v972 = vrot.slane %v960, 3
  %v973 = vsel %vm317, %v971, %v972
  %v974 = vrot.slane %v958, 2
  %v975 = vsel %vm540, %v974, %v963
  %v976 = vrot.slane %v959, 4
  %v977 = vrot.slane %v960, 4
  %v978 = vsel %vm512, %v976, %v977
  %979 = vrot.lane.b32.xlu0 %v970, 64
  %v980 = vpop.permute.xlu0 %979
  %981 = vrot.lane.b32.xlu0 %v973, 64
  %v982 = vpop.permute.xlu0 %981
  %v985 = vsel %vm416, %v958, %v980
  %v986 = vsel %vm416, %v965, %v982
  %v987 = vld [vmem:[%s11] sm:$0xff]
  %v988 = vld [vmem:[%s11 + $0x8] sm:$0xff]
  %v989 = vld [vmem:[%s11 + $0x10] sm:$0xff]
  %v990 = vld [vmem:[%s11 + $0x18] sm:$0xff]
  %v991 = vld [vmem:[%s11 + $0x20] sm:$0xff]
  %v992 = vld [vmem:[%s11 + $0x28] sm:$0xff]
  %v993 = vld [vmem:[%s11 + $0x30] sm:$0xff]
  %v994 = vld [vmem:[%s11 + $0x38] sm:$0xff]
  %v995 = vld [vmem:[%s11 + $0x40] sm:$0xff]
  %v996 = vld [vmem:[%s11 + $0x48] sm:$0xff]
  %v997 = vld [vmem:[%s11 + $0x50] sm:$0xff]
  %v998 = vld [vmem:[%s11 + $0x58] sm:$0xff]
  %v999 = vld [vmem:[%s11 + $0x60] sm:$0xff]
  %v1000 = vld [vmem:[%s11 + $0x68] sm:$0xff]
  %v1001 = vld [vmem:[%s11 + $0x70] sm:$0xff]
  %v1002 = vld [vmem:[%s11 + $0x78] sm:$0xff]
  %v1003 = vld [vmem:[%s11 + $0x80] sm:$0xff]
  %v1004 = vld [vmem:[%s11 + $0x88] sm:$0xff]
  %v1005 = vld [vmem:[%s11 + $0x90] sm:$0xff]
  %v1006 = vld [vmem:[%s11 + $0x98] sm:$0xff]
  %v1007 = vld [vmem:[%s11 + $0xa0] sm:$0xff]
  %v1008 = vld [vmem:[%s11 + $0xa8] sm:$0xff]
  %v1009 = vld [vmem:[%s11 + $0xb0] sm:$0xff]
  %v1010 = vld [vmem:[%s11 + $0xb8] sm:$0xff]
  %v1011 = vld [vmem:[%s12] sm:$0x1]
  %v1013 = vperm.slane %v1011, 0
  %v1015 = vsel %vm416, %v975, 0
  %v1017 = vsel %vm416, %v978, 0
  %1019 = vmatpush.msra.mxu0 %v1002
  %1020 = vmatpush.msra.mxu0 %v1001
  %1021 = vmatpush.msra.mxu0 %v1000
  %1022 = vmatpush.msra.mxu0 %v999
  %1023 = vmatpush.msra.mxu0 %v998
  %1024 = vmatpush.msra.mxu0 %v997
  %1025 = vmatpush.msra.mxu0 %v996
  %1026 = vmatpush.msra.mxu0 %v995
  %1027 = vmatpush.msra.mxu0 %v994
  %1028 = vmatpush.msra.mxu0 %v993
  %1029 = vmatpush.msra.mxu0 %v992
  %1030 = vmatpush.msra.mxu0 %v991
  %1031 = vmatpush.msra.mxu0 %v990
  %1032 = vmatpush.msra.mxu0 %v989
  %1033 = vmatpush.msra.mxu0 %v988
  %1034 = vmatpush.msra.mxu0 %v987
  %1035 = vmatmul.f32.gmra.mxu0 %v985
  %v1036 = vpop.f32.mrf.mxu0
  %v1037 = vadd.f32 %v1013, %v1036
  %1038 = vmatmul.f32.gmra.mxu0 %v986
  %v1039 = vpop.f32.mrf.mxu0
  %v1040 = vadd.f32 %v1013, %v1039
  %1041 = vdwg.mxu0
  %1042 = vmatpush.msra.mxu0 0.0
  %1043 = vmatpush.msra.mxu0 0.0
  %1044 = vmatpush.msra.mxu0 0.0
  %1045 = vmatpush.msra.mxu0 0.0
  %1046 = vmatpush.msra.mxu0 0.0
  %1047 = vmatpush.msra.mxu0 0.0
  %1048 = vmatpush.msra.mxu0 0.0
  %1049 = vmatpush.msra.mxu0 0.0
  %1050 = vmatpush.msra.mxu0 %v1010
  %1051 = vmatpush.msra.mxu0 %v1009
  %1052 = vmatpush.msra.mxu0 %v1008
  %1053 = vmatpush.msra.mxu0 %v1007
  %1054 = vmatpush.msra.mxu0 %v1006
  %1055 = vmatpush.msra.mxu0 %v1005
  %1056 = vmatpush.msra.mxu0 %v1004
  %1057 = vmatpush.msra.mxu0 %v1003
  %1058 = vmatmul.f32.gmra.mxu0 %v1015
  %v1059 = vpop.f32.mrf.mxu0
  %v1060 = vadd.f32 %v1037, %v1059
  %1061 = vmatmul.f32.gmra.mxu0 %v1017
  %v1062 = vpop.f32.mrf.mxu0
  %v1063 = vadd.f32 %v1040, %v1062
  %1064 = vdwg.mxu0
  %v1066 = vrot.slane %v1060, 1
  %1067 = vrot.lane.b32.xlu0 %v1066, 64
  %v1068 = vpop.permute.xlu0 %1067
  %v1070 = vrot.slane %v1060, 2
  %v1072 = vrot.slane %v1060, 3
  %1073 = vrot.lane.b32.xlu0 %v1072, 64
  %v1074 = vpop.permute.xlu0 %1073
  %v1076 = vrot.slane %v1060, 4
  %v1078 = vrot.slane %v1060, 5
  %1079 = vrot.lane.b32.xlu0 %v1078, 64
  %v1080 = vpop.permute.xlu0 %1079
  %v1082 = vrot.slane %v1060, 6
  %v1084 = vrot.slane %v1060, 7
  %1085 = vrot.lane.b32.xlu0 %v1084, 64
  %v1086 = vpop.permute.xlu0 %1085
  %v1088 = vsel %vm416, %v1060, %v1068
  %v1089 = vsel %vm416, %v1070, %v1074
  %v1090 = vsel %vm416, %v1076, %v1080
  %v1091 = vsel %vm416, %v1082, %v1086
  %v1093 = vrot.slane %v1063, 1
  %1094 = vrot.lane.b32.xlu0 %v1093, 64
  %v1095 = vpop.permute.xlu0 %1094
  %v1097 = vrot.slane %v1063, 2
  %v1099 = vrot.slane %v1063, 3
  %1100 = vrot.lane.b32.xlu0 %v1099, 64
  %v1101 = vpop.permute.xlu0 %1100
  %v1103 = vrot.slane %v1063, 4
  %v1105 = vrot.slane %v1063, 5
  %1106 = vrot.lane.b32.xlu0 %v1105, 64
  %v1107 = vpop.permute.xlu0 %1106
  %v1109 = vrot.slane %v1063, 6
  %v1111 = vrot.slane %v1063, 7
  %1112 = vrot.lane.b32.xlu0 %v1111, 64
  %v1113 = vpop.permute.xlu0 %1112
  %v1115 = vsel %vm416, %v1063, %v1095
  %v1116 = vsel %vm416, %v1097, %v1101
  %v1117 = vsel %vm416, %v1103, %v1107
  %v1118 = vsel %vm416, %v1109, %v1113
  %v1123 = vrot.slane %v1115, 7
  %v1124 = vrot.slane %v1116, 7
  %v1125 = vrot.slane %v1117, 7
  %v1126 = vrot.slane %v1118, 7
  %v1131 = vsel %vm565, %v1088, %v1123
  %v1132 = vsel %vm565, %v1089, %v1124
  %v1133 = vsel %vm565, %v1090, %v1125
  %v1134 = vsel %vm565, %v1091, %v1126
  %v1135 = vld [vmem:[%s13] sm:$0xff]
  %v1136 = vld [vmem:[%s13 + $0x8] sm:$0xff]
  %v1137 = vld [vmem:[%s13 + $0x10] sm:$0xff]
  %v1138 = vld [vmem:[%s13 + $0x18] sm:$0xff]
  %v1139 = vld [vmem:[%s13 + $0x20] sm:$0xff]
  %v1140 = vld [vmem:[%s13 + $0x28] sm:$0xff]
  %v1141 = vld [vmem:[%s13 + $0x30] sm:$0xff]
  %v1142 = vld [vmem:[%s13 + $0x38] sm:$0xff]
  %v1143 = vld [vmem:[%s13 + $0x40] sm:$0xff]
  %v1144 = vld [vmem:[%s13 + $0x48] sm:$0xff]
  %v1145 = vld [vmem:[%s13 + $0x50] sm:$0xff]
  %v1146 = vld [vmem:[%s13 + $0x58] sm:$0xff]
  %v1147 = vld [vmem:[%s13 + $0x60] sm:$0xff]
  %v1148 = vld [vmem:[%s13 + $0x68] sm:$0xff]
  %v1149 = vld [vmem:[%s13 + $0x70] sm:$0xff]
  %v1150 = vld [vmem:[%s13 + $0x78] sm:$0xff]
  %v1151 = vld [vmem:[%s13 + $0x80] sm:$0xff]
  %v1152 = vld [vmem:[%s13 + $0x88] sm:$0xff]
  %v1153 = vld [vmem:[%s13 + $0x90] sm:$0xff]
  %v1154 = vld [vmem:[%s13 + $0x98] sm:$0xff]
  %v1155 = vld [vmem:[%s13 + $0xa0] sm:$0xff]
  %v1156 = vld [vmem:[%s13 + $0xa8] sm:$0xff]
  %v1157 = vld [vmem:[%s13 + $0xb0] sm:$0xff]
  %v1158 = vld [vmem:[%s13 + $0xb8] sm:$0xff]
  %v1159 = vld [vmem:[%s13 + $0xc0] sm:$0xff]
  %v1160 = vld [vmem:[%s13 + $0xc8] sm:$0xff]
  %v1161 = vld [vmem:[%s13 + $0xd0] sm:$0xff]
  %v1162 = vld [vmem:[%s13 + $0xd8] sm:$0xff]
  %v1163 = vld [vmem:[%s13 + $0xe0] sm:$0xff]
  %v1164 = vld [vmem:[%s13 + $0xe8] sm:$0xff]
  %v1165 = vld [vmem:[%s13 + $0xf0] sm:$0xff]
  %v1166 = vld [vmem:[%s13 + $0xf8] sm:$0xff]
  %v1167 = vld [vmem:[%s13 + $0x100] sm:$0xff]
  %v1168 = vld [vmem:[%s13 + $0x108] sm:$0xff]
  %v1169 = vld [vmem:[%s13 + $0x110] sm:$0xff]
  %v1170 = vld [vmem:[%s13 + $0x118] sm:$0xff]
  %v1171 = vld [vmem:[%s13 + $0x120] sm:$0xff]
  %v1172 = vld [vmem:[%s13 + $0x128] sm:$0xff]
  %v1173 = vld [vmem:[%s13 + $0x130] sm:$0xff]
  %v1174 = vld [vmem:[%s13 + $0x138] sm:$0xff]
  %v1175 = vld [vmem:[%s13 + $0x140] sm:$0xff]
  %v1176 = vld [vmem:[%s13 + $0x148] sm:$0xff]
  %v1177 = vld [vmem:[%s13 + $0x150] sm:$0xff]
  %v1178 = vld [vmem:[%s13 + $0x158] sm:$0xff]
  %v1179 = vld [vmem:[%s13 + $0x160] sm:$0xff]
  %v1180 = vld [vmem:[%s13 + $0x168] sm:$0xff]
  %v1181 = vld [vmem:[%s13 + $0x170] sm:$0xff]
  %v1182 = vld [vmem:[%s13 + $0x178] sm:$0xff]
  %v1183 = vld [vmem:[%s13 + $0x180] sm:$0xff]
  %v1184 = vld [vmem:[%s13 + $0x188] sm:$0xff]
  %v1185 = vld [vmem:[%s13 + $0x190] sm:$0xff]
  %v1186 = vld [vmem:[%s13 + $0x198] sm:$0xff]
  %v1187 = vld [vmem:[%s13 + $0x1a0] sm:$0xff]
  %v1188 = vld [vmem:[%s13 + $0x1a8] sm:$0xff]
  %v1189 = vld [vmem:[%s13 + $0x1b0] sm:$0xff]
  %v1190 = vld [vmem:[%s13 + $0x1b8] sm:$0xff]
  %v1191 = vld [vmem:[%s13 + $0x1c0] sm:$0xff]
  %v1192 = vld [vmem:[%s13 + $0x1c8] sm:$0xff]
  %v1193 = vld [vmem:[%s13 + $0x1d0] sm:$0xff]
  %v1194 = vld [vmem:[%s13 + $0x1d8] sm:$0xff]
  %v1195 = vld [vmem:[%s13 + $0x1e0] sm:$0xff]
  %v1196 = vld [vmem:[%s13 + $0x1e8] sm:$0xff]
  %v1197 = vld [vmem:[%s13 + $0x1f0] sm:$0xff]
  %v1198 = vld [vmem:[%s13 + $0x1f8] sm:$0xff]
  %v1199 = vld [vmem:[%s14] sm:$0x1]
  %v1201 = vperm.slane %v1199, 0
  %1203 = vmatpush.msra.mxu0 %v1150
  %1204 = vmatpush.msra.mxu0 %v1149
  %1205 = vmatpush.msra.mxu0 %v1148
  %1206 = vmatpush.msra.mxu0 %v1147
  %1207 = vmatpush.msra.mxu0 %v1146
  %1208 = vmatpush.msra.mxu0 %v1145
  %1209 = vmatpush.msra.mxu0 %v1144
  %1210 = vmatpush.msra.mxu0 %v1143
  %1211 = vmatpush.msra.mxu0 %v1142
  %1212 = vmatpush.msra.mxu0 %v1141
  %1213 = vmatpush.msra.mxu0 %v1140
  %1214 = vmatpush.msra.mxu0 %v1139
  %1215 = vmatpush.msra.mxu0 %v1138
  %1216 = vmatpush.msra.mxu0 %v1137
  %1217 = vmatpush.msra.mxu0 %v1136
  %1218 = vmatpush.msra.mxu0 %v1135
  %1219 = vmatmul.f32.gmra.mxu0 %v1131
  %v1220 = vpop.f32.mrf.mxu0
  %v1221 = vadd.f32 %v1201, %v1220
  %1222 = vdwg.mxu0
  %1223 = vmatpush.msra.mxu0 %v1166
  %1224 = vmatpush.msra.mxu0 %v1165
  %1225 = vmatpush.msra.mxu0 %v1164
  %1226 = vmatpush.msra.mxu0 %v1163
  %1227 = vmatpush.msra.mxu0 %v1162
  %1228 = vmatpush.msra.mxu0 %v1161
  %1229 = vmatpush.msra.mxu0 %v1160
  %1230 = vmatpush.msra.mxu0 %v1159
  %1231 = vmatpush.msra.mxu0 %v1158
  %1232 = vmatpush.msra.mxu0 %v1157
  %1233 = vmatpush.msra.mxu0 %v1156
  %1234 = vmatpush.msra.mxu0 %v1155
  %1235 = vmatpush.msra.mxu0 %v1154
  %1236 = vmatpush.msra.mxu0 %v1153
  %1237 = vmatpush.msra.mxu0 %v1152
  %1238 = vmatpush.msra.mxu0 %v1151
  %1239 = vmatmul.f32.gmra.mxu0 %v1132
  %v1240 = vpop.f32.mrf.mxu0
  %v1241 = vadd.f32 %v1221, %v1240
  %1242 = vdwg.mxu0
  %1243 = vmatpush.msra.mxu0 %v1182
  %1244 = vmatpush.msra.mxu0 %v1181
  %1245 = vmatpush.msra.mxu0 %v1180
  %1246 = vmatpush.msra.mxu0 %v1179
  %1247 = vmatpush.msra.mxu0 %v1178
  %1248 = vmatpush.msra.mxu0 %v1177
  %1249 = vmatpush.msra.mxu0 %v1176
  %1250 = vmatpush.msra.mxu0 %v1175
  %1251 = vmatpush.msra.mxu0 %v1174
  %1252 = vmatpush.msra.mxu0 %v1173
  %1253 = vmatpush.msra.mxu0 %v1172
  %1254 = vmatpush.msra.mxu0 %v1171
  %1255 = vmatpush.msra.mxu0 %v1170
  %1256 = vmatpush.msra.mxu0 %v1169
  %1257 = vmatpush.msra.mxu0 %v1168
  %1258 = vmatpush.msra.mxu0 %v1167
  %1259 = vmatmul.f32.gmra.mxu0 %v1133
  %v1260 = vpop.f32.mrf.mxu0
  %v1261 = vadd.f32 %v1241, %v1260
  %1262 = vdwg.mxu0
  %1263 = vmatpush.msra.mxu0 %v1198
  %1264 = vmatpush.msra.mxu0 %v1197
  %1265 = vmatpush.msra.mxu0 %v1196
  %1266 = vmatpush.msra.mxu0 %v1195
  %1267 = vmatpush.msra.mxu0 %v1194
  %1268 = vmatpush.msra.mxu0 %v1193
  %1269 = vmatpush.msra.mxu0 %v1192
  %1270 = vmatpush.msra.mxu0 %v1191
  %1271 = vmatpush.msra.mxu0 %v1190
  %1272 = vmatpush.msra.mxu0 %v1189
  %1273 = vmatpush.msra.mxu0 %v1188
  %1274 = vmatpush.msra.mxu0 %v1187
  %1275 = vmatpush.msra.mxu0 %v1186
  %1276 = vmatpush.msra.mxu0 %v1185
  %1277 = vmatpush.msra.mxu0 %v1184
  %1278 = vmatpush.msra.mxu0 %v1183
  %1279 = vmatmul.f32.gmra.mxu0 %v1134
  %v1280 = vpop.f32.mrf.mxu0
  %v1281 = vadd.f32 %v1261, %v1280
  %1282 = vdwg.mxu0
  %vm1283 = vcmask 517120
  %1284 = vst.msk [vmem:[%s24] sm:$0x3] %vm1283, %v1281
  %v1285 = vld [vmem:[%s15] sm:$0x3]
  %v1286 = vmul.f32 %v1281, 1.442695
  %v1287 = vpow.pop %v1286
  %1289 = vrot.lane.b32.xlu0 %v1287, 96
  %v1290 = vpop.permute.xlu0 %1289
  %v1292 = vmul.f32 %v1285, %v1290
  %v1293 = vadd.f32 %v1281, %v1292
  %v1294 = vld [vmem:[%s16] sm:$0xff]
  %v1295 = vld [vmem:[%s16 + $0x8] sm:$0xff]
  %v1296 = vld [vmem:[%s16 + $0x10] sm:$0xff]
  %v1297 = vld [vmem:[%s16 + $0x18] sm:$0xff]
  %v1298 = vld [vmem:[%s16 + $0x20] sm:$0xff]
  %v1299 = vld [vmem:[%s16 + $0x28] sm:$0xff]
  %v1300 = vld [vmem:[%s16 + $0x30] sm:$0xff]
  %v1301 = vld [vmem:[%s16 + $0x38] sm:$0xff]
  %v1302 = vld [vmem:[%s16 + $0x40] sm:$0xff]
  %v1303 = vld [vmem:[%s16 + $0x48] sm:$0xff]
  %v1304 = vld [vmem:[%s16 + $0x50] sm:$0xff]
  %v1305 = vld [vmem:[%s16 + $0x58] sm:$0xff]
  %v1306 = vld [vmem:[%s16 + $0x60] sm:$0xff]
  %v1307 = vld [vmem:[%s16 + $0x68] sm:$0xff]
  %v1308 = vld [vmem:[%s16 + $0x70] sm:$0xff]
  %v1309 = vld [vmem:[%s16 + $0x78] sm:$0xff]
  %v1310 = vld [vmem:[%s17] sm:$0xf]
  %v1312 = vperm.slane %v1310, 0
  %v1313 = vperm.slane %v1310, 1
  %v1314 = vperm.slane %v1310, 2
  %v1315 = vperm.slane %v1310, 3
  %vm1320 = vcmask 261120
  %v1322 = vsel %vm1320, %v1293, 0
  %1324 = vmatpush.msra.mxu0 0.0
  %1325 = vmatpush.msra.mxu0 0.0
  %1326 = vmatpush.msra.mxu0 0.0
  %1327 = vmatpush.msra.mxu0 0.0
  %1328 = vmatpush.msra.mxu0 0.0
  %1329 = vmatpush.msra.mxu0 0.0
  %1330 = vmatpush.msra.mxu0 0.0
  %1331 = vmatpush.msra.mxu0 0.0
  %1332 = vmatpush.msra.mxu0 0.0
  %1333 = vmatpush.msra.mxu0 0.0
  %1334 = vmatpush.msra.mxu0 0.0
  %1335 = vmatpush.msra.mxu0 0.0
  %1336 = vmatpush.msra.mxu0 %v1306
  %1337 = vmatpush.msra.mxu0 %v1302
  %1338 = vmatpush.msra.mxu0 %v1298
  %1339 = vmatpush.msra.mxu0 %v1294
  %1340 = vmatmul.f32.gmra.mxu0 %v1322
  %v1341 = vpop.f32.mrf.mxu0
  %v1342 = vadd.f32 %v1312, %v1341
  %1343 = vdwg.mxu0
  %1344 = vmatpush.msra.mxu0 0.0
  %1345 = vmatpush.msra.mxu0 0.0
  %1346 = vmatpush.msra.mxu0 0.0
  %1347 = vmatpush.msra.mxu0 0.0
  %1348 = vmatpush.msra.mxu0 0.0
  %1349 = vmatpush.msra.mxu0 0.0
  %1350 = vmatpush.msra.mxu0 0.0
  %1351 = vmatpush.msra.mxu0 0.0
  %1352 = vmatpush.msra.mxu0 0.0
  %1353 = vmatpush.msra.mxu0 0.0
  %1354 = vmatpush.msra.mxu0 0.0
  %1355 = vmatpush.msra.mxu0 0.0
  %1356 = vmatpush.msra.mxu0 %v1307
  %1357 = vmatpush.msra.mxu0 %v1303
  %1358 = vmatpush.msra.mxu0 %v1299
  %1359 = vmatpush.msra.mxu0 %v1295
  %1360 = vmatmul.f32.gmra.mxu0 %v1322
  %v1361 = vpop.f32.mrf.mxu0
  %v1362 = vadd.f32 %v1313, %v1361
  %1363 = vdwg.mxu0
  %1364 = vmatpush.msra.mxu0 0.0
  %1365 = vmatpush.msra.mxu0 0.0
  %1366 = vmatpush.msra.mxu0 0.0
  %1367 = vmatpush.msra.mxu0 0.0
  %1368 = vmatpush.msra.mxu0 0.0
  %1369 = vmatpush.msra.mxu0 0.0
  %1370 = vmatpush.msra.mxu0 0.0
  %1371 = vmatpush.msra.mxu0 0.0
  %1372 = vmatpush.msra.mxu0 0.0
  %1373 = vmatpush.msra.mxu0 0.0
  %1374 = vmatpush.msra.mxu0 0.0
  %1375 = vmatpush.msra.mxu0 0.0
  %1376 = vmatpush.msra.mxu0 %v1308
  %1377 = vmatpush.msra.mxu0 %v1304
  %1378 = vmatpush.msra.mxu0 %v1300
  %1379 = vmatpush.msra.mxu0 %v1296
  %1380 = vmatmul.f32.gmra.mxu0 %v1322
  %v1381 = vpop.f32.mrf.mxu0
  %v1382 = vadd.f32 %v1314, %v1381
  %1383 = vdwg.mxu0
  %1384 = vmatpush.msra.mxu0 0.0
  %1385 = vmatpush.msra.mxu0 0.0
  %1386 = vmatpush.msra.mxu0 0.0
  %1387 = vmatpush.msra.mxu0 0.0
  %1388 = vmatpush.msra.mxu0 0.0
  %1389 = vmatpush.msra.mxu0 0.0
  %1390 = vmatpush.msra.mxu0 0.0
  %1391 = vmatpush.msra.mxu0 0.0
  %1392 = vmatpush.msra.mxu0 0.0
  %1393 = vmatpush.msra.mxu0 0.0
  %1394 = vmatpush.msra.mxu0 0.0
  %1395 = vmatpush.msra.mxu0 0.0
  %1396 = vmatpush.msra.mxu0 %v1309
  %1397 = vmatpush.msra.mxu0 %v1305
  %1398 = vmatpush.msra.mxu0 %v1301
  %1399 = vmatpush.msra.mxu0 %v1297
  %1400 = vmatmul.f32.gmra.mxu0 %v1322
  %v1401 = vpop.f32.mrf.mxu0
  %v1402 = vadd.f32 %v1315, %v1401
  %1403 = vdwg.mxu0
  %v1405 = vrot.slane %v1342, 6
  %v1407 = vrot.slane %v1342, 5
  %1408 = vrot.lane.b32.xlu0 %v1407, 64
  %v1409 = vpop.permute.xlu0 %1408
  %v1412 = vrot.slane %v1362, 4
  %v1414 = vrot.slane %v1362, 3
  %1415 = vrot.lane.b32.xlu0 %v1414, 64
  %v1416 = vpop.permute.xlu0 %1415
  %v1419 = vrot.slane %v1382, 2
  %v1421 = vrot.slane %v1382, 1
  %1422 = vrot.lane.b32.xlu0 %v1421, 64
  %v1423 = vpop.permute.xlu0 %1422
  %v1426 = vrot.slane %v1402, 7
  %1427 = vrot.lane.b32.xlu0 %v1426, 64
  %v1428 = vpop.permute.xlu0 %1427
  %v1430 = vsel %vm549, 0.0, %v1405
  %v1431 = vsel %vm532, %v1430, %v1409
  %v1432 = vsel %vm512, %v1431, %v1412
  %v1433 = vsel %vm317, %v1432, %v1416
  %v1434 = vsel %vm540, %v1433, %v1419
  %v1435 = vsel %vm525, %v1434, %v1423
  %v1436 = vsel %vm565, %v1402, %v1428
  %v1437 = vsel %vm549, %v1436, 0.0
  %v1438 = vrot.slane %v1342, 7
  %1440 = vrot.lane.b32.xlu0 %v1405, 64
  %v1441 = vpop.permute.xlu0 %1440
  %v1443 = vrot.slane %v1362, 5
  %1445 = vrot.lane.b32.xlu0 %v1412, 64
  %v1446 = vpop.permute.xlu0 %1445
  %v1448 = vrot.slane %v1382, 3
  %1450 = vrot.lane.b32.xlu0 %v1419, 64
  %v1451 = vpop.permute.xlu0 %1450
  %v1453 = vrot.slane %v1402, 1
  %1455 = vrot.lane.b32.xlu0 %v1402, 64
  %v1456 = vpop.permute.xlu0 %1455
  %v1458 = vsel %vm549, 0.0, %v1438
  %v1459 = vsel %vm532, %v1458, %v1441
  %v1460 = vsel %vm512, %v1459, %v1443
  %v1461 = vsel %vm317, %v1460, %v1446
  %v1462 = vsel %vm540, %v1461, %v1448
  %v1463 = vsel %vm525, %v1462, %v1451
  %v1464 = vsel %vm565, %v1453, %v1456
  %v1465 = vsel %vm549, %v1464, 0.0
  %v1468 = vrot.slane %v1463, 6
  %v1469 = vrot.slane %v1465, 6
  %v1470 = vsel %vm549, %v1468, %v1469
  %v1473 = vsel %vm549, %v1437, %v1468
  %v1476 = vrot.slane %v1435, 1
  %v1477 = vrot.slane %v1437, 1
  %v1478 = vsel %vm525, %v1476, %v1477
  %v1480 = vrot.slane %v1463, 7
  %v1481 = vrot.slane %v1465, 7
  %v1482 = vsel %vm565, %v1480, %v1481
  %v1484 = vsel %vm549, %v1477, %v1480
  %v1485 = vrot.slane %v1435, 2
  %v1486 = vrot.slane %v1437, 2
  %v1487 = vsel %vm540, %v1485, %v1486
  %v1489 = vsel %vm549, %v1486, %v1463
  %1491 = vrot.lane.b32.xlu0 %v1478, 64
  %v1492 = vpop.permute.xlu0 %1491
  %1493 = vrot.lane.b32.xlu0 %v1484, 64
  %v1494 = vpop.permute.xlu0 %1493
  %1495 = vrot.lane.b32.xlu0 %v1482, 64
  %v1496 = vpop.permute.xlu0 %1495
  %v1500 = vsel %vm416, %v1435, %v1492
  %v1501 = vsel %vm416, %v1473, %v1494
  %v1502 = vsel %vm416, %v1470, %v1496
  %v1503 = vld [vmem:[%s18] sm:$0xff]
  %v1504 = vld [vmem:[%s18 + $0x8] sm:$0xff]
  %v1505 = vld [vmem:[%s18 + $0x10] sm:$0xff]
  %v1506 = vld [vmem:[%s18 + $0x18] sm:$0xff]
  %v1507 = vld [vmem:[%s18 + $0x20] sm:$0xff]
  %v1508 = vld [vmem:[%s18 + $0x28] sm:$0xff]
  %v1509 = vld [vmem:[%s18 + $0x30] sm:$0xff]
  %v1510 = vld [vmem:[%s18 + $0x38] sm:$0xff]
  %v1511 = vld [vmem:[%s18 + $0x40] sm:$0xff]
  %v1512 = vld [vmem:[%s18 + $0x48] sm:$0xff]
  %v1513 = vld [vmem:[%s18 + $0x50] sm:$0xff]
  %v1514 = vld [vmem:[%s18 + $0x58] sm:$0xff]
  %v1515 = vld [vmem:[%s18 + $0x60] sm:$0xff]
  %v1516 = vld [vmem:[%s18 + $0x68] sm:$0xff]
  %v1517 = vld [vmem:[%s18 + $0x70] sm:$0xff]
  %v1518 = vld [vmem:[%s18 + $0x78] sm:$0xff]
  %v1519 = vld [vmem:[%s18 + $0x80] sm:$0xff]
  %v1520 = vld [vmem:[%s18 + $0x88] sm:$0xff]
  %v1521 = vld [vmem:[%s18 + $0x90] sm:$0xff]
  %v1522 = vld [vmem:[%s18 + $0x98] sm:$0xff]
  %v1523 = vld [vmem:[%s18 + $0xa0] sm:$0xff]
  %v1524 = vld [vmem:[%s18 + $0xa8] sm:$0xff]
  %v1525 = vld [vmem:[%s18 + $0xb0] sm:$0xff]
  %v1526 = vld [vmem:[%s18 + $0xb8] sm:$0xff]
  %v1527 = vld [vmem:[%s19] sm:$0x1]
  %v1529 = vperm.slane %v1527, 0
  %v1531 = vsel %vm416, %v1487, 0
  %v1534 = vsel %vm416, %v1489, 0
  %v1536 = vsel %vm416, %v1465, 0
  %1538 = vmatpush.msra.mxu0 %v1518
  %1539 = vmatpush.msra.mxu0 %v1517
  %1540 = vmatpush.msra.mxu0 %v1516
  %1541 = vmatpush.msra.mxu0 %v1515
  %1542 = vmatpush.msra.mxu0 %v1514
  %1543 = vmatpush.msra.mxu0 %v1513
  %1544 = vmatpush.msra.mxu0 %v1512
  %1545 = vmatpush.msra.mxu0 %v1511
  %1546 = vmatpush.msra.mxu0 %v1510
  %1547 = vmatpush.msra.mxu0 %v1509
  %1548 = vmatpush.msra.mxu0 %v1508
  %1549 = vmatpush.msra.mxu0 %v1507
  %1550 = vmatpush.msra.mxu0 %v1506
  %1551 = vmatpush.msra.mxu0 %v1505
  %1552 = vmatpush.msra.mxu0 %v1504
  %1553 = vmatpush.msra.mxu0 %v1503
  %1554 = vmatmul.f32.gmra.mxu0 %v1500
  %v1555 = vpop.f32.mrf.mxu0
  %v1556 = vadd.f32 %v1529, %v1555
  %1557 = vmatmul.f32.gmra.mxu0 %v1501
  %v1558 = vpop.f32.mrf.mxu0
  %v1559 = vadd.f32 %v1529, %v1558
  %1560 = vmatmul.f32.gmra.mxu0 %v1502
  %v1561 = vpop.f32.mrf.mxu0
  %v1562 = vadd.f32 %v1529, %v1561
  %1563 = vdwg.mxu0
  %1564 = vmatpush.msra.mxu0 0.0
  %1565 = vmatpush.msra.mxu0 0.0
  %1566 = vmatpush.msra.mxu0 0.0
  %1567 = vmatpush.msra.mxu0 0.0
  %1568 = vmatpush.msra.mxu0 0.0
  %1569 = vmatpush.msra.mxu0 0.0
  %1570 = vmatpush.msra.mxu0 0.0
  %1571 = vmatpush.msra.mxu0 0.0
  %1572 = vmatpush.msra.mxu0 %v1526
  %1573 = vmatpush.msra.mxu0 %v1525
  %1574 = vmatpush.msra.mxu0 %v1524
  %1575 = vmatpush.msra.mxu0 %v1523
  %1576 = vmatpush.msra.mxu0 %v1522
  %1577 = vmatpush.msra.mxu0 %v1521
  %1578 = vmatpush.msra.mxu0 %v1520
  %1579 = vmatpush.msra.mxu0 %v1519
  %1580 = vmatmul.f32.gmra.mxu0 %v1531
  %v1581 = vpop.f32.mrf.mxu0
  %v1582 = vadd.f32 %v1556, %v1581
  %1583 = vmatmul.f32.gmra.mxu0 %v1534
  %v1584 = vpop.f32.mrf.mxu0
  %v1585 = vadd.f32 %v1559, %v1584
  %1586 = vmatmul.f32.gmra.mxu0 %v1536
  %v1587 = vpop.f32.mrf.mxu0
  %v1588 = vadd.f32 %v1562, %v1587
  %1589 = vdwg.mxu0
  %vm1590 = vcmp.ge.f32.partialorder %v1582, 0.0
  %vm1591 = vcmp.ge.f32.partialorder %v1585, 0.0
  %vm1592 = vcmp.ge.f32.partialorder %v1588, 0.0
  %v1593 = vmul.f32 %v1582, 0.01
  %v1594 = vmul.f32 %v1585, 0.01
  %v1595 = vmul.f32 %v1588, 0.01
  %v1596 = vsel %vm1590, %v1582, %v1593
  %v1597 = vsel %vm1591, %v1585, %v1594
  %v1598 = vsel %vm1592, %v1588, %v1595
  %v1599 = vadd.s32 %v774, 24
  %v1600 = vadd.s32 %v774, 32
  %v1601 = vmul.u32 %v778, 2
  %vm1602 = vcmp.eq.s32.totalorder %v774, %v1601
  %vm1603 = vcmp.eq.s32.totalorder %v775, %v1601
  %vm1604 = vcmp.eq.s32.totalorder %v776, %v1601
  %vm1605 = vcmp.eq.s32.totalorder %v1599, %v1601
  %vm1606 = vcmp.eq.s32.totalorder %v1600, %v1601
  %v1607 = vsel %vm1602, 1, 0
  %v1608 = vsel %vm1603, 1, 0
  %v1609 = vsel %vm1604, 1, 0
  %v1610 = vsel %vm1605, 1, 0
  %v1611 = vsel %vm1606, 1, 0
  %v1612 = vcvt.s32.f32 %v1607
  %v1613 = vcvt.s32.f32 %v1608
  %v1614 = vcvt.s32.f32 %v1609
  %v1615 = vcvt.s32.f32 %v1610
  %v1616 = vcvt.s32.f32 %v1611
  %v1617 = vadd.s32 %v1601, 1
  %vm1618 = vcmp.eq.s32.totalorder %v774, %v1617
  %vm1619 = vcmp.eq.s32.totalorder %v775, %v1617
  %vm1620 = vcmp.eq.s32.totalorder %v776, %v1617
  %vm1621 = vcmp.eq.s32.totalorder %v1599, %v1617
  %vm1622 = vcmp.eq.s32.totalorder %v1600, %v1617
  %v1623 = vsel %vm1618, 1, 0
  %v1624 = vsel %vm1619, 1, 0
  %v1625 = vsel %vm1620, 1, 0
  %v1626 = vsel %vm1621, 1, 0
  %v1627 = vsel %vm1622, 1, 0
  %v1628 = vcvt.s32.f32 %v1623
  %v1629 = vcvt.s32.f32 %v1624
  %v1630 = vcvt.s32.f32 %v1625
  %v1631 = vcvt.s32.f32 %v1626
  %v1632 = vcvt.s32.f32 %v1627
  %v1633 = vmul.f32 %v1596, %v880
  %v1634 = vmul.f32 %v1597, %v881
  %v1635 = vmul.f32 %v1598, %v882
  %v1636 = vsub.f32 1.0, %v880
  %v1637 = vsub.f32 1.0, %v881
  %v1638 = vsub.f32 1.0, %v882
  %v1639 = vmul.f32 %v1596, %v1636
  %v1640 = vmul.f32 %v1597, %v1637
  %v1641 = vmul.f32 %v1598, %v1638
  %vm1642 = vcmask 162816
  %v1644 = vsel %vm1642, %v1628, 0
  %v1647 = vsel %vm1642, %v1629, 0
  %v1650 = vsel %vm1642, %v1630, 0
  %v1653 = vsel %vm1642, %v1631, 0
  %v1656 = vsel %vm1642, %v1632, 0
  %v1659 = vsel %vm512, %v1641, 0
  %1661 = vmatpush.msra.mxu0 0.0
  %1662 = vmatpush.msra.mxu0 0.0
  %1663 = vmatpush.msra.mxu0 0.0
  %1664 = vmatpush.msra.mxu0 0.0
  %1665 = vmatpush.msra.mxu0 0.0
  %1666 = vmatpush.msra.mxu0 0.0
  %1667 = vmatpush.msra.mxu0 0.0
  %1668 = vmatpush.msra.mxu0 0.0
  %1669 = vmatpush.msra.mxu0 0.0
  %1670 = vmatpush.msra.mxu0 0.0
  %1671 = vmatpush.msra.mxu0 0.0
  %1672 = vmatpush.msra.mxu0 0.0
  %1673 = vmatpush.msra.mxu0 0.0
  %1674 = vmatpush.msra.mxu0 %v1659
  %1675 = vmatpush.msra.mxu0 %v1640
  %1676 = vmatpush.msra.mxu0 %v1639
  %1677 = vmatmul.f32.gmra.mxu0 %v1644
  %v1678 = vpop.f32.mrf.mxu0
  %v1679 = vadd.f32 0.0, %v1678
  %1680 = vmatmul.f32.gmra.mxu0 %v1647
  %v1681 = vpop.f32.mrf.mxu0
  %v1682 = vadd.f32 0.0, %v1681
  %1683 = vmatmul.f32.gmra.mxu0 %v1650
  %v1684 = vpop.f32.mrf.mxu0
  %v1685 = vadd.f32 0.0, %v1684
  %1686 = vmatmul.f32.gmra.mxu0 %v1653
  %v1687 = vpop.f32.mrf.mxu0
  %v1688 = vadd.f32 0.0, %v1687
  %1689 = vmatmul.f32.gmra.mxu0 %v1656
  %v1690 = vpop.f32.mrf.mxu0
  %v1691 = vadd.f32 0.0, %v1690
  %1692 = vdwg.mxu0
  %v1694 = vsel %vm1642, %v1612, 0
  %v1697 = vsel %vm1642, %v1613, 0
  %v1700 = vsel %vm1642, %v1614, 0
  %v1703 = vsel %vm1642, %v1615, 0
  %v1706 = vsel %vm1642, %v1616, 0
  %v1709 = vsel %vm512, %v1635, 0
  %1711 = vmatpush.msra.mxu0 0.0
  %1712 = vmatpush.msra.mxu0 0.0
  %1713 = vmatpush.msra.mxu0 0.0
  %1714 = vmatpush.msra.mxu0 0.0
  %1715 = vmatpush.msra.mxu0 0.0
  %1716 = vmatpush.msra.mxu0 0.0
  %1717 = vmatpush.msra.mxu0 0.0
  %1718 = vmatpush.msra.mxu0 0.0
  %1719 = vmatpush.msra.mxu0 0.0
  %1720 = vmatpush.msra.mxu0 0.0
  %1721 = vmatpush.msra.mxu0 0.0
  %1722 = vmatpush.msra.mxu0 0.0
  %1723 = vmatpush.msra.mxu0 0.0
  %1724 = vmatpush.msra.mxu0 %v1709
  %1725 = vmatpush.msra.mxu0 %v1634
  %1726 = vmatpush.msra.mxu0 %v1633
  %1727 = vmatmul.f32.gmra.mxu0 %v1694
  %v1728 = vpop.f32.mrf.mxu0
  %v1729 = vadd.f32 %v1679, %v1728
  %1730 = vmatmul.f32.gmra.mxu0 %v1697
  %v1731 = vpop.f32.mrf.mxu0
  %v1732 = vadd.f32 %v1682, %v1731
  %1733 = vmatmul.f32.gmra.mxu0 %v1700
  %v1734 = vpop.f32.mrf.mxu0
  %v1735 = vadd.f32 %v1685, %v1734
  %1736 = vmatmul.f32.gmra.mxu0 %v1703
  %v1737 = vpop.f32.mrf.mxu0
  %v1738 = vadd.f32 %v1688, %v1737
  %1739 = vmatmul.f32.gmra.mxu0 %v1706
  %v1740 = vpop.f32.mrf.mxu0
  %v1741 = vadd.f32 %v1691, %v1740
  %1742 = vdwg.mxu0
  %v1746 = vrot.slane %v1729, 4
  %v1747 = vrot.slane %v1732, 4
  %v1748 = vsel %vm512, %v1746, %v1747
  %v1749 = vrot.slane %v1735, 4
  %v1750 = vsel %vm512, %v1747, %v1749
  %v1754 = vsel %vm512, 0.0, %v1746
  %v1755 = vsel %vm512, 0.0, %v1735
  %v1758 = vrot.slane %v1754, 1
  %v1759 = vrot.slane %v1748, 1
  %v1760 = vsel %vm525, %v1758, %v1759
  %v1761 = vrot.slane %v1750, 1
  %v1762 = vsel %vm525, %v1759, %v1761
  %v1763 = vrot.slane 0.0, 1
  %v1764 = vsel %vm525, %v1761, %v1763
  %v1768 = vrot.slane %v1755, 1
  %v1769 = vrot.slane %v1738, 1
  %v1770 = vsel %vm525, %v1768, %v1769
  %v1771 = vrot.slane %v1741, 1
  %v1772 = vsel %vm525, %v1769, %v1771
  %v1773 = vsel %vm525, %v1771, %v1763
  %v1774 = vrot.slane %v1754, 2
  %v1775 = vrot.slane %v1748, 2
  %v1776 = vsel %vm540, %v1774, %v1775
  %v1777 = vrot.slane %v1750, 2
  %v1778 = vsel %vm540, %v1775, %v1777
  %v1779 = vrot.slane 0.0, 2
  %v1780 = vsel %vm540, %v1777, %v1779
  %v1784 = vrot.slane %v1755, 2
  %v1785 = vrot.slane %v1738, 2
  %v1786 = vsel %vm540, %v1784, %v1785
  %v1787 = vrot.slane %v1741, 2
  %v1788 = vsel %vm540, %v1785, %v1787
  %v1789 = vsel %vm540, %v1787, %v1779
  %v1793 = vrot.slane %v1754, 3
  %v1794 = vrot.slane %v1748, 3
  %v1795 = vsel %vm317, %v1793, %v1794
  %v1796 = vrot.slane %v1750, 3
  %v1797 = vsel %vm317, %v1794, %v1796
  %v1798 = vrot.slane 0.0, 3
  %v1799 = vsel %vm317, %v1796, %v1798
  %v1800 = vrot.slane %v1755, 3
  %v1801 = vrot.slane %v1738, 3
  %v1802 = vsel %vm317, %v1800, %v1801
  %v1803 = vrot.slane %v1741, 3
  %v1804 = vsel %vm317, %v1801, %v1803
  %v1805 = vsel %vm317, %v1803, %v1798
  %v1806 = vrot.slane %v1754, 4
  %v1807 = vrot.slane %v1748, 4
  %v1808 = vsel %vm512, %v1806, %v1807
  %v1809 = vrot.slane %v1750, 4
  %v1810 = vsel %vm512, %v1807, %v1809
  %v1811 = vrot.slane 0.0, 4
  %v1812 = vsel %vm512, %v1809, %v1811
  %v1813 = vrot.slane %v1755, 4
  %v1814 = vrot.slane %v1738, 4
  %v1815 = vsel %vm512, %v1813, %v1814
  %v1816 = vrot.slane %v1741, 4
  %v1817 = vsel %vm512, %v1814, %v1816
  %v1818 = vsel %vm512, %v1816, %v1811
  %1819 = vrot.lane.b32.xlu0 %v1760, 64
  %v1820 = vpop.permute.xlu0 %1819
  %1821 = vrot.lane.b32.xlu0 %v1762, 64
  %v1822 = vpop.permute.xlu0 %1821
  %1823 = vrot.lane.b32.xlu0 %v1764, 64
  %v1824 = vpop.permute.xlu0 %1823
  %1825 = vrot.lane.b32.xlu0 %v1770, 64
  %v1826 = vpop.permute.xlu0 %1825
  %1827 = vrot.lane.b32.xlu0 %v1772, 64
  %v1828 = vpop.permute.xlu0 %1827
  %1829 = vrot.lane.b32.xlu0 %v1773, 64
  %v1830 = vpop.permute.xlu0 %1829
  %1837 = vrot.lane.b32.xlu0 %v1795, 64
  %v1838 = vpop.permute.xlu0 %1837
  %1839 = vrot.lane.b32.xlu0 %v1797, 64
  %v1840 = vpop.permute.xlu0 %1839
  %1841 = vrot.lane.b32.xlu0 %v1799, 64
  %v1842 = vpop.permute.xlu0 %1841
  %1843 = vrot.lane.b32.xlu0 %v1802, 64
  %v1844 = vpop.permute.xlu0 %1843
  %1845 = vrot.lane.b32.xlu0 %v1804, 64
  %v1846 = vpop.permute.xlu0 %1845
  %1847 = vrot.lane.b32.xlu0 %v1805, 64
  %v1848 = vpop.permute.xlu0 %1847
  %v1855 = vsel %vm416, %v1754, %v1820
  %v1856 = vsel %vm416, %v1748, %v1822
  %v1857 = vsel %vm416, %v1750, %v1824
  %v1858 = vsel %vm416, %v1755, %v1826
  %v1859 = vsel %vm416, %v1738, %v1828
  %v1860 = vsel %vm416, %v1741, %v1830
  %v1861 = vsel %vm416, %v1776, %v1838
  %v1862 = vsel %vm416, %v1778, %v1840
  %v1863 = vsel %vm416, %v1780, %v1842
  %v1864 = vsel %vm416, %v1786, %v1844
  %v1865 = vsel %vm416, %v1788, %v1846
  %v1866 = vsel %vm416, %v1789, %v1848
  %v1867 = vld [vmem:[%s20] sm:$0xff]
  %v1868 = vld [vmem:[%s20 + $0x8] sm:$0xff]
  %v1869 = vld [vmem:[%s20 + $0x10] sm:$0xff]
  %v1870 = vld [vmem:[%s20 + $0x18] sm:$0xff]
  %v1871 = vld [vmem:[%s20 + $0x20] sm:$0xff]
  %v1872 = vld [vmem:[%s20 + $0x28] sm:$0xff]
  %v1873 = vld [vmem:[%s20 + $0x30] sm:$0xff]
  %v1874 = vld [vmem:[%s20 + $0x38] sm:$0xff]
  %v1875 = vld [vmem:[%s20 + $0x40] sm:$0xff]
  %v1876 = vld [vmem:[%s20 + $0x48] sm:$0xff]
  %v1877 = vld [vmem:[%s20 + $0x50] sm:$0xff]
  %v1878 = vld [vmem:[%s20 + $0x58] sm:$0xff]
  %v1879 = vld [vmem:[%s20 + $0x60] sm:$0xff]
  %v1880 = vld [vmem:[%s20 + $0x68] sm:$0xff]
  %v1881 = vld [vmem:[%s20 + $0x70] sm:$0xff]
  %v1882 = vld [vmem:[%s20 + $0x78] sm:$0xff]
  %v1883 = vld [vmem:[%s20 + $0x80] sm:$0xff]
  %v1884 = vld [vmem:[%s20 + $0x88] sm:$0xff]
  %v1885 = vld [vmem:[%s20 + $0x90] sm:$0xff]
  %v1886 = vld [vmem:[%s20 + $0x98] sm:$0xff]
  %v1887 = vld [vmem:[%s20 + $0xa0] sm:$0xff]
  %v1888 = vld [vmem:[%s20 + $0xa8] sm:$0xff]
  %v1889 = vld [vmem:[%s20 + $0xb0] sm:$0xff]
  %v1890 = vld [vmem:[%s20 + $0xb8] sm:$0xff]
  %v1891 = vld [vmem:[%s20 + $0xc0] sm:$0xff]
  %v1892 = vld [vmem:[%s20 + $0xc8] sm:$0xff]
  %v1893 = vld [vmem:[%s20 + $0xd0] sm:$0xff]
  %v1894 = vld [vmem:[%s20 + $0xd8] sm:$0xff]
  %v1895 = vld [vmem:[%s20 + $0xe0] sm:$0xff]
  %v1896 = vld [vmem:[%s20 + $0xe8] sm:$0xff]
  %v1897 = vld [vmem:[%s20 + $0xf0] sm:$0xff]
  %v1898 = vld [vmem:[%s20 + $0xf8] sm:$0xff]
  %v1899 = vld [vmem:[%s20 + $0x100] sm:$0xff]
  %v1900 = vld [vmem:[%s20 + $0x108] sm:$0xff]
  %v1901 = vld [vmem:[%s20 + $0x110] sm:$0xff]
  %v1902 = vld [vmem:[%s20 + $0x118] sm:$0xff]
  %v1903 = vld [vmem:[%s20 + $0x120] sm:$0xff]
  %v1904 = vld [vmem:[%s20 + $0x128] sm:$0xff]
  %v1905 = vld [vmem:[%s20 + $0x130] sm:$0xff]
  %v1906 = vld [vmem:[%s20 + $0x138] sm:$0xff]
  %v1907 = vld [vmem:[%s21] sm:$0x1]
  %v1909 = vperm.slane %v1907, 0
  %v1911 = vsel %vm416, %v1808, 0
  %v1913 = vsel %vm416, %v1810, 0
  %v1915 = vsel %vm416, %v1812, 0
  %v1917 = vsel %vm416, %v1815, 0
  %v1919 = vsel %vm416, %v1817, 0
  %v1921 = vsel %vm416, %v1818, 0
  %1923 = vmatpush.msra.mxu0 %v1882
  %1924 = vmatpush.msra.mxu0 %v1881
  %1925 = vmatpush.msra.mxu0 %v1880
  %1926 = vmatpush.msra.mxu0 %v1879
  %1927 = vmatpush.msra.mxu0 %v1878
  %1928 = vmatpush.msra.mxu0 %v1877
  %1929 = vmatpush.msra.mxu0 %v1876
  %1930 = vmatpush.msra.mxu0 %v1875
  %1931 = vmatpush.msra.mxu0 %v1874
  %1932 = vmatpush.msra.mxu0 %v1873
  %1933 = vmatpush.msra.mxu0 %v1872
  %1934 = vmatpush.msra.mxu0 %v1871
  %1935 = vmatpush.msra.mxu0 %v1870
  %1936 = vmatpush.msra.mxu0 %v1869
  %1937 = vmatpush.msra.mxu0 %v1868
  %1938 = vmatpush.msra.mxu0 %v1867
  %1939 = vmatmul.f32.gmra.mxu0 %v1855
  %v1940 = vpop.f32.mrf.mxu0
  %v1941 = vadd.f32 %v1909, %v1940
  %1942 = vmatmul.f32.gmra.mxu0 %v1856
  %v1943 = vpop.f32.mrf.mxu0
  %v1944 = vadd.f32 %v1909, %v1943
  %1945 = vmatmul.f32.gmra.mxu0 %v1857
  %v1946 = vpop.f32.mrf.mxu0
  %v1947 = vadd.f32 %v1909, %v1946
  %1948 = vmatmul.f32.gmra.mxu0 %v1858
  %v1949 = vpop.f32.mrf.mxu0
  %v1950 = vadd.f32 %v1909, %v1949
  %1951 = vmatmul.f32.gmra.mxu0 %v1859
  %v1952 = vpop.f32.mrf.mxu0
  %v1953 = vadd.f32 %v1909, %v1952
  %1954 = vmatmul.f32.gmra.mxu0 %v1860
  %v1955 = vpop.f32.mrf.mxu0
  %v1956 = vadd.f32 %v1909, %v1955
  %1957 = vdwg.mxu0
  %1958 = vmatpush.msra.mxu0 %v1898
  %1959 = vmatpush.msra.mxu0 %v1897
  %1960 = vmatpush.msra.mxu0 %v1896
  %1961 = vmatpush.msra.mxu0 %v1895
  %1962 = vmatpush.msra.mxu0 %v1894
  %1963 = vmatpush.msra.mxu0 %v1893
  %1964 = vmatpush.msra.mxu0 %v1892
  %1965 = vmatpush.msra.mxu0 %v1891
  %1966 = vmatpush.msra.mxu0 %v1890
  %1967 = vmatpush.msra.mxu0 %v1889
  %1968 = vmatpush.msra.mxu0 %v1888
  %1969 = vmatpush.msra.mxu0 %v1887
  %1970 = vmatpush.msra.mxu0 %v1886
  %1971 = vmatpush.msra.mxu0 %v1885
  %1972 = vmatpush.msra.mxu0 %v1884
  %1973 = vmatpush.msra.mxu0 %v1883
  %1974 = vmatmul.f32.gmra.mxu0 %v1861
  %v1975 = vpop.f32.mrf.mxu0
  %v1976 = vadd.f32 %v1941, %v1975
  %1977 = vmatmul.f32.gmra.mxu0 %v1862
  %v1978 = vpop.f32.mrf.mxu0
  %v1979 = vadd.f32 %v1944, %v1978
  %1980 = vmatmul.f32.gmra.mxu0 %v1863
  %v1981 = vpop.f32.mrf.mxu0
  %v1982 = vadd.f32 %v1947, %v1981
  %1983 = vmatmul.f32.gmra.mxu0 %v1864
  %v1984 = vpop.f32.mrf.mxu0
  %v1985 = vadd.f32 %v1950, %v1984
  %1986 = vmatmul.f32.gmra.mxu0 %v1865
  %v1987 = vpop.f32.mrf.mxu0
  %v1988 = vadd.f32 %v1953, %v1987
  %1989 = vmatmul.f32.gmra.mxu0 %v1866
  %v1990 = vpop.f32.mrf.mxu0
  %v1991 = vadd.f32 %v1956, %v1990
  %1992 = vdwg.mxu0
  %1993 = vmatpush.msra.mxu0 0.0
  %1994 = vmatpush.msra.mxu0 0.0
  %1995 = vmatpush.msra.mxu0 0.0
  %1996 = vmatpush.msra.mxu0 0.0
  %1997 = vmatpush.msra.mxu0 0.0
  %1998 = vmatpush.msra.mxu0 0.0
  %1999 = vmatpush.msra.mxu0 0.0
  %2000 = vmatpush.msra.mxu0 0.0
  %2001 = vmatpush.msra.mxu0 %v1906
  %2002 = vmatpush.msra.mxu0 %v1905
  %2003 = vmatpush.msra.mxu0 %v1904
  %2004 = vmatpush.msra.mxu0 %v1903
  %2005 = vmatpush.msra.mxu0 %v1902
  %2006 = vmatpush.msra.mxu0 %v1901
  %2007 = vmatpush.msra.mxu0 %v1900
  %2008 = vmatpush.msra.mxu0 %v1899
  %2009 = vmatmul.f32.gmra.mxu0 %v1911
  %v2010 = vpop.f32.mrf.mxu0
  %v2011 = vadd.f32 %v1976, %v2010
  %2012 = vmatmul.f32.gmra.mxu0 %v1913
  %v2013 = vpop.f32.mrf.mxu0
  %v2014 = vadd.f32 %v1979, %v2013
  %2015 = vmatmul.f32.gmra.mxu0 %v1915
  %v2016 = vpop.f32.mrf.mxu0
  %v2017 = vadd.f32 %v1982, %v2016
  %2018 = vmatmul.f32.gmra.mxu0 %v1917
  %v2019 = vpop.f32.mrf.mxu0
  %v2020 = vadd.f32 %v1985, %v2019
  %2021 = vmatmul.f32.gmra.mxu0 %v1919
  %v2022 = vpop.f32.mrf.mxu0
  %v2023 = vadd.f32 %v1988, %v2022
  %2024 = vmatmul.f32.gmra.mxu0 %v1921
  %v2025 = vpop.f32.mrf.mxu0
  %v2026 = vadd.f32 %v1991, %v2025
  %2027 = vdwg.mxu0
  %vm2028 = vcmp.ge.f32.partialorder %v2011, 0.0
  %vm2029 = vcmp.ge.f32.partialorder %v2014, 0.0
  %vm2030 = vcmp.ge.f32.partialorder %v2017, 0.0
  %vm2031 = vcmp.ge.f32.partialorder %v2020, 0.0
  %vm2032 = vcmp.ge.f32.partialorder %v2023, 0.0
  %vm2033 = vcmp.ge.f32.partialorder %v2026, 0.0
  %v2034 = vmul.f32 %v2011, 0.01
  %v2035 = vmul.f32 %v2014, 0.01
  %v2036 = vmul.f32 %v2017, 0.01
  %v2037 = vmul.f32 %v2020, 0.01
  %v2038 = vmul.f32 %v2023, 0.01
  %v2039 = vmul.f32 %v2026, 0.01
  %v2040 = vsel %vm2028, %v2011, %v2034
  %v2041 = vsel %vm2029, %v2014, %v2035
  %v2042 = vsel %vm2030, %v2017, %v2036
  %v2043 = vsel %vm2031, %v2020, %v2037
  %v2044 = vsel %vm2032, %v2023, %v2038
  %v2045 = vsel %vm2033, %v2026, %v2039
  %v2046 = vadd.s32 %v774, 40
  %v2047 = vadd.s32 %v774, 48
  %v2048 = vadd.s32 %v774, 56
  %v2049 = vadd.s32 %v774, 64
  %v2050 = vadd.s32 %v774, 72
  %v2051 = vadd.s32 %v774, 80
  %v2052 = vadd.s32 %v774, 88
  %vm2053 = vcmp.eq.s32.totalorder %v2046, %v1601
  %vm2054 = vcmp.eq.s32.totalorder %v2047, %v1601
  %vm2055 = vcmp.eq.s32.totalorder %v2048, %v1601
  %vm2056 = vcmp.eq.s32.totalorder %v2049, %v1601
  %vm2057 = vcmp.eq.s32.totalorder %v2050, %v1601
  %vm2058 = vcmp.eq.s32.totalorder %v2051, %v1601
  %vm2059 = vcmp.eq.s32.totalorder %v2052, %v1601
  %v2060 = vsel %vm2053, 1, 0
  %v2061 = vsel %vm2054, 1, 0
  %v2062 = vsel %vm2055, 1, 0
  %v2063 = vsel %vm2056, 1, 0
  %v2064 = vsel %vm2057, 1, 0
  %v2065 = vsel %vm2058, 1, 0
  %v2066 = vsel %vm2059, 1, 0
  %v2067 = vcvt.s32.f32 %v2060
  %v2068 = vcvt.s32.f32 %v2061
  %v2069 = vcvt.s32.f32 %v2062
  %v2070 = vcvt.s32.f32 %v2063
  %v2071 = vcvt.s32.f32 %v2064
  %v2072 = vcvt.s32.f32 %v2065
  %v2073 = vcvt.s32.f32 %v2066
  %vm2074 = vcmp.eq.s32.totalorder %v2046, %v1617
  %vm2075 = vcmp.eq.s32.totalorder %v2047, %v1617
  %vm2076 = vcmp.eq.s32.totalorder %v2048, %v1617
  %vm2077 = vcmp.eq.s32.totalorder %v2049, %v1617
  %vm2078 = vcmp.eq.s32.totalorder %v2050, %v1617
  %vm2079 = vcmp.eq.s32.totalorder %v2051, %v1617
  %vm2080 = vcmp.eq.s32.totalorder %v2052, %v1617
  %v2081 = vsel %vm2074, 1, 0
  %v2082 = vsel %vm2075, 1, 0
  %v2083 = vsel %vm2076, 1, 0
  %v2084 = vsel %vm2077, 1, 0
  %v2085 = vsel %vm2078, 1, 0
  %v2086 = vsel %vm2079, 1, 0
  %v2087 = vsel %vm2080, 1, 0
  %v2088 = vcvt.s32.f32 %v2081
  %v2089 = vcvt.s32.f32 %v2082
  %v2090 = vcvt.s32.f32 %v2083
  %v2091 = vcvt.s32.f32 %v2084
  %v2092 = vcvt.s32.f32 %v2085
  %v2093 = vcvt.s32.f32 %v2086
  %v2094 = vcvt.s32.f32 %v2087
  %v2095 = vmul.f32 %v2040, %v386
  %v2096 = vmul.f32 %v2041, %v387
  %v2097 = vmul.f32 %v2042, %v388
  %v2098 = vmul.f32 %v2043, %v389
  %v2099 = vmul.f32 %v2044, %v390
  %v2100 = vmul.f32 %v2045, %v391
  %v2101 = vsub.f32 1.0, %v386
  %v2102 = vsub.f32 1.0, %v387
  %v2103 = vsub.f32 1.0, %v388
  %v2104 = vsub.f32 1.0, %v389
  %v2105 = vsub.f32 1.0, %v390
  %v2106 = vsub.f32 1.0, %v391
  %v2107 = vmul.f32 %v2040, %v2101
  %v2108 = vmul.f32 %v2041, %v2102
  %v2109 = vmul.f32 %v2042, %v2103
  %v2110 = vmul.f32 %v2043, %v2104
  %v2111 = vmul.f32 %v2044, %v2105
  %v2112 = vmul.f32 %v2045, %v2106
  %vm2113 = vcmask 392192
  %v2114 = vsel %vm2113, %v1628, 0
  %v2116 = vsel %vm2113, %v1629, 0
  %v2118 = vsel %vm2113, %v1630, 0
  %v2120 = vsel %vm2113, %v1631, 0
  %v2122 = vsel %vm2113, %v1632, 0
  %v2125 = vsel %vm2113, %v2088, 0
  %v2128 = vsel %vm2113, %v2089, 0
  %v2131 = vsel %vm2113, %v2090, 0
  %v2134 = vsel %vm2113, %v2091, 0
  %v2137 = vsel %vm2113, %v2092, 0
  %v2140 = vsel %vm2113, %v2093, 0
  %v2143 = vsel %vm2113, %v2094, 0
  %2145 = vmatpush.msra.mxu0 0.0
  %2146 = vmatpush.msra.mxu0 0.0
  %2147 = vmatpush.msra.mxu0 0.0
  %2148 = vmatpush.msra.mxu0 0.0
  %2149 = vmatpush.msra.mxu0 0.0
  %2150 = vmatpush.msra.mxu0 0.0
  %2151 = vmatpush.msra.mxu0 0.0
  %2152 = vmatpush.msra.mxu0 0.0
  %2153 = vmatpush.msra.mxu0 0.0
  %2154 = vmatpush.msra.mxu0 0.0
  %2155 = vmatpush.msra.mxu0 %v2112
  %2156 = vmatpush.msra.mxu0 %v2111
  %2157 = vmatpush.msra.mxu0 %v2110
  %2158 = vmatpush.msra.mxu0 %v2109
  %2159 = vmatpush.msra.mxu0 %v2108
  %2160 = vmatpush.msra.mxu0 %v2107
  %2161 = vmatmul.f32.gmra.mxu0 %v2114
  %v2162 = vpop.f32.mrf.mxu0
  %v2163 = vadd.f32 0.0, %v2162
  %2164 = vmatmul.f32.gmra.mxu0 %v2116
  %v2165 = vpop.f32.mrf.mxu0
  %v2166 = vadd.f32 0.0, %v2165
  %2167 = vmatmul.f32.gmra.mxu0 %v2118
  %v2168 = vpop.f32.mrf.mxu0
  %v2169 = vadd.f32 0.0, %v2168
  %2170 = vmatmul.f32.gmra.mxu0 %v2120
  %v2171 = vpop.f32.mrf.mxu0
  %v2172 = vadd.f32 0.0, %v2171
  %2173 = vmatmul.f32.gmra.mxu0 %v2122
  %v2174 = vpop.f32.mrf.mxu0
  %v2175 = vadd.f32 0.0, %v2174
  %2176 = vmatmul.f32.gmra.mxu0 %v2125
  %v2177 = vpop.f32.mrf.mxu0
  %v2178 = vadd.f32 0.0, %v2177
  %2179 = vmatmul.f32.gmra.mxu0 %v2128
  %v2180 = vpop.f32.mrf.mxu0
  %v2181 = vadd.f32 0.0, %v2180
  %2182 = vmatmul.f32.gmra.mxu0 %v2131
  %v2183 = vpop.f32.mrf.mxu0
  %v2184 = vadd.f32 0.0, %v2183
  %2185 = vmatmul.f32.gmra.mxu0 %v2134
  %v2186 = vpop.f32.mrf.mxu0
  %v2187 = vadd.f32 0.0, %v2186
  %2188 = vmatmul.f32.gmra.mxu0 %v2137
  %v2189 = vpop.f32.mrf.mxu0
  %v2190 = vadd.f32 0.0, %v2189
  %2191 = vmatmul.f32.gmra.mxu0 %v2140
  %v2192 = vpop.f32.mrf.mxu0
  %v2193 = vadd.f32 0.0, %v2192
  %2194 = vmatmul.f32.gmra.mxu0 %v2143
  %v2195 = vpop.f32.mrf.mxu0
  %v2196 = vadd.f32 0.0, %v2195
  %2197 = vdwg.mxu0
  %v2198 = vsel %vm2113, %v1612, 0
  %v2200 = vsel %vm2113, %v1613, 0
  %v2202 = vsel %vm2113, %v1614, 0
  %v2204 = vsel %vm2113, %v1615, 0
  %v2206 = vsel %vm2113, %v1616, 0
  %v2209 = vsel %vm2113, %v2067, 0
  %v2212 = vsel %vm2113, %v2068, 0
  %v2215 = vsel %vm2113, %v2069, 0
  %v2218 = vsel %vm2113, %v2070, 0
  %v2221 = vsel %vm2113, %v2071, 0
  %v2224 = vsel %vm2113, %v2072, 0
  %v2227 = vsel %vm2113, %v2073, 0
  %2229 = vmatpush.msra.mxu0 0.0
  %2230 = vmatpush.msra.mxu0 0.0
  %2231 = vmatpush.msra.mxu0 0.0
  %2232 = vmatpush.msra.mxu0 0.0
  %2233 = vmatpush.msra.mxu0 0.0
  %2234 = vmatpush.msra.mxu0 0.0
  %2235 = vmatpush.msra.mxu0 0.0
  %2236 = vmatpush.msra.mxu0 0.0
  %2237 = vmatpush.msra.mxu0 0.0
  %2238 = vmatpush.msra.mxu0 0.0
  %2239 = vmatpush.msra.mxu0 %v2100
  %2240 = vmatpush.msra.mxu0 %v2099
  %2241 = vmatpush.msra.mxu0 %v2098
  %2242 = vmatpush.msra.mxu0 %v2097
  %2243 = vmatpush.msra.mxu0 %v2096
  %2244 = vmatpush.msra.mxu0 %v2095
  %2245 = vmatmul.f32.gmra.mxu0 %v2198
  %v2246 = vpop.f32.mrf.mxu0
  %v2247 = vadd.f32 %v2163, %v2246
  %2248 = vmatmul.f32.gmra.mxu0 %v2200
  %v2249 = vpop.f32.mrf.mxu0
  %v2250 = vadd.f32 %v2166, %v2249
  %2251 = vmatmul.f32.gmra.mxu0 %v2202
  %v2252 = vpop.f32.mrf.mxu0
  %v2253 = vadd.f32 %v2169, %v2252
  %2254 = vmatmul.f32.gmra.mxu0 %v2204
  %v2255 = vpop.f32.mrf.mxu0
  %v2256 = vadd.f32 %v2172, %v2255
  %2257 = vmatmul.f32.gmra.mxu0 %v2206
  %v2258 = vpop.f32.mrf.mxu0
  %v2259 = vadd.f32 %v2175, %v2258
  %2260 = vmatmul.f32.gmra.mxu0 %v2209
  %v2261 = vpop.f32.mrf.mxu0
  %v2262 = vadd.f32 %v2178, %v2261
  %2263 = vmatmul.f32.gmra.mxu0 %v2212
  %v2264 = vpop.f32.mrf.mxu0
  %v2265 = vadd.f32 %v2181, %v2264
  %2266 = vmatmul.f32.gmra.mxu0 %v2215
  %v2267 = vpop.f32.mrf.mxu0
  %v2268 = vadd.f32 %v2184, %v2267
  %2269 = vmatmul.f32.gmra.mxu0 %v2218
  %v2270 = vpop.f32.mrf.mxu0
  %v2271 = vadd.f32 %v2187, %v2270
  %2272 = vmatmul.f32.gmra.mxu0 %v2221
  %v2273 = vpop.f32.mrf.mxu0
  %v2274 = vadd.f32 %v2190, %v2273
  %2275 = vmatmul.f32.gmra.mxu0 %v2224
  %v2276 = vpop.f32.mrf.mxu0
  %v2277 = vadd.f32 %v2193, %v2276
  %2278 = vmatmul.f32.gmra.mxu0 %v2227
  %v2279 = vpop.f32.mrf.mxu0
  %v2280 = vadd.f32 %v2196, %v2279
  %2281 = vdwg.mxu0
  %v2288 = vrot.slane %v2247, 6
  %v2289 = vrot.slane %v2250, 6
  %v2290 = vsel %vm549, %v2288, %v2289
  %v2291 = vrot.slane %v2253, 6
  %v2292 = vsel %vm549, %v2289, %v2291
  %v2293 = vrot.slane %v2256, 6
  %v2294 = vsel %vm549, %v2291, %v2293
  %v2295 = vrot.slane %v2259, 6
  %v2296 = vsel %vm549, %v2293, %v2295
  %v2297 = vrot.slane %v2262, 6
  %v2298 = vsel %vm549, %v2295, %v2297
  %v2301 = vsel %vm549, 0.0, %v2288
  %v2302 = vsel %vm549, %v2297, 0.0
  %v2309 = vrot.slane %v2265, 6
  %v2310 = vrot.slane %v2268, 6
  %v2311 = vsel %vm549, %v2309, %v2310
  %v2312 = vrot.slane %v2271, 6
  %v2313 = vsel %vm549, %v2310, %v2312
  %v2314 = vrot.slane %v2274, 6
  %v2315 = vsel %vm549, %v2312, %v2314
  %v2316 = vrot.slane %v2277, 6
  %v2317 = vsel %vm549, %v2314, %v2316
  %v2318 = vrot.slane %v2280, 6
  %v2319 = vsel %vm549, %v2316, %v2318
  %v2322 = vsel %vm549, 0.0, %v2309
  %v2323 = vsel %vm549, %v2318, 0.0
  %v2324 = vld [vmem:[#allocation2] sm:$0x1]
  %v2327 = vrot.slane %v2322, 6
  %v2328 = vrot.slane %v2311, 6
  %v2329 = vsel %vm549, %v2327, %v2328
  %v2330 = vrot.slane %v2313, 6
  %v2331 = vsel %vm549, %v2328, %v2330
  %v2332 = vrot.slane %v2315, 6
  %v2333 = vsel %vm549, %v2330, %v2332
  %v2334 = vrot.slane %v2317, 6
  %v2335 = vsel %vm549, %v2332, %v2334
  %v2336 = vrot.slane %v2319, 6
  %v2337 = vsel %vm549, %v2334, %v2336
  %v2338 = vrot.slane %v2323, 6
  %v2339 = vsel %vm549, %v2336, %v2338
  %v2341 = vsel %vm549, %v2302, %v2327
  %v2342 = vld [vmem:[%s22] sm:$0xff]
  %v2343 = vld [vmem:[%s22 + $0x8] sm:$0xff]
  %v2344 = vld [vmem:[%s22 + $0x10] sm:$0xff]
  %v2345 = vld [vmem:[%s22 + $0x18] sm:$0xff]
  %v2346 = vld [vmem:[%s22 + $0x20] sm:$0xff]
  %v2347 = vld [vmem:[%s22 + $0x28] sm:$0xff]
  %v2348 = vld [vmem:[%s22 + $0x30] sm:$0xff]
  %v2349 = vld [vmem:[%s22 + $0x38] sm:$0xff]
  %v2351 = vsel %vm416, %v2301, 0
  %v2353 = vsel %vm416, %v2290, 0
  %v2355 = vsel %vm416, %v2292, 0
  %v2357 = vsel %vm416, %v2294, 0
  %v2359 = vsel %vm416, %v2296, 0
  %v2361 = vsel %vm416, %v2298, 0
  %v2364 = vsel %vm416, %v2341, 0
  %v2366 = vsel %vm416, %v2329, 0
  %v2368 = vsel %vm416, %v2331, 0
  %v2370 = vsel %vm416, %v2333, 0
  %v2372 = vsel %vm416, %v2335, 0
  %v2374 = vsel %vm416, %v2337, 0
  %v2376 = vsel %vm416, %v2339, 0
  %2378 = vmatpush.msra.mxu0 0.0
  %2379 = vmatpush.msra.mxu0 0.0
  %2380 = vmatpush.msra.mxu0 0.0
  %2381 = vmatpush.msra.mxu0 0.0
  %2382 = vmatpush.msra.mxu0 0.0
  %2383 = vmatpush.msra.mxu0 0.0
  %2384 = vmatpush.msra.mxu0 0.0
  %2385 = vmatpush.msra.mxu0 0.0
  %2386 = vmatpush.msra.mxu0 %v2349
  %2387 = vmatpush.msra.mxu0 %v2348
  %2388 = vmatpush.msra.mxu0 %v2347
  %2389 = vmatpush.msra.mxu0 %v2346
  %2390 = vmatpush.msra.mxu0 %v2345
  %2391 = vmatpush.msra.mxu0 %v2344
  %2392 = vmatpush.msra.mxu0 %v2343
  %2393 = vmatpush.msra.mxu0 %v2342
  %2394 = vmatmul.f32.gmra.mxu0 %v2351
  %v2395 = vpop.f32.mrf.mxu0
  %v2396 = vadd.f32 0.0, %v2395
  %2397 = vmatmul.f32.gmra.mxu0 %v2353
  %v2398 = vpop.f32.mrf.mxu0
  %v2399 = vadd.f32 0.0, %v2398
  %2400 = vmatmul.f32.gmra.mxu0 %v2355
  %v2401 = vpop.f32.mrf.mxu0
  %v2402 = vadd.f32 0.0, %v2401
  %2403 = vmatmul.f32.gmra.mxu0 %v2357
  %v2404 = vpop.f32.mrf.mxu0
  %v2405 = vadd.f32 0.0, %v2404
  %2406 = vmatmul.f32.gmra.mxu0 %v2359
  %v2407 = vpop.f32.mrf.mxu0
  %v2408 = vadd.f32 0.0, %v2407
  %2409 = vmatmul.f32.gmra.mxu0 %v2361
  %v2410 = vpop.f32.mrf.mxu0
  %v2411 = vadd.f32 0.0, %v2410
  %2412 = vmatmul.f32.gmra.mxu0 %v2364
  %v2413 = vpop.f32.mrf.mxu0
  %v2414 = vadd.f32 0.0, %v2413
  %2415 = vmatmul.f32.gmra.mxu0 %v2366
  %v2416 = vpop.f32.mrf.mxu0
  %v2417 = vadd.f32 0.0, %v2416
  %2418 = vmatmul.f32.gmra.mxu0 %v2368
  %v2419 = vpop.f32.mrf.mxu0
  %v2420 = vadd.f32 0.0, %v2419
  %2421 = vmatmul.f32.gmra.mxu0 %v2370
  %v2422 = vpop.f32.mrf.mxu0
  %v2423 = vadd.f32 0.0, %v2422
  %2424 = vmatmul.f32.gmra.mxu0 %v2372
  %v2425 = vpop.f32.mrf.mxu0
  %v2426 = vadd.f32 0.0, %v2425
  %2427 = vmatmul.f32.gmra.mxu0 %v2374
  %v2428 = vpop.f32.mrf.mxu0
  %v2429 = vadd.f32 0.0, %v2428
  %2430 = vmatmul.f32.gmra.mxu0 %v2376
  %v2431 = vpop.f32.mrf.mxu0
  %v2432 = vadd.f32 0.0, %v2431
  %2433 = vdwg.mxu0
  %v2435 = vperm.slane %v2324, 0
  %2436 = vset.pattern.permute.xlu0 0
  %2437 = vperm.xlu0 %2436, %v2435
  %v2438 = vpop.permute.xlu0 %2437
  %v2440 = vadd.f32 %v2438, %v2396
  %v2441 = vadd.f32 %v2438, %v2399
  %v2442 = vadd.f32 %v2438, %v2402
  %v2443 = vadd.f32 %v2438, %v2405
  %v2444 = vadd.f32 %v2438, %v2408
  %v2445 = vadd.f32 %v2438, %v2411
  %v2446 = vadd.f32 %v2438, %v2414
  %v2447 = vadd.f32 %v2438, %v2417
  %v2448 = vadd.f32 %v2438, %v2420
  %v2449 = vadd.f32 %v2438, %v2423
  %v2450 = vadd.f32 %v2438, %v2426
  %v2451 = vadd.f32 %v2438, %v2429
  %v2452 = vadd.f32 %v2438, %v2432
  %v2454 = vrot.slane %v2301, 1
  %v2455 = vrot.slane %v2290, 1
  %v2456 = vsel %vm525, %v2454, %v2455
  %v2457 = vrot.slane %v2292, 1
  %v2458 = vsel %vm525, %v2455, %v2457
  %v2459 = vrot.slane %v2294, 1
  %v2460 = vsel %vm525, %v2457, %v2459
  %v2461 = vrot.slane %v2296, 1
  %v2462 = vsel %vm525, %v2459, %v2461
  %v2463 = vrot.slane %v2298, 1
  %v2464 = vsel %vm525, %v2461, %v2463
  %v2465 = vrot.slane %v2302, 1
  %v2466 = vsel %vm525, %v2463, %v2465
  %v2468 = vrot.slane %v2322, 7
  %v2469 = vrot.slane %v2311, 7
  %v2470 = vsel %vm565, %v2468, %v2469
  %v2471 = vrot.slane %v2313, 7
  %v2472 = vsel %vm565, %v2469, %v2471
  %v2473 = vrot.slane %v2315, 7
  %v2474 = vsel %vm565, %v2471, %v2473
  %v2475 = vrot.slane %v2317, 7
  %v2476 = vsel %vm565, %v2473, %v2475
  %v2477 = vrot.slane %v2319, 7
  %v2478 = vsel %vm565, %v2475, %v2477
  %v2479 = vrot.slane %v2323, 7
  %v2480 = vsel %vm565, %v2477, %v2479
  %v2482 = vsel %vm549, %v2465, %v2468
  %s2483 = scalar_lea.vmem %s22, 64
  %v2484 = vld [vmem:[%s2483] sm:$0xff]
  %v2485 = vld [vmem:[%s2483 + $0x8] sm:$0xff]
  %v2486 = vld [vmem:[%s2483 + $0x10] sm:$0xff]
  %v2487 = vld [vmem:[%s2483 + $0x18] sm:$0xff]
  %v2488 = vld [vmem:[%s2483 + $0x20] sm:$0xff]
  %v2489 = vld [vmem:[%s2483 + $0x28] sm:$0xff]
  %v2490 = vld [vmem:[%s2483 + $0x30] sm:$0xff]
  %v2491 = vld [vmem:[%s2483 + $0x38] sm:$0xff]
  %v2492 = vsel %vm416, %v2456, 0
  %v2494 = vsel %vm416, %v2458, 0
  %v2496 = vsel %vm416, %v2460, 0
  %v2498 = vsel %vm416, %v2462, 0
  %v2500 = vsel %vm416, %v2464, 0
  %v2502 = vsel %vm416, %v2466, 0
  %v2505 = vsel %vm416, %v2482, 0
  %v2507 = vsel %vm416, %v2470, 0
  %v2509 = vsel %vm416, %v2472, 0
  %v2511 = vsel %vm416, %v2474, 0
  %v2513 = vsel %vm416, %v2476, 0
  %v2515 = vsel %vm416, %v2478, 0
  %v2517 = vsel %vm416, %v2480, 0
  %2519 = vmatpush.msra.mxu0 0.0
  %2520 = vmatpush.msra.mxu0 0.0
  %2521 = vmatpush.msra.mxu0 0.0
  %2522 = vmatpush.msra.mxu0 0.0
  %2523 = vmatpush.msra.mxu0 0.0
  %2524 = vmatpush.msra.mxu0 0.0
  %2525 = vmatpush.msra.mxu0 0.0
  %2526 = vmatpush.msra.mxu0 0.0
  %2527 = vmatpush.msra.mxu0 %v2491
  %2528 = vmatpush.msra.mxu0 %v2490
  %2529 = vmatpush.msra.mxu0 %v2489
  %2530 = vmatpush.msra.mxu0 %v2488
  %2531 = vmatpush.msra.mxu0 %v2487
  %2532 = vmatpush.msra.mxu0 %v2486
  %2533 = vmatpush.msra.mxu0 %v2485
  %2534 = vmatpush.msra.mxu0 %v2484
  %2535 = vmatmul.f32.gmra.mxu0 %v2492
  %v2536 = vpop.f32.mrf.mxu0
  %v2537 = vadd.f32 0.0, %v2536
  %2538 = vmatmul.f32.gmra.mxu0 %v2494
  %v2539 = vpop.f32.mrf.mxu0
  %v2540 = vadd.f32 0.0, %v2539
  %2541 = vmatmul.f32.gmra.mxu0 %v2496
  %v2542 = vpop.f32.mrf.mxu0
  %v2543 = vadd.f32 0.0, %v2542
  %2544 = vmatmul.f32.gmra.mxu0 %v2498
  %v2545 = vpop.f32.mrf.mxu0
  %v2546 = vadd.f32 0.0, %v2545
  %2547 = vmatmul.f32.gmra.mxu0 %v2500
  %v2548 = vpop.f32.mrf.mxu0
  %v2549 = vadd.f32 0.0, %v2548
  %2550 = vmatmul.f32.gmra.mxu0 %v2502
  %v2551 = vpop.f32.mrf.mxu0
  %v2552 = vadd.f32 0.0, %v2551
  %2553 = vmatmul.f32.gmra.mxu0 %v2505
  %v2554 = vpop.f32.mrf.mxu0
  %v2555 = vadd.f32 0.0, %v2554
  %2556 = vmatmul.f32.gmra.mxu0 %v2507
  %v2557 = vpop.f32.mrf.mxu0
  %v2558 = vadd.f32 0.0, %v2557
  %2559 = vmatmul.f32.gmra.mxu0 %v2509
  %v2560 = vpop.f32.mrf.mxu0
  %v2561 = vadd.f32 0.0, %v2560
  %2562 = vmatmul.f32.gmra.mxu0 %v2511
  %v2563 = vpop.f32.mrf.mxu0
  %v2564 = vadd.f32 0.0, %v2563
  %2565 = vmatmul.f32.gmra.mxu0 %v2513
  %v2566 = vpop.f32.mrf.mxu0
  %v2567 = vadd.f32 0.0, %v2566
  %2568 = vmatmul.f32.gmra.mxu0 %v2515
  %v2569 = vpop.f32.mrf.mxu0
  %v2570 = vadd.f32 0.0, %v2569
  %2571 = vmatmul.f32.gmra.mxu0 %v2517
  %v2572 = vpop.f32.mrf.mxu0
  %v2573 = vadd.f32 0.0, %v2572
  %2574 = vdwg.mxu0
  %v2575 = vadd.f32 %v2440, %v2537
  %v2576 = vadd.f32 %v2441, %v2540
  %v2577 = vadd.f32 %v2442, %v2543
  %v2578 = vadd.f32 %v2443, %v2546
  %v2579 = vadd.f32 %v2444, %v2549
  %v2580 = vadd.f32 %v2445, %v2552
  %v2581 = vadd.f32 %v2446, %v2555
  %v2582 = vadd.f32 %v2447, %v2558
  %v2583 = vadd.f32 %v2448, %v2561
  %v2584 = vadd.f32 %v2449, %v2564
  %v2585 = vadd.f32 %v2450, %v2567
  %v2586 = vadd.f32 %v2451, %v2570
  %v2587 = vadd.f32 %v2452, %v2573
  %v2588 = vrot.slane %v2301, 2
  %v2589 = vrot.slane %v2290, 2
  %v2590 = vsel %vm540, %v2588, %v2589
  %v2591 = vrot.slane %v2292, 2
  %v2592 = vsel %vm540, %v2589, %v2591
  %v2593 = vrot.slane %v2294, 2
  %v2594 = vsel %vm540, %v2591, %v2593
  %v2595 = vrot.slane %v2296, 2
  %v2596 = vsel %vm540, %v2593, %v2595
  %v2597 = vrot.slane %v2298, 2
  %v2598 = vsel %vm540, %v2595, %v2597
  %v2599 = vrot.slane %v2302, 2
  %v2600 = vsel %vm540, %v2597, %v2599
  %v2602 = vsel %vm549, %v2599, %v2322
  %s2603 = scalar_lea.vmem %s22, 128
  %v2604 = vld [vmem:[%s2603] sm:$0xff]
  %v2605 = vld [vmem:[%s2603 + $0x8] sm:$0xff]
  %v2606 = vld [vmem:[%s2603 + $0x10] sm:$0xff]
  %v2607 = vld [vmem:[%s2603 + $0x18] sm:$0xff]
  %v2608 = vld [vmem:[%s2603 + $0x20] sm:$0xff]
  %v2609 = vld [vmem:[%s2603 + $0x28] sm:$0xff]
  %v2610 = vld [vmem:[%s2603 + $0x30] sm:$0xff]
  %v2611 = vld [vmem:[%s2603 + $0x38] sm:$0xff]
  %v2612 = vsel %vm416, %v2590, 0
  %v2614 = vsel %vm416, %v2592, 0
  %v2616 = vsel %vm416, %v2594, 0
  %v2618 = vsel %vm416, %v2596, 0
  %v2620 = vsel %vm416, %v2598, 0
  %v2622 = vsel %vm416, %v2600, 0
  %v2625 = vsel %vm416, %v2602, 0
  %v2627 = vsel %vm416, %v2311, 0
  %v2629 = vsel %vm416, %v2313, 0
  %v2631 = vsel %vm416, %v2315, 0
  %v2633 = vsel %vm416, %v2317, 0
  %v2635 = vsel %vm416, %v2319, 0
  %v2637 = vsel %vm416, %v2323, 0
  %2639 = vmatpush.msra.mxu0 0.0
  %2640 = vmatpush.msra.mxu0 0.0
  %2641 = vmatpush.msra.mxu0 0.0
  %2642 = vmatpush.msra.mxu0 0.0
  %2643 = vmatpush.msra.mxu0 0.0
  %2644 = vmatpush.msra.mxu0 0.0
  %2645 = vmatpush.msra.mxu0 0.0
  %2646 = vmatpush.msra.mxu0 0.0
  %2647 = vmatpush.msra.mxu0 %v2611
  %2648 = vmatpush.msra.mxu0 %v2610
  %2649 = vmatpush.msra.mxu0 %v2609
  %2650 = vmatpush.msra.mxu0 %v2608
  %2651 = vmatpush.msra.mxu0 %v2607
  %2652 = vmatpush.msra.mxu0 %v2606
  %2653 = vmatpush.msra.mxu0 %v2605
  %2654 = vmatpush.msra.mxu0 %v2604
  %2655 = vmatmul.f32.gmra.mxu0 %v2612
  %v2656 = vpop.f32.mrf.mxu0
  %v2657 = vadd.f32 0.0, %v2656
  %2658 = vmatmul.f32.gmra.mxu0 %v2614
  %v2659 = vpop.f32.mrf.mxu0
  %v2660 = vadd.f32 0.0, %v2659
  %2661 = vmatmul.f32.gmra.mxu0 %v2616
  %v2662 = vpop.f32.mrf.mxu0
  %v2663 = vadd.f32 0.0, %v2662
  %2664 = vmatmul.f32.gmra.mxu0 %v2618
  %v2665 = vpop.f32.mrf.mxu0
  %v2666 = vadd.f32 0.0, %v2665
  %2667 = vmatmul.f32.gmra.mxu0 %v2620
  %v2668 = vpop.f32.mrf.mxu0
  %v2669 = vadd.f32 0.0, %v2668
  %2670 = vmatmul.f32.gmra.mxu0 %v2622
  %v2671 = vpop.f32.mrf.mxu0
  %v2672 = vadd.f32 0.0, %v2671
  %2673 = vmatmul.f32.gmra.mxu0 %v2625
  %v2674 = vpop.f32.mrf.mxu0
  %v2675 = vadd.f32 0.0, %v2674
  %2676 = vmatmul.f32.gmra.mxu0 %v2627
  %v2677 = vpop.f32.mrf.mxu0
  %v2678 = vadd.f32 0.0, %v2677
  %2679 = vmatmul.f32.gmra.mxu0 %v2629
  %v2680 = vpop.f32.mrf.mxu0
  %v2681 = vadd.f32 0.0, %v2680
  %2682 = vmatmul.f32.gmra.mxu0 %v2631
  %v2683 = vpop.f32.mrf.mxu0
  %v2684 = vadd.f32 0.0, %v2683
  %2685 = vmatmul.f32.gmra.mxu0 %v2633
  %v2686 = vpop.f32.mrf.mxu0
  %v2687 = vadd.f32 0.0, %v2686
  %2688 = vmatmul.f32.gmra.mxu0 %v2635
  %v2689 = vpop.f32.mrf.mxu0
  %v2690 = vadd.f32 0.0, %v2689
  %2691 = vmatmul.f32.gmra.mxu0 %v2637
  %v2692 = vpop.f32.mrf.mxu0
  %v2693 = vadd.f32 0.0, %v2692
  %2694 = vdwg.mxu0
  %v2695 = vadd.f32 %v2575, %v2657
  %v2696 = vadd.f32 %v2576, %v2660
  %v2697 = vadd.f32 %v2577, %v2663
  %v2698 = vadd.f32 %v2578, %v2666
  %v2699 = vadd.f32 %v2579, %v2669
  %v2700 = vadd.f32 %v2580, %v2672
  %v2701 = vadd.f32 %v2581, %v2675
  %v2702 = vadd.f32 %v2582, %v2678
  %v2703 = vadd.f32 %v2583, %v2681
  %v2704 = vadd.f32 %v2584, %v2684
  %v2705 = vadd.f32 %v2585, %v2687
  %v2706 = vadd.f32 %v2586, %v2690
  %v2707 = vadd.f32 %v2587, %v2693
  %vm2708 = vcmask 15360
  %2709 = vst.msk [vmem:[%s25] sm:$0xff] %vm2708, %v2695
  %2710 = vst.msk [vmem:[%s25 + $0x8] sm:$0xff] %vm2708, %v2696
  %2711 = vst.msk [vmem:[%s25 + $0x10] sm:$0xff] %vm2708, %v2697
  %2712 = vst.msk [vmem:[%s25 + $0x18] sm:$0xff] %vm2708, %v2698
  %2713 = vst.msk [vmem:[%s25 + $0x20] sm:$0xff] %vm2708, %v2699
  %2714 = vst.msk [vmem:[%s25 + $0x28] sm:$0xff] %vm2708, %v2700
  %2715 = vst.msk [vmem:[%s25 + $0x30] sm:$0xff] %vm2708, %v2701
  %2716 = vst.msk [vmem:[%s25 + $0x38] sm:$0xff] %vm2708, %v2702
  %2717 = vst.msk [vmem:[%s25 + $0x40] sm:$0xff] %vm2708, %v2703
  %2718 = vst.msk [vmem:[%s25 + $0x48] sm:$0xff] %vm2708, %v2704
  %2719 = vst.msk [vmem:[%s25 + $0x50] sm:$0xff] %vm2708, %v2705
  %2720 = vst.msk [vmem:[%s25 + $0x58] sm:$0xff] %vm2708, %v2706
  %vm2721 = vcmask 11264
  %2722 = vst.msk [vmem:[%s25 + $0x60] sm:$0xf] %vm2721, %v2707
  // Predicated region
  $region98: #{vae_forward.1} parent=0 // pred_check
    _
  $region99: #{vae_forward.1} parent=0 // pred_check_branch
    %2724 = sbr.rel (0) target = $region101
  $region100: #{vae_forward.1} parent=0 // pred_region
    _
  $region101: #{vae_forward.1} parent=0 // pred_fallthru
    _
  // Predicated region
  $region102: #{vae_forward.1} parent=0 // pred_check
    _
  $region103: #{vae_forward.1} parent=0 // pred_check_branch
    %2726 = sbr.rel (0) target = $region105
  $region104: #{vae_forward.1} parent=0 // pred_region
    _
  $region105: #{vae_forward.1} parent=0 // pred_fallthru
    _
  // Predicated region
  $region106: #{vae_forward.1} parent=0 // pred_check
    _
  $region107: #{vae_forward.1} parent=0 // pred_check_branch
    %2728 = sbr.rel (0) target = $region109
  $region108: #{vae_forward.1} parent=0 // pred_region
    _
  $region109: #{vae_forward.1} parent=0 // pred_fallthru
    _
  // Predicated region
  $region110: #{vae_forward.1} parent=0 // pred_check
    _
  $region111: #{vae_forward.1} parent=0 // pred_check_branch
    %2730 = sbr.rel (0) target = $region113
  $region112: #{vae_forward.1} parent=0 // pred_region
    _
  $region113: #{vae_forward.1} parent=0 // pred_fallthru
    _

</llo_original>
